<compile_context>
chip_gen: v5e
topology: v5e:2x2
jax: 0.10.0
libtpu: 0.0.40
codegen_flags: <defaults>
</compile_context>

<pallas_src>
import functools
import numpy as np
import jax
import jax.numpy as jnp
from jax.experimental import pallas as pl
from jax.experimental.pallas import tpu as pltpu


# ----------------------------- anchor helpers (plain numpy glue) ------------
def generate_anchor_base(base_size=16, ratios=(0.5, 1, 2), anchor_scales=(8, 16, 32)):
    anchor_base = np.zeros((len(ratios) * len(anchor_scales), 4), dtype=np.float32)
    for i in range(len(ratios)):
        for j in range(len(anchor_scales)):
            h = base_size * anchor_scales[j] * np.sqrt(ratios[i])
            w = base_size * anchor_scales[j] * np.sqrt(1.0 / ratios[i])
            index = i * len(anchor_scales) + j
            anchor_base[index, 0] = -h / 2.0
            anchor_base[index, 1] = -w / 2.0
            anchor_base[index, 2] = h / 2.0
            anchor_base[index, 3] = w / 2.0
    return anchor_base


def _enumerate_shifted_anchor(anchor_base, feat_stride, height, width):
    shift_x = np.arange(0, width * feat_stride, feat_stride)
    shift_y = np.arange(0, height * feat_stride, feat_stride)
    shift_x, shift_y = np.meshgrid(shift_x, shift_y)
    shift = np.stack(
        (shift_x.ravel(), shift_y.ravel(), shift_x.ravel(), shift_y.ravel()), axis=1
    )
    A = anchor_base.shape[0]
    K = shift.shape[0]
    anchor = anchor_base.reshape((1, A, 4)) + shift.reshape((K, 1, 4))
    return anchor.reshape((K * A, 4)).astype(np.float32)


def _round_up(x, m):
    return ((x + m - 1) // m) * m


# ----------------------------- Pallas kernel --------------------------------
def rpn_kernel(x_ref, w1_ref, b1_ref, wh_ref, bh_ref, out_ref, patch_ref,
               *, tile_m, wp, cin):
    # x_ref:     (1, 1, (TR+3)*wp, Cin) f32  -- haloed, zero-padded row-tile slab
    # w1_ref:    (9*Cin, CM)  bf16           -- repacked 3x3 conv weight
    # b1_ref:    (1, CM)      f32
    # wh_ref:    (CM, OW)     bf16           -- fused heads [loc|score|fg_logit|0]
    # bh_ref:    (1, OW)      f32
    # out_ref:   (1, 1, tile_m, OW) bf16     -- lane-dense raw-logit slab
    # patch_ref: (tile_m, 9*Cin) bf16        -- VMEM scratch patch buffer

    # Pack the 9 shifted taps into the patch scratch -> one K=9*Cin MXU dot
    # instead of nine K=Cin dots with a spilling f32 accumulator.
    for t in range(9):
        dy, dx = divmod(t, 3)
        off = dy * wp + dx
        patch_ref[:, t * cin:(t + 1) * cin] = (
            x_ref[0, 0, off:off + tile_m, :].astype(jnp.bfloat16))

    # 3x3 conv + bias + ReLU (f32 accumulation), cast to bf16 for the head dot.
    mid = jnp.maximum(
        jnp.dot(patch_ref[...], w1_ref[...],
                preferred_element_type=jnp.float32) + b1_ref[...],
        0.0).astype(jnp.bfloat16)

    # Single fused head matmul: [loc(36) | score(18) | fg_logit(9) | pad].
    # Raw logits only; the fg sigmoid is applied in the wrapper (9/128 lanes).
    head = jnp.dot(mid, wh_ref[...],
                   preferred_element_type=jnp.float32) + bh_ref[...]
    out_ref[0, 0] = head.astype(out_ref.dtype)


# ----------------------------- module wrapper --------------------------------
class RegionProposalNetworkPallas:
    def __init__(self, in_channels=16, mid_channels=32,
                 ratios=(0.5, 1, 2), anchor_scales=(8, 16, 32),
                 feat_stride=16, seed=0):
        self.anchor_base = generate_anchor_base(
            anchor_scales=anchor_scales, ratios=ratios)
        self.n_anchor = A = self.anchor_base.shape[0]
        self.feat_stride = feat_stride
        self.in_channels = in_channels
        self.mid_channels = mid_channels

        self.cmid_pad = _round_up(max(mid_channels, 128), 128)   # 128-lane dense mid
        self.n_loc = A * 4                                       # 36
        self.n_sc = A * 2                                        # 18
        self.fg_lo = self.n_loc + self.n_sc                      # 54
        self.fg_hi = self.fg_lo + A                              # 63
        self.out_w = _round_up(max(self.fg_hi, 128), 128)        # 128

        # Deterministic parameter init (PyTorch layouts), then repack for kernel.
        key = jax.random.PRNGKey(seed)
        k1, k2, k3, k4, k5, k6 = jax.random.split(key, 6)
        w1 = 0.05 * jax.random.normal(k1, (mid_channels, in_channels, 3, 3), jnp.float32)
        b1 = 0.05 * jax.random.normal(k2, (mid_channels,), jnp.float32)
        wloc = 0.05 * jax.random.normal(k3, (A * 4, mid_channels, 1, 1), jnp.float32)
        bloc = 0.05 * jax.random.normal(k4, (A * 4,), jnp.float32)
        wsc = 0.05 * jax.random.normal(k5, (A * 2, mid_channels, 1, 1), jnp.float32)
        bsc = 0.05 * jax.random.normal(k6, (A * 2,), jnp.float32)

        # conv1: (Cmid, Cin, 3, 3) -> (9*Cin, Cmid_pad), row index = (dy*3+dx)*Cin + cin
        w1t = jnp.transpose(w1, (2, 3, 1, 0)).reshape(9 * in_channels, mid_channels)
        self.w1p = (jnp.zeros((9 * in_channels, self.cmid_pad), jnp.float32)
                    .at[:, :mid_channels].set(w1t).astype(jnp.bfloat16))
        self.b1p = (jnp.zeros((1, self.cmid_pad), jnp.float32)
                    .at[0, :mid_channels].set(b1))

        # fused heads: [Wloc | Wscore (interleaved bg/fg) | Wsc_fg - Wsc_bg | 0]
        wloc_m = jnp.transpose(wloc[:, :, 0, 0], (1, 0))     # (Cmid, A*4)
        wsc_m = jnp.transpose(wsc[:, :, 0, 0], (1, 0))       # (Cmid, A*2)
        wdiff = wsc_m[:, 1::2] - wsc_m[:, 0::2]              # (Cmid, A) fg-logit
        whead_core = jnp.concatenate([wloc_m, wsc_m, wdiff], axis=1)   # (Cmid, 63)
        self.whead = (jnp.zeros((self.cmid_pad, self.out_w), jnp.float32)
                      .at[:mid_channels, :self.fg_hi].set(whead_core)
                      .astype(jnp.bfloat16))
        bdiff = bsc[1::2] - bsc[0::2]
        bhead_core = jnp.concatenate([bloc, bsc, bdiff])     # (63,)
        self.bhead = (jnp.zeros((1, self.out_w), jnp.float32)
                      .at[0, :self.fg_hi].set(bhead_core))

    def __call__(self, x, img_size, scale=1.0, tile_rows=None):
        n, c, h, w = x.shape
        assert c == self.in_channels
        A = self.n_anchor
        wp = w + 2                          # padded width

        # Row-tile size: target ~1-2K patch rows per MXU launch, dividing h.
        if tile_rows is None:
            tile_rows = 1
            for d in range(h, 0, -1):
                if h % d == 0 and d * wp <= 2048:
                    tile_rows = d
                    break
        assert h % tile_rows == 0, "tile_rows must divide the feature height"
        n_tiles = h // tile_rows
        tile_m = tile_rows * wp             # conv rows per grid step (padded width)
        slab_rows = (tile_rows + 3) * wp    # haloed input rows per grid step

        # glue: NCHW -> NHWC -> zero-pad (top 1, bottom 2, left/right 1)
        x_nhwc = jnp.transpose(x, (0, 2, 3, 1))
        xpad = jnp.pad(x_nhwc, ((0, 0), (1, 2), (1, 1), (0, 0)))   # (n, h+3, wp, c)

        # Build non-overlapping haloed row tiles (3-row halo duplicated per tile).
        tiles = [xpad[:, t * tile_rows:t * tile_rows + tile_rows + 3]
                 for t in range(n_tiles)]
        x_tiles = jnp.stack(tiles, axis=1).reshape(n, n_tiles, slab_rows, c)

        kernel = functools.partial(rpn_kernel, tile_m=tile_m, wp=wp, cin=c)

        grid_spec = pltpu.PrefetchScalarGridSpec(
            num_scalar_prefetch=0,
            grid=(n, n_tiles),
            in_specs=[
                pl.BlockSpec((1, 1, slab_rows, c), lambda i, t: (i, t, 0, 0)),
                pl.BlockSpec(self.w1p.shape, lambda i, t: (0, 0)),
                pl.BlockSpec(self.b1p.shape, lambda i, t: (0, 0)),
                pl.BlockSpec(self.whead.shape, lambda i, t: (0, 0)),
                pl.BlockSpec(self.bhead.shape, lambda i, t: (0, 0)),
            ],
            out_specs=pl.BlockSpec((1, 1, tile_m, self.out_w),
                                   lambda i, t: (i, t, 0, 0)),
            scratch_shapes=[pltpu.VMEM((tile_m, 9 * c), jnp.bfloat16)],
        )

        flops = 2 * n * n_tiles * tile_m * (
            9 * c * self.cmid_pad + self.cmid_pad * self.out_w)
        bytes_accessed = (
            n * n_tiles * slab_rows * c * 4              # x tiles (f32)
            + self.w1p.size * 2 + self.whead.size * 2    # bf16 weights
            + self.b1p.size * 4 + self.bhead.size * 4    # f32 biases
            + n * n_tiles * tile_m * self.out_w * 2)     # bf16 output slab
        cost = pl.CostEstimate(flops=flops, transcendentals=0,
                               bytes_accessed=bytes_accessed)

        slab = pl.pallas_call(
            kernel,
            out_shape=jax.ShapeDtypeStruct((n, n_tiles, tile_m, self.out_w),
                                           jnp.bfloat16),
            grid_spec=grid_spec,
            compiler_params=pltpu.CompilerParams(
                dimension_semantics=("parallel", "parallel")),
            cost_estimate=cost,
        )(x_tiles, self.w1p, self.b1p, self.whead, self.bhead)

        # Drop the padded-width columns, split the fused slab.  Output layouts
        # match PyTorch's permute(0,2,3,1).view(...) exactly.
        slab = slab.reshape(n, h, wp, self.out_w)[:, :, :w, :].astype(jnp.float32)
        rpn_locs = slab[..., :self.n_loc].reshape(n, h * w * A, 4)
        rpn_scores = slab[..., self.n_loc:self.fg_lo].reshape(n, h * w * A, 2)
        # fg softmax over 2 classes == sigmoid(s_fg - s_bg); applied here on the
        # 9 fg-logit columns only (hoisted out of the kernel).
        rpn_fg_scores = jax.nn.sigmoid(
            slab[..., self.fg_lo:self.fg_hi]).reshape(n, h * w * A)

        anchor = jnp.asarray(_enumerate_shifted_anchor(
            np.array(self.anchor_base), self.feat_stride, h, w))

        # TODO(synk): ProposalCreator (clip/filter/argsort/NMS/top-k) is
        # data-dependent & dynamic-shape -> not implemented as a Pallas kernel.
        rois = None
        roi_indices = None
        return rpn_locs, rpn_scores, rpn_fg_scores, rois, roi_indices, anchor


# ----------------------------- reference (plain JAX) -------------------------
def _reference(rpn, x):
    n, c, h, w = x.shape
    x_nhwc = jnp.transpose(x, (0, 2, 3, 1))
    xpad = jnp.pad(x_nhwc, ((0, 0), (1, 1), (1, 1), (0, 0)))
    taps = [xpad[:, dy:dy + h, dx:dx + w, :] for dy in range(3) for dx in range(3)]
    patches = jnp.concatenate(taps, axis=-1).reshape(n, h * w, 9 * c)
    patches = patches.astype(jnp.bfloat16)

    mid = jnp.maximum(
        jnp.einsum("npk,km->npm", patches, rpn.w1p,
                   preferred_element_type=jnp.float32) + rpn.b1p, 0.0)
    mid = mid.astype(jnp.bfloat16)
    head = jnp.einsum("npm,mo->npo", mid, rpn.whead,
                      preferred_element_type=jnp.float32) + rpn.bhead
    head = head.astype(jnp.bfloat16).astype(jnp.float32)   # kernel stores bf16 slab

    A = rpn.n_anchor
    loc = head[..., :rpn.n_loc].reshape(n, h * w * A, 4)
    sc = head[..., rpn.n_loc:rpn.fg_lo].reshape(n, h * w * A, 2)
    fg = jax.nn.sigmoid(head[..., rpn.fg_lo:rpn.fg_hi]).reshape(n, h * w * A)
    return loc, sc, fg


# ----------------------------- main -------------------------------------------
if __name__ == "__main__":
    N, Cin, H, W = 2, 16, 16, 16
    img_size = (H * 16, W * 16)

    key = jax.random.PRNGKey(0)
    x = jax.random.normal(key, (N, Cin, H, W), jnp.float32)

    rpn = RegionProposalNetworkPallas(in_channels=Cin, mid_channels=32,
                                      feat_stride=16, seed=0)

    ref_locs, ref_scores, ref_fg = _reference(rpn, x)
    A = rpn.n_anchor

    # Exercise both the single-tile path (auto) and the row-tiled path.
    for tr in (None, 8):
        rpn_locs, rpn_scores, rpn_fg, rois, roi_idx, anchor = rpn(
            x, img_size, tile_rows=tr)
        jax.block_until_ready((rpn_locs, rpn_scores, rpn_fg, anchor))

        np.testing.assert_allclose(np.asarray(rpn_locs), np.asarray(ref_locs),
                                   rtol=2e-2, atol=2e-2)
        np.testing.assert_allclose(np.asarray(rpn_scores), np.asarray(ref_scores),
                                   rtol=2e-2, atol=2e-2)
        np.testing.assert_allclose(np.asarray(rpn_fg), np.asarray(ref_fg),
                                   rtol=2e-2, atol=2e-2)

        assert rpn_locs.shape == (N, H * W * A, 4)
        assert rpn_scores.shape == (N, H * W * A, 2)
        assert rpn_fg.shape == (N, H * W * A)
        assert anchor.shape == (H * W * A, 4)

    print("KERNEL_OK")
</pallas_src>

<mosaic_0001>
module attributes {stable_mosaic.version = 11 : i64} {
  func.func @rpn_kernel(%arg0: i32, %arg1: i32, %arg2: memref<1x1x342x16xf32, #tpu.memory_space<vmem>>, %arg3: memref<144x128xbf16, #tpu.memory_space<vmem>>, %arg4: memref<1x128xf32, #tpu.memory_space<vmem>>, %arg5: memref<128x128xbf16, #tpu.memory_space<vmem>>, %arg6: memref<1x128xf32, #tpu.memory_space<vmem>>, %arg7: memref<1x1x288x128xbf16, #tpu.memory_space<vmem>>, %arg8: memref<288x144xbf16, #tpu.memory_space<vmem>>) attributes {dimension_semantics = [#tpu.dimension_semantics<parallel>, #tpu.dimension_semantics<parallel>], iteration_bounds = array<i64: 2, 1>, scalar_prefetch = 0 : i64, scratch_operands = 1 : i64, tpu.core_type = #tpu.core_type<tc>, window_params = [{transform_indices = @transform_0, window_bounds = array<i64: 1, 1, 342, 16>}, {pipeline_mode = #tpu.pipeline_mode<synchronous>, transform_indices = @transform_1, window_bounds = array<i64: 144, 128>}, {pipeline_mode = #tpu.pipeline_mode<synchronous>, transform_indices = @transform_2, window_bounds = array<i64: 1, 128>}, {pipeline_mode = #tpu.pipeline_mode<synchronous>, transform_indices = @transform_3, window_bounds = array<i64: 128, 128>}, {pipeline_mode = #tpu.pipeline_mode<synchronous>, transform_indices = @transform_4, window_bounds = array<i64: 1, 128>}, {transform_indices = @transform_5, window_bounds = array<i64: 1, 1, 288, 128>}]} {
    %c0 = arith.constant 0 : index
    %c0_0 = arith.constant 0 : index
    %c0_1 = arith.constant 0 : index
    %c0_2 = arith.constant 0 : index
    %0 = vector.load %arg2[%c0, %c0_0, %c0_1, %c0_2] : memref<1x1x342x16xf32, #tpu.memory_space<vmem>>, vector<1x1x288x16xf32>
    %1 = vector.shape_cast %0 : vector<1x1x288x16xf32> to vector<288x16xf32>
    %2 = arith.truncf %1 : vector<288x16xf32> to vector<288x16xbf16>
    %c0_3 = arith.constant 0 : index
    %c0_4 = arith.constant 0 : index
    %3 = vector.load %arg8[%c0_3, %c0_4] : memref<288x144xbf16, #tpu.memory_space<vmem>>, vector<288x16xbf16>
    tpu.vector_store %arg8[%c0_3, %c0_4], %2 {strides = array<i32>} : memref<288x144xbf16, #tpu.memory_space<vmem>>, vector<288x16xbf16>,
    %c0_5 = arith.constant 0 : index
    %c0_6 = arith.constant 0 : index
    %c1 = arith.constant 1 : index
    %c0_7 = arith.constant 0 : index
    %4 = vector.load %arg2[%c0_5, %c0_6, %c1, %c0_7] : memref<1x1x342x16xf32, #tpu.memory_space<vmem>>, vector<1x1x288x16xf32>
    %5 = vector.shape_cast %4 : vector<1x1x288x16xf32> to vector<288x16xf32>
    %6 = arith.truncf %5 : vector<288x16xf32> to vector<288x16xbf16>
    %c0_8 = arith.constant 0 : index
    %c16 = arith.constant 16 : index
    %7 = vector.load %arg8[%c0_8, %c16] : memref<288x144xbf16, #tpu.memory_space<vmem>>, vector<288x16xbf16>
    tpu.vector_store %arg8[%c0_8, %c16], %6 {strides = array<i32>} : memref<288x144xbf16, #tpu.memory_space<vmem>>, vector<288x16xbf16>,
    %c0_9 = arith.constant 0 : index
    %c0_10 = arith.constant 0 : index
    %c2 = arith.constant 2 : index
    %c0_11 = arith.constant 0 : index
    %8 = vector.load %arg2[%c0_9, %c0_10, %c2, %c0_11] : memref<1x1x342x16xf32, #tpu.memory_space<vmem>>, vector<1x1x288x16xf32>
    %9 = vector.shape_cast %8 : vector<1x1x288x16xf32> to vector<288x16xf32>
    %10 = arith.truncf %9 : vector<288x16xf32> to vector<288x16xbf16>
    %c0_12 = arith.constant 0 : index
    %c32 = arith.constant 32 : index
    %11 = vector.load %arg8[%c0_12, %c32] : memref<288x144xbf16, #tpu.memory_space<vmem>>, vector<288x16xbf16>
    tpu.vector_store %arg8[%c0_12, %c32], %10 {strides = array<i32>} : memref<288x144xbf16, #tpu.memory_space<vmem>>, vector<288x16xbf16>,
    %c0_13 = arith.constant 0 : index
    %c0_14 = arith.constant 0 : index
    %c18 = arith.constant 18 : index
    %c0_15 = arith.constant 0 : index
    %12 = vector.load %arg2[%c0_13, %c0_14, %c18, %c0_15] : memref<1x1x342x16xf32, #tpu.memory_space<vmem>>, vector<1x1x288x16xf32>
    %13 = vector.shape_cast %12 : vector<1x1x288x16xf32> to vector<288x16xf32>
    %14 = arith.truncf %13 : vector<288x16xf32> to vector<288x16xbf16>
    %c0_16 = arith.constant 0 : index
    %c48 = arith.constant 48 : index
    %15 = vector.load %arg8[%c0_16, %c48] : memref<288x144xbf16, #tpu.memory_space<vmem>>, vector<288x16xbf16>
    tpu.vector_store %arg8[%c0_16, %c48], %14 {strides = array<i32>} : memref<288x144xbf16, #tpu.memory_space<vmem>>, vector<288x16xbf16>,
    %c0_17 = arith.constant 0 : index
    %c0_18 = arith.constant 0 : index
    %c19 = arith.constant 19 : index
    %c0_19 = arith.constant 0 : index
    %16 = vector.load %arg2[%c0_17, %c0_18, %c19, %c0_19] : memref<1x1x342x16xf32, #tpu.memory_space<vmem>>, vector<1x1x288x16xf32>
    %17 = vector.shape_cast %16 : vector<1x1x288x16xf32> to vector<288x16xf32>
    %18 = arith.truncf %17 : vector<288x16xf32> to vector<288x16xbf16>
    %c0_20 = arith.constant 0 : index
    %c64 = arith.constant 64 : index
    %19 = vector.load %arg8[%c0_20, %c64] : memref<288x144xbf16, #tpu.memory_space<vmem>>, vector<288x16xbf16>
    tpu.vector_store %arg8[%c0_20, %c64], %18 {strides = array<i32>} : memref<288x144xbf16, #tpu.memory_space<vmem>>, vector<288x16xbf16>,
    %c0_21 = arith.constant 0 : index
    %c0_22 = arith.constant 0 : index
    %c20 = arith.constant 20 : index
    %c0_23 = arith.constant 0 : index
    %20 = vector.load %arg2[%c0_21, %c0_22, %c20, %c0_23] : memref<1x1x342x16xf32, #tpu.memory_space<vmem>>, vector<1x1x288x16xf32>
    %21 = vector.shape_cast %20 : vector<1x1x288x16xf32> to vector<288x16xf32>
    %22 = arith.truncf %21 : vector<288x16xf32> to vector<288x16xbf16>
    %c0_24 = arith.constant 0 : index
    %c80 = arith.constant 80 : index
    %23 = vector.load %arg8[%c0_24, %c80] : memref<288x144xbf16, #tpu.memory_space<vmem>>, vector<288x16xbf16>
    tpu.vector_store %arg8[%c0_24, %c80], %22 {strides = array<i32>} : memref<288x144xbf16, #tpu.memory_space<vmem>>, vector<288x16xbf16>,
    %c0_25 = arith.constant 0 : index
    %c0_26 = arith.constant 0 : index
    %c36 = arith.constant 36 : index
    %c0_27 = arith.constant 0 : index
    %24 = vector.load %arg2[%c0_25, %c0_26, %c36, %c0_27] : memref<1x1x342x16xf32, #tpu.memory_space<vmem>>, vector<1x1x288x16xf32>
    %25 = vector.shape_cast %24 : vector<1x1x288x16xf32> to vector<288x16xf32>
    %26 = arith.truncf %25 : vector<288x16xf32> to vector<288x16xbf16>
    %c0_28 = arith.constant 0 : index
    %c96 = arith.constant 96 : index
    %27 = vector.load %arg8[%c0_28, %c96] : memref<288x144xbf16, #tpu.memory_space<vmem>>, vector<288x16xbf16>
    tpu.vector_store %arg8[%c0_28, %c96], %26 {strides = array<i32>} : memref<288x144xbf16, #tpu.memory_space<vmem>>, vector<288x16xbf16>,
    %c0_29 = arith.constant 0 : index
    %c0_30 = arith.constant 0 : index
    %c37 = arith.constant 37 : index
    %c0_31 = arith.constant 0 : index
    %28 = vector.load %arg2[%c0_29, %c0_30, %c37, %c0_31] : memref<1x1x342x16xf32, #tpu.memory_space<vmem>>, vector<1x1x288x16xf32>
    %29 = vector.shape_cast %28 : vector<1x1x288x16xf32> to vector<288x16xf32>
    %30 = arith.truncf %29 : vector<288x16xf32> to vector<288x16xbf16>
    %c0_32 = arith.constant 0 : index
    %c112 = arith.constant 112 : index
    %31 = vector.load %arg8[%c0_32, %c112] : memref<288x144xbf16, #tpu.memory_space<vmem>>, vector<288x16xbf16>
    tpu.vector_store %arg8[%c0_32, %c112], %30 {strides = array<i32>} : memref<288x144xbf16, #tpu.memory_space<vmem>>, vector<288x16xbf16>,
    %c0_33 = arith.constant 0 : index
    %c0_34 = arith.constant 0 : index
    %c38 = arith.constant 38 : index
    %c0_35 = arith.constant 0 : index
    %32 = vector.load %arg2[%c0_33, %c0_34, %c38, %c0_35] : memref<1x1x342x16xf32, #tpu.memory_space<vmem>>, vector<1x1x288x16xf32>
    %33 = vector.shape_cast %32 : vector<1x1x288x16xf32> to vector<288x16xf32>
    %34 = arith.truncf %33 : vector<288x16xf32> to vector<288x16xbf16>
    %c0_36 = arith.constant 0 : index
    %c128 = arith.constant 128 : index
    %35 = vector.load %arg8[%c0_36, %c128] : memref<288x144xbf16, #tpu.memory_space<vmem>>, vector<288x16xbf16>
    tpu.vector_store %arg8[%c0_36, %c128], %34 {strides = array<i32>} : memref<288x144xbf16, #tpu.memory_space<vmem>>, vector<288x16xbf16>,
    %c0_37 = arith.constant 0 : index
    %c0_38 = arith.constant 0 : index
    %36 = vector.load %arg8[%c0_37, %c0_38] : memref<288x144xbf16, #tpu.memory_space<vmem>>, vector<288x144xbf16>
    %c0_39 = arith.constant 0 : index
    %c0_40 = arith.constant 0 : index
    %37 = vector.load %arg3[%c0_39, %c0_40] : memref<144x128xbf16, #tpu.memory_space<vmem>>, vector<144x128xbf16>
    %cst = arith.constant dense<0.000000e+00> : vector<288x128xf32>
    %38 = tpu.matmul %36, %37, %cst {dimension_numbers = #tpu.dot_dimension_numbers<[1], [0], [0], [1], [0, 0, 1, 1], [], []>} : vector<288x144xbf16>, vector<144x128xbf16>, vector<288x128xf32> -> vector<288x128xf32>
    %c0_41 = arith.constant 0 : index
    %c0_42 = arith.constant 0 : index
    %39 = vector.load %arg4[%c0_41, %c0_42] : memref<1x128xf32, #tpu.memory_space<vmem>>, vector<1x128xf32>
    %40 = vector.broadcast %39 : vector<1x128xf32> to vector<288x128xf32>
    %41 = arith.addf %38, %40 : vector<288x128xf32>
    %cst_43 = arith.constant 0.000000e+00 : f32
    %42 = vector.broadcast %cst_43 : f32 to vector<288x128xf32>
    %43 = arith.maximumf %41, %42 : vector<288x128xf32>
    %44 = arith.truncf %43 : vector<288x128xf32> to vector<288x128xbf16>
    %c0_44 = arith.constant 0 : index
    %c0_45 = arith.constant 0 : index
    %45 = vector.load %arg5[%c0_44, %c0_45] : memref<128x128xbf16, #tpu.memory_space<vmem>>, vector<128x128xbf16>
    %cst_46 = arith.constant dense<0.000000e+00> : vector<288x128xf32>
    %46 = tpu.matmul %44, %45, %cst_46 {dimension_numbers = #tpu.dot_dimension_numbers<[1], [0], [0], [1], [0, 0, 1, 1], [], []>} : vector<288x128xbf16>, vector<128x128xbf16>, vector<288x128xf32> -> vector<288x128xf32>
    %c0_47 = arith.constant 0 : index
    %c0_48 = arith.constant 0 : index
    %47 = vector.load %arg6[%c0_47, %c0_48] : memref<1x128xf32, #tpu.memory_space<vmem>>, vector<1x128xf32>
    %48 = vector.broadcast %47 : vector<1x128xf32> to vector<288x128xf32>
    %49 = arith.addf %46, %48 : vector<288x128xf32>
    %50 = arith.truncf %49 : vector<288x128xf32> to vector<288x128xbf16>
    %c0_49 = arith.constant 0 : index
    %c0_50 = arith.constant 0 : index
    %c0_51 = arith.constant 0 : index
    %c0_52 = arith.constant 0 : index
    %51 = vector.load %arg7[%c0_49, %c0_50, %c0_51, %c0_52] : memref<1x1x288x128xbf16, #tpu.memory_space<vmem>>, vector<1x1x288x128xbf16>
    %52 = vector.shape_cast %51 : vector<1x1x288x128xbf16> to vector<288x128xbf16>
    %53 = vector.shape_cast %50 : vector<288x128xbf16> to vector<1x1x288x128xbf16>
    tpu.vector_store %arg7[%c0_49, %c0_50, %c0_51, %c0_52], %53 {strides = array<i32>} : memref<1x1x288x128xbf16, #tpu.memory_space<vmem>>, vector<1x1x288x128xbf16>,
    return
  }
  func.func @transform_0(%arg0: i32, %arg1: i32) -> (i32, i32, i32, i32) {
    %c0_i32 = arith.constant 0 : i32
    %c0_i32_0 = arith.constant 0 : i32
    %c0_i32_1 = arith.constant 0 : i32
    return %arg0, %arg1, %c0_i32, %c0_i32_0 : i32, i32, i32, i32
  }
  func.func @transform_1(%arg0: i32, %arg1: i32) -> (i32, i32) {
    %c0_i32 = arith.constant 0 : i32
    %c0_i32_0 = arith.constant 0 : i32
    %c0_i32_1 = arith.constant 0 : i32
    return %c0_i32, %c0_i32_0 : i32, i32
  }
  func.func @transform_2(%arg0: i32, %arg1: i32) -> (i32, i32) {
    %c0_i32 = arith.constant 0 : i32
    %c0_i32_0 = arith.constant 0 : i32
    %c0_i32_1 = arith.constant 0 : i32
    return %c0_i32, %c0_i32_0 : i32, i32
  }
  func.func @transform_3(%arg0: i32, %arg1: i32) -> (i32, i32) {
    %c0_i32 = arith.constant 0 : i32
    %c0_i32_0 = arith.constant 0 : i32
    %c0_i32_1 = arith.constant 0 : i32
    return %c0_i32, %c0_i32_0 : i32, i32
  }
  func.func @transform_4(%arg0: i32, %arg1: i32) -> (i32, i32) {
    %c0_i32 = arith.constant 0 : i32
    %c0_i32_0 = arith.constant 0 : i32
    %c0_i32_1 = arith.constant 0 : i32
    return %c0_i32, %c0_i32_0 : i32, i32
  }
  func.func @transform_5(%arg0: i32, %arg1: i32) -> (i32, i32, i32, i32) {
    %c0_i32 = arith.constant 0 : i32
    %c0_i32_0 = arith.constant 0 : i32
    %c0_i32_1 = arith.constant 0 : i32
    return %arg0, %arg1, %c0_i32, %c0_i32_0 : i32, i32, i32, i32
  }
}

</mosaic_0001>

<llo_original>
// kernel: tpu_custom_call.1
$region0: #{tpu_custom_call.1}
  #allocation0 [shape = 'u32[]', space=smem, size = 0x4, offset = 0x4, fixed_abs, tag = 'smem constant byte address 0x4 - core index']
  #allocation1 [shape = 'u32[72,128]{1,0:T(1,128)}', space=vmem, size = 0x9000, scoped, tag = 'internal scratch']
  #allocation2 [shape = 'bf16[288,144]{1,0:T(8,128)(2,1)}', space=vmem, size = 0x24000, scoped, tag = 'scratch operand']
  %s0 = inlined_call_operand.vmem [shape: f32[2,1,342,16], index: 0, kind: input, shape index: {}]
  %s1 = inlined_call_operand.vmem [shape: bf16[144,128], index: 1, kind: input, shape index: {}]
  %s2 = inlined_call_operand.vmem [shape: f32[1,128], index: 2, kind: input, shape index: {}]
  %s3 = inlined_call_operand.vmem [shape: bf16[128,128], index: 3, kind: input, shape index: {}]
  %s4 = inlined_call_operand.vmem [shape: f32[1,128], index: 4, kind: input, shape index: {}]
  %s5 = inlined_call_operand.hbm [shape: bf16[2,1,288,128], index: 5, kind: output, shape index: {}]
  %s6 = sld [smem:[#allocation0]]
  $region53: #{tpu_custom_call.1} parent=0
    _
  %s8 = ssub.s32 1, %s6
  %s9 = scalar_select 0, %s8, %s6
  $region1: #{tpu_custom_call.1} parent=0
    #allocation3 [shape = 'u8[147456]{0}', space=vmem, size = 0x24000, scoped, tag = 'output window, operand 0']
    #allocation4 [shape = 's32[2]{0}', space=sflag, size = 0x8, scoped, tag = 'scoped memory for tpu_custom_call.1']
    %10 = vsyncpa [#allocation4], 0
    %s11 = scalar_lea.sflag [#allocation4], 1
    %12 = vsyncpa %s11, 0
    loop: start=0, step=1, limit=4
    $region2: #{tpu_custom_call.1} parent=1 // loop_pre_header
      _
    $region3: #{tpu_custom_call.1} parent=1 // loop_header
      %s14 = sphi 0, %s18
      %p15 = scmp.ge.s32.totalorder %s14, 4
      %s21 = sphi 0, %s33
      %s22 = sphi 0, %s29
      %s23 = sphi 0, %s21
      %s24 = sphi 0, %s22
      %s25 = sphi 0, %s23
      %s26 = sphi 0, %s24
      %s38 = sphi 0, %s40
      %s41 = sphi 0, %s38
      %s42 = sphi 0, %s41
      %s58 = sphi 0, %s42
      %s62 = sphi 0, %s62
      %s64 = sphi 0, %s62
      %s65 = sphi 0, %s64
      %s79 = sphi 0, %s65
      %s83 = sphi 0, %s83
      %s85 = sphi 0, %s83
      %s86 = sphi 0, %s85
      %s100 = sphi 0, %s86
      %s104 = sphi 0, %s104
      %s106 = sphi 0, %s104
      %s107 = sphi 0, %s106
      %s121 = sphi 0, %s107
      %s125 = sphi 0, %s125
      %s127 = sphi 0, %s125
      %s128 = sphi 0, %s127
      %s142 = sphi 0, %s128
      %s150 = sphi 0, %s152
      %s153 = sphi 0, %s150
      %s154 = sphi 0, %s153
      %s170 = sphi 0, %s154
    $region4: #{tpu_custom_call.1} parent=1 // loop_header_branch
      %17 = sbr.rel (%p15) target = $region8
    $region5: #{tpu_custom_call.1} parent=1 // loop_body
      %s19 = ssub.s32 %s14, 1
      %s20 = ssub.s32 %s14, 2
      %s27 = sadd.s32 1, %s22
      %p28 = scmp.ge.s32.totalorder %s27, 1
      %s29 = scalar_select %p28, 0, %s27
      %s30 = sadd.s32 1, %s21
      %s31 = scalar_select %p28, %s30, %s21
      %p32 = scmp.ge.s32.totalorder %s31, 2
      %s33 = scalar_select %p32, 0, %s31
      %s34 = ssub.s32 %s21, %s33
      %s35 = ssub.s32 %s22, %s29
      %s36 = sor.u32 %s34, %s35
      %p37 = scmp.eq.s32.totalorder %s36, 0
      %s39 = sadd.s32 %s38, 1
      %s40 = scalar_select %p37, %s38, %s39
      %p43 = pneg %p37
      %p44 = scmp.eq.s32.totalorder %s14, 1
      %p45 = por %p43, %p44
      %p46 = scmp.ne.s32.totalorder %s38, %s41
      %p47 = scmp.eq.s32.totalorder %s14, 0
      %p48 = por %p46, %p47
      %p49 = scmp.ne.s32.totalorder %s38, %s41
      %p50 = scmp.eq.s32.totalorder %s19, 1
      %p51 = por %p49, %p50
      %p52 = scmp.ne.s32.totalorder %s41, %s42
      %p53 = scmp.eq.s32.totalorder %s19, 0
      %p54 = por %p52, %p53
      %p55 = scmp.ne.s32.totalorder %s41, %s42
      %p56 = scmp.eq.s32.totalorder %s20, 1
      %p57 = por %p55, %p56
      %p59 = scmp.ne.s32.totalorder %s42, %s58
      %p60 = scmp.eq.s32.totalorder %s20, 0
      %p61 = por %p59, %p60
      %s63 = sadd.s32 %s62, 1
      %p66 = scmp.eq.s32.totalorder %s14, 1
      %p67 = scmp.ne.s32.totalorder %s62, %s64
      %p68 = scmp.eq.s32.totalorder %s14, 0
      %p69 = por %p67, %p68
      %p70 = scmp.ne.s32.totalorder %s62, %s64
      %p71 = scmp.eq.s32.totalorder %s19, 1
      %p72 = por %p70, %p71
      %p73 = scmp.ne.s32.totalorder %s64, %s65
      %p74 = scmp.eq.s32.totalorder %s19, 0
      %p75 = por %p73, %p74
      %p76 = scmp.ne.s32.totalorder %s64, %s65
      %p77 = scmp.eq.s32.totalorder %s20, 1
      %p78 = por %p76, %p77
      %p80 = scmp.ne.s32.totalorder %s65, %s79
      %p81 = scmp.eq.s32.totalorder %s20, 0
      %p82 = por %p80, %p81
      %s84 = sadd.s32 %s83, 1
      %p87 = scmp.eq.s32.totalorder %s14, 1
      %p88 = scmp.ne.s32.totalorder %s83, %s85
      %p89 = scmp.eq.s32.totalorder %s14, 0
      %p90 = por %p88, %p89
      %p91 = scmp.ne.s32.totalorder %s83, %s85
      %p92 = scmp.eq.s32.totalorder %s19, 1
      %p93 = por %p91, %p92
      %p94 = scmp.ne.s32.totalorder %s85, %s86
      %p95 = scmp.eq.s32.totalorder %s19, 0
      %p96 = por %p94, %p95
      %p97 = scmp.ne.s32.totalorder %s85, %s86
      %p98 = scmp.eq.s32.totalorder %s20, 1
      %p99 = por %p97, %p98
      %p101 = scmp.ne.s32.totalorder %s86, %s100
      %p102 = scmp.eq.s32.totalorder %s20, 0
      %p103 = por %p101, %p102
      %s105 = sadd.s32 %s104, 1
      %p108 = scmp.eq.s32.totalorder %s14, 1
      %p109 = scmp.ne.s32.totalorder %s104, %s106
      %p110 = scmp.eq.s32.totalorder %s14, 0
      %p111 = por %p109, %p110
      %p112 = scmp.ne.s32.totalorder %s104, %s106
      %p113 = scmp.eq.s32.totalorder %s19, 1
      %p114 = por %p112, %p113
      %p115 = scmp.ne.s32.totalorder %s106, %s107
      %p116 = scmp.eq.s32.totalorder %s19, 0
      %p117 = por %p115, %p116
      %p118 = scmp.ne.s32.totalorder %s106, %s107
      %p119 = scmp.eq.s32.totalorder %s20, 1
      %p120 = por %p118, %p119
      %p122 = scmp.ne.s32.totalorder %s107, %s121
      %p123 = scmp.eq.s32.totalorder %s20, 0
      %p124 = por %p122, %p123
      %s126 = sadd.s32 %s125, 1
      %p129 = scmp.eq.s32.totalorder %s14, 1
      %p130 = scmp.ne.s32.totalorder %s125, %s127
      %p131 = scmp.eq.s32.totalorder %s14, 0
      %p132 = por %p130, %p131
      %p133 = scmp.ne.s32.totalorder %s125, %s127
      %p134 = scmp.eq.s32.totalorder %s19, 1
      %p135 = por %p133, %p134
      %p136 = scmp.ne.s32.totalorder %s127, %s128
      %p137 = scmp.eq.s32.totalorder %s19, 0
      %p138 = por %p136, %p137
      %p139 = scmp.ne.s32.totalorder %s127, %s128
      %p140 = scmp.eq.s32.totalorder %s20, 1
      %p141 = por %p139, %p140
      %p143 = scmp.ne.s32.totalorder %s128, %s142
      %p144 = scmp.eq.s32.totalorder %s20, 0
      %p145 = por %p143, %p144
      %s146 = ssub.s32 %s21, %s33
      %s147 = ssub.s32 %s22, %s29
      %s148 = sor.u32 %s146, %s147
      %p149 = scmp.eq.s32.totalorder %s148, 0
      %s151 = sadd.s32 %s150, 1
      %s152 = scalar_select %p149, %s150, %s151
      %p155 = pneg %p149
      %p156 = scmp.eq.s32.totalorder %s14, 1
      %p157 = por %p155, %p156
      %p158 = scmp.ne.s32.totalorder %s150, %s153
      %p159 = scmp.eq.s32.totalorder %s14, 0
      %p160 = por %p158, %p159
      %p161 = scmp.ne.s32.totalorder %s150, %s153
      %p162 = scmp.eq.s32.totalorder %s19, 1
      %p163 = por %p161, %p162
      %p164 = scmp.ne.s32.totalorder %s153, %s154
      %p165 = scmp.eq.s32.totalorder %s19, 0
      %p166 = por %p164, %p165
      %p167 = scmp.ne.s32.totalorder %s153, %s154
      %p168 = scmp.eq.s32.totalorder %s20, 1
      %p169 = por %p167, %p168
      %p171 = scmp.ne.s32.totalorder %s154, %s170
      %p172 = scmp.eq.s32.totalorder %s20, 0
      %p173 = por %p171, %p172
      %p174 = scmp.le.s32.totalorder 1, %s14
      %p175 = scmp.lt.s32.totalorder %s14, 3
      %p176 = pnand %p174, %p175
      %p177 = pneg %p176
      // Predicated region
      $region9: #{tpu_custom_call.1} parent=5 // pred_check
        _
      $region10: #{tpu_custom_call.1} parent=5 // pred_check_branch
        %179 = sbr.rel (%p176) target = $region12
      $region11: #{tpu_custom_call.1} parent=5 // pred_region
        %s180 = ssub.s32 %s14, 1
        // Predicated region
        $region13: #{tpu_custom_call.1} parent=11 // pred_check
          %p181 = pneg %p75
        $region14: #{tpu_custom_call.1} parent=11 // pred_check_branch
          %183 = sbr.rel (%p181) target = $region16
        $region15: #{tpu_custom_call.1} parent=11 // pred_region
          _
        $region16: #{tpu_custom_call.1} parent=11 // pred_fallthru
          _
        // Predicated region
        $region17: #{tpu_custom_call.1} parent=11 // pred_check
          %p184 = pneg %p96
        $region18: #{tpu_custom_call.1} parent=11 // pred_check_branch
          %186 = sbr.rel (%p184) target = $region20
        $region19: #{tpu_custom_call.1} parent=11 // pred_region
          _
        $region20: #{tpu_custom_call.1} parent=11 // pred_fallthru
          _
        // Predicated region
        $region21: #{tpu_custom_call.1} parent=11 // pred_check
          %p187 = pneg %p117
        $region22: #{tpu_custom_call.1} parent=11 // pred_check_branch
          %189 = sbr.rel (%p187) target = $region24
        $region23: #{tpu_custom_call.1} parent=11 // pred_region
          _
        $region24: #{tpu_custom_call.1} parent=11 // pred_fallthru
          _
        // Predicated region
        $region25: #{tpu_custom_call.1} parent=11 // pred_check
          %p190 = pneg %p138
        $region26: #{tpu_custom_call.1} parent=11 // pred_check_branch
          %192 = sbr.rel (%p190) target = $region28
        $region27: #{tpu_custom_call.1} parent=11 // pred_region
          _
        $region28: #{tpu_custom_call.1} parent=11 // pred_fallthru
          _
      $region12: #{tpu_custom_call.1} parent=5 // pred_fallthru
        _
      %p193 = scmp.lt.s32.totalorder %s14, 2
      // Predicated region
      $region29: #{tpu_custom_call.1} parent=5 // pred_check
        %p194 = pneg %p193
      $region30: #{tpu_custom_call.1} parent=5 // pred_check_branch
        %196 = sbr.rel (%p194) target = $region32
      $region31: #{tpu_custom_call.1} parent=5 // pred_region
        // Predicated region
        $region33: #{tpu_custom_call.1} parent=31 // pred_check
          %p197 = pneg %p48
        $region34: #{tpu_custom_call.1} parent=31 // pred_check_branch
          %199 = sbr.rel (%p197) target = $region36
        $region35: #{tpu_custom_call.1} parent=31 // pred_region
          %p200 = scmp.lt.s32.totalorder %s21, 1
          %s201 = scalar_select %p200, %s21, 1
          %p202 = scmp.lt.s32.totalorder %s22, 0
          %s203 = scalar_select %p202, %s22, 0
          %s204 = smul.addr %s203, 43
          %s205 = smul.addr %s201, 43
          %s206 = sadd.s32 %s204, %s205
          %s207 = smul.addr %s206, 8
          %s208 = scalar_lea.vmem %s0, %s207
        $region36: #{tpu_custom_call.1} parent=31 // pred_fallthru
          _
      $region32: #{tpu_custom_call.1} parent=5 // pred_fallthru
        _
      %p209 = scmp.le.s32.totalorder 1, %s14
      %p210 = scmp.lt.s32.totalorder %s14, 3
      %p211 = pnand %p209, %p210
      %p212 = pneg %p211
      // Predicated region
      $region37: #{tpu_custom_call.1} parent=5 // pred_check
        _
      $region38: #{tpu_custom_call.1} parent=5 // pred_check_branch
        %214 = sbr.rel (%p211) target = $region40
      $region39: #{tpu_custom_call.1} parent=5 // pred_region
        %s215 = ssub.s32 %s14, 1
        %p216 = scmp.lt.s32.totalorder %s23, 1
        %s217 = scalar_select %p216, %s23, 1
        %p218 = scmp.lt.s32.totalorder %s24, 0
        %s219 = scalar_select %p218, %s24, 0
        %s220 = smul.addr %s219, 43
        %s221 = smul.addr %s217, 43
        %s222 = sadd.s32 %s220, %s221
        %s223 = smul.addr %s222, 8
        %s224 = scalar_lea.vmem %s0, %s223
        %p225 = pneg %p54
        %p226 = pneg %p51
        %p227 = pneg %p75
        %p228 = pneg %p72
        %p229 = pneg %p96
        %p230 = pneg %p93
        %p231 = pneg %p117
        %p232 = pneg %p114
        %p233 = pneg %p138
        %p234 = pneg %p135
        %p235 = pneg %p166
        %p236 = pneg %p163
        %s237 = sand.u32 %s153, 1
        %s238 = scalar_lea.sflag [#allocation4], %s237
        %s239 = sand.u32 %s153, 1
        %s240 = smul.addr %s239, 144
        %s241 = scalar_lea.vmem [#allocation3], %s240
        %p242 = scmp.lt.s32.totalorder %s23, 1
        %s243 = scalar_select %p242, %s23, 1
        %p244 = scmp.lt.s32.totalorder %s24, 0
        %s245 = scalar_select %p244, %s24, 0
        %s246 = smul.addr %s245, 43
        %s247 = smul.addr %s243, 43
        %s248 = sadd.s32 %s246, %s247
        %s249 = smul.addr %s248, 8
        %s250 = scalar_lea.vmem %s0, %s249
        %v252 = vld [vmem:[%s250] sm:$0xff]
        %v253 = vld [vmem:[%s250 + $0x8] sm:$0xff]
        %v254 = vld [vmem:[%s250 + $0x10] sm:$0xff]
        %v255 = vld [vmem:[%s250 + $0x18] sm:$0xff]
        %v256 = vld [vmem:[%s250 + $0x20] sm:$0xff]
        %v257 = vld [vmem:[%s250 + $0x28] sm:$0xff]
        %v258 = vld [vmem:[%s250 + $0x30] sm:$0xff]
        %v259 = vld [vmem:[%s250 + $0x38] sm:$0xff]
        %v260 = vld [vmem:[%s250 + $0x40] sm:$0xff]
        %v261 = vld [vmem:[%s250 + $0x48] sm:$0xff]
        %v262 = vld [vmem:[%s250 + $0x50] sm:$0xff]
        %v263 = vld [vmem:[%s250 + $0x58] sm:$0xff]
        %v264 = vld [vmem:[%s250 + $0x60] sm:$0xff]
        %v265 = vld [vmem:[%s250 + $0x68] sm:$0xff]
        %v266 = vld [vmem:[%s250 + $0x70] sm:$0xff]
        %v267 = vld [vmem:[%s250 + $0x78] sm:$0xff]
        %v268 = vld [vmem:[%s250 + $0x80] sm:$0xff]
        %v269 = vld [vmem:[%s250 + $0x88] sm:$0xff]
        %v270 = vld [vmem:[%s250 + $0x90] sm:$0xff]
        %v271 = vld [vmem:[%s250 + $0x98] sm:$0xff]
        %v272 = vld [vmem:[%s250 + $0xa0] sm:$0xff]
        %v273 = vld [vmem:[%s250 + $0xa8] sm:$0xff]
        %v274 = vld [vmem:[%s250 + $0xb0] sm:$0xff]
        %v275 = vld [vmem:[%s250 + $0xb8] sm:$0xff]
        %v276 = vld [vmem:[%s250 + $0xc0] sm:$0xff]
        %v277 = vld [vmem:[%s250 + $0xc8] sm:$0xff]
        %v278 = vld [vmem:[%s250 + $0xd0] sm:$0xff]
        %v279 = vld [vmem:[%s250 + $0xd8] sm:$0xff]
        %v280 = vld [vmem:[%s250 + $0xe0] sm:$0xff]
        %v281 = vld [vmem:[%s250 + $0xe8] sm:$0xff]
        %v282 = vld [vmem:[%s250 + $0xf0] sm:$0xff]
        %v283 = vld [vmem:[%s250 + $0xf8] sm:$0xff]
        %v284 = vld [vmem:[%s250 + $0x100] sm:$0xff]
        %v285 = vld [vmem:[%s250 + $0x108] sm:$0xff]
        %v286 = vld [vmem:[%s250 + $0x110] sm:$0xff]
        %v287 = vld [vmem:[%s250 + $0x118] sm:$0xff]
        %v288 = vpack.c.bf16 %v252, %v252
        %v289 = vpack.c.bf16 %v253, %v253
        %v290 = vpack.c.bf16 %v254, %v254
        %v291 = vpack.c.bf16 %v255, %v255
        %v292 = vpack.c.bf16 %v256, %v256
        %v293 = vpack.c.bf16 %v257, %v257
        %v294 = vpack.c.bf16 %v258, %v258
        %v295 = vpack.c.bf16 %v259, %v259
        %v296 = vpack.c.bf16 %v260, %v260
        %v297 = vpack.c.bf16 %v261, %v261
        %v298 = vpack.c.bf16 %v262, %v262
        %v299 = vpack.c.bf16 %v263, %v263
        %v300 = vpack.c.bf16 %v264, %v264
        %v301 = vpack.c.bf16 %v265, %v265
        %v302 = vpack.c.bf16 %v266, %v266
        %v303 = vpack.c.bf16 %v267, %v267
        %v304 = vpack.c.bf16 %v268, %v268
        %v305 = vpack.c.bf16 %v269, %v269
        %v306 = vpack.c.bf16 %v270, %v270
        %v307 = vpack.c.bf16 %v271, %v271
        %v308 = vpack.c.bf16 %v272, %v272
        %v309 = vpack.c.bf16 %v273, %v273
        %v310 = vpack.c.bf16 %v274, %v274
        %v311 = vpack.c.bf16 %v275, %v275
        %v312 = vpack.c.bf16 %v276, %v276
        %v313 = vpack.c.bf16 %v277, %v277
        %v314 = vpack.c.bf16 %v278, %v278
        %v315 = vpack.c.bf16 %v279, %v279
        %v316 = vpack.c.bf16 %v280, %v280
        %v317 = vpack.c.bf16 %v281, %v281
        %v318 = vpack.c.bf16 %v282, %v282
        %v319 = vpack.c.bf16 %v283, %v283
        %v320 = vpack.c.bf16 %v284, %v284
        %v321 = vpack.c.bf16 %v285, %v285
        %v322 = vpack.c.bf16 %v286, %v286
        %v323 = vpack.c.bf16 %v287, %v287
        %vm324 = vcmask 125952
        %325 = vst.msk [vmem:[#allocation2] sm:$0xf] %vm324, %v288
        %326 = vst.msk [vmem:[#allocation2 + $0x8] sm:$0xf] %vm324, %v289
        %327 = vst.msk [vmem:[#allocation2 + $0x10] sm:$0xf] %vm324, %v290
        %328 = vst.msk [vmem:[#allocation2 + $0x18] sm:$0xf] %vm324, %v291
        %329 = vst.msk [vmem:[#allocation2 + $0x20] sm:$0xf] %vm324, %v292
        %330 = vst.msk [vmem:[#allocation2 + $0x28] sm:$0xf] %vm324, %v293
        %331 = vst.msk [vmem:[#allocation2 + $0x30] sm:$0xf] %vm324, %v294
        %332 = vst.msk [vmem:[#allocation2 + $0x38] sm:$0xf] %vm324, %v295
        %333 = vst.msk [vmem:[#allocation2 + $0x40] sm:$0xf] %vm324, %v296
        %334 = vst.msk [vmem:[#allocation2 + $0x48] sm:$0xf] %vm324, %v297
        %335 = vst.msk [vmem:[#allocation2 + $0x50] sm:$0xf] %vm324, %v298
        %336 = vst.msk [vmem:[#allocation2 + $0x58] sm:$0xf] %vm324, %v299
        %337 = vst.msk [vmem:[#allocation2 + $0x60] sm:$0xf] %vm324, %v300
        %338 = vst.msk [vmem:[#allocation2 + $0x68] sm:$0xf] %vm324, %v301
        %339 = vst.msk [vmem:[#allocation2 + $0x70] sm:$0xf] %vm324, %v302
        %340 = vst.msk [vmem:[#allocation2 + $0x78] sm:$0xf] %vm324, %v303
        %341 = vst.msk [vmem:[#allocation2 + $0x80] sm:$0xf] %vm324, %v304
        %342 = vst.msk [vmem:[#allocation2 + $0x88] sm:$0xf] %vm324, %v305
        %343 = vst.msk [vmem:[#allocation2 + $0x90] sm:$0xf] %vm324, %v306
        %344 = vst.msk [vmem:[#allocation2 + $0x98] sm:$0xf] %vm324, %v307
        %345 = vst.msk [vmem:[#allocation2 + $0xa0] sm:$0xf] %vm324, %v308
        %346 = vst.msk [vmem:[#allocation2 + $0xa8] sm:$0xf] %vm324, %v309
        %347 = vst.msk [vmem:[#allocation2 + $0xb0] sm:$0xf] %vm324, %v310
        %348 = vst.msk [vmem:[#allocation2 + $0xb8] sm:$0xf] %vm324, %v311
        %349 = vst.msk [vmem:[#allocation2 + $0xc0] sm:$0xf] %vm324, %v312
        %350 = vst.msk [vmem:[#allocation2 + $0xc8] sm:$0xf] %vm324, %v313
        %351 = vst.msk [vmem:[#allocation2 + $0xd0] sm:$0xf] %vm324, %v314
        %352 = vst.msk [vmem:[#allocation2 + $0xd8] sm:$0xf] %vm324, %v315
        %353 = vst.msk [vmem:[#allocation2 + $0xe0] sm:$0xf] %vm324, %v316
        %354 = vst.msk [vmem:[#allocation2 + $0xe8] sm:$0xf] %vm324, %v317
        %355 = vst.msk [vmem:[#allocation2 + $0xf0] sm:$0xf] %vm324, %v318
        %356 = vst.msk [vmem:[#allocation2 + $0xf8] sm:$0xf] %vm324, %v319
        %357 = vst.msk [vmem:[#allocation2 + $0x100] sm:$0xf] %vm324, %v320
        %358 = vst.msk [vmem:[#allocation2 + $0x108] sm:$0xf] %vm324, %v321
        %359 = vst.msk [vmem:[#allocation2 + $0x110] sm:$0xf] %vm324, %v322
        %360 = vst.msk [vmem:[#allocation2 + $0x118] sm:$0xf] %vm324, %v323
        %v361 = vld [vmem:[%s250 + $0x1] sm:$0xff]
        %v362 = vld [vmem:[%s250 + $0x9] sm:$0xff]
        %v363 = vld [vmem:[%s250 + $0x11] sm:$0xff]
        %v364 = vld [vmem:[%s250 + $0x19] sm:$0xff]
        %v365 = vld [vmem:[%s250 + $0x21] sm:$0xff]
        %v366 = vld [vmem:[%s250 + $0x29] sm:$0xff]
        %v367 = vld [vmem:[%s250 + $0x31] sm:$0xff]
        %v368 = vld [vmem:[%s250 + $0x39] sm:$0xff]
        %v369 = vld [vmem:[%s250 + $0x41] sm:$0xff]
        %v370 = vld [vmem:[%s250 + $0x49] sm:$0xff]
        %v371 = vld [vmem:[%s250 + $0x51] sm:$0xff]
        %v372 = vld [vmem:[%s250 + $0x59] sm:$0xff]
        %v373 = vld [vmem:[%s250 + $0x61] sm:$0xff]
        %v374 = vld [vmem:[%s250 + $0x69] sm:$0xff]
        %v375 = vld [vmem:[%s250 + $0x71] sm:$0xff]
        %v376 = vld [vmem:[%s250 + $0x79] sm:$0xff]
        %v377 = vld [vmem:[%s250 + $0x81] sm:$0xff]
        %v378 = vld [vmem:[%s250 + $0x89] sm:$0xff]
        %v379 = vld [vmem:[%s250 + $0x91] sm:$0xff]
        %v380 = vld [vmem:[%s250 + $0x99] sm:$0xff]
        %v381 = vld [vmem:[%s250 + $0xa1] sm:$0xff]
        %v382 = vld [vmem:[%s250 + $0xa9] sm:$0xff]
        %v383 = vld [vmem:[%s250 + $0xb1] sm:$0xff]
        %v384 = vld [vmem:[%s250 + $0xb9] sm:$0xff]
        %v385 = vld [vmem:[%s250 + $0xc1] sm:$0xff]
        %v386 = vld [vmem:[%s250 + $0xc9] sm:$0xff]
        %v387 = vld [vmem:[%s250 + $0xd1] sm:$0xff]
        %v388 = vld [vmem:[%s250 + $0xd9] sm:$0xff]
        %v389 = vld [vmem:[%s250 + $0xe1] sm:$0xff]
        %v390 = vld [vmem:[%s250 + $0xe9] sm:$0xff]
        %v391 = vld [vmem:[%s250 + $0xf1] sm:$0xff]
        %v392 = vld [vmem:[%s250 + $0xf9] sm:$0xff]
        %v393 = vld [vmem:[%s250 + $0x101] sm:$0xff]
        %v394 = vld [vmem:[%s250 + $0x109] sm:$0xff]
        %v395 = vld [vmem:[%s250 + $0x111] sm:$0xff]
        %v396 = vld [vmem:[%s250 + $0x119] sm:$0xff]
        %v397 = vpack.c.bf16 %v361, %v361
        %v398 = vpack.c.bf16 %v362, %v362
        %v399 = vpack.c.bf16 %v363, %v363
        %v400 = vpack.c.bf16 %v364, %v364
        %v401 = vpack.c.bf16 %v365, %v365
        %v402 = vpack.c.bf16 %v366, %v366
        %v403 = vpack.c.bf16 %v367, %v367
        %v404 = vpack.c.bf16 %v368, %v368
        %v405 = vpack.c.bf16 %v369, %v369
        %v406 = vpack.c.bf16 %v370, %v370
        %v407 = vpack.c.bf16 %v371, %v371
        %v408 = vpack.c.bf16 %v372, %v372
        %v409 = vpack.c.bf16 %v373, %v373
        %v410 = vpack.c.bf16 %v374, %v374
        %v411 = vpack.c.bf16 %v375, %v375
        %v412 = vpack.c.bf16 %v376, %v376
        %v413 = vpack.c.bf16 %v377, %v377
        %v414 = vpack.c.bf16 %v378, %v378
        %v415 = vpack.c.bf16 %v379, %v379
        %v416 = vpack.c.bf16 %v380, %v380
        %v417 = vpack.c.bf16 %v381, %v381
        %v418 = vpack.c.bf16 %v382, %v382
        %v419 = vpack.c.bf16 %v383, %v383
        %v420 = vpack.c.bf16 %v384, %v384
        %v421 = vpack.c.bf16 %v385, %v385
        %v422 = vpack.c.bf16 %v386, %v386
        %v423 = vpack.c.bf16 %v387, %v387
        %v424 = vpack.c.bf16 %v388, %v388
        %v425 = vpack.c.bf16 %v389, %v389
        %v426 = vpack.c.bf16 %v390, %v390
        %v427 = vpack.c.bf16 %v391, %v391
        %v428 = vpack.c.bf16 %v392, %v392
        %v429 = vpack.c.bf16 %v393, %v393
        %v430 = vpack.c.bf16 %v394, %v394
        %v431 = vpack.c.bf16 %v395, %v395
        %v432 = vpack.c.bf16 %v396, %v396
        %469 = vrot.lane.b32.xlu0 %v397, 16
        %v470 = vpop.permute.xlu0 %469
        %471 = vrot.lane.b32.xlu0 %v398, 16
        %v472 = vpop.permute.xlu0 %471
        %473 = vrot.lane.b32.xlu0 %v399, 16
        %v474 = vpop.permute.xlu0 %473
        %475 = vrot.lane.b32.xlu0 %v400, 16
        %v476 = vpop.permute.xlu0 %475
        %477 = vrot.lane.b32.xlu0 %v401, 16
        %v478 = vpop.permute.xlu0 %477
        %479 = vrot.lane.b32.xlu0 %v402, 16
        %v480 = vpop.permute.xlu0 %479
        %481 = vrot.lane.b32.xlu0 %v403, 16
        %v482 = vpop.permute.xlu0 %481
        %483 = vrot.lane.b32.xlu0 %v404, 16
        %v484 = vpop.permute.xlu0 %483
        %485 = vrot.lane.b32.xlu0 %v405, 16
        %v486 = vpop.permute.xlu0 %485
        %487 = vrot.lane.b32.xlu0 %v406, 16
        %v488 = vpop.permute.xlu0 %487
        %489 = vrot.lane.b32.xlu0 %v407, 16
        %v490 = vpop.permute.xlu0 %489
        %491 = vrot.lane.b32.xlu0 %v408, 16
        %v492 = vpop.permute.xlu0 %491
        %493 = vrot.lane.b32.xlu0 %v409, 16
        %v494 = vpop.permute.xlu0 %493
        %495 = vrot.lane.b32.xlu0 %v410, 16
        %v496 = vpop.permute.xlu0 %495
        %497 = vrot.lane.b32.xlu0 %v411, 16
        %v498 = vpop.permute.xlu0 %497
        %499 = vrot.lane.b32.xlu0 %v412, 16
        %v500 = vpop.permute.xlu0 %499
        %501 = vrot.lane.b32.xlu0 %v413, 16
        %v502 = vpop.permute.xlu0 %501
        %503 = vrot.lane.b32.xlu0 %v414, 16
        %v504 = vpop.permute.xlu0 %503
        %505 = vrot.lane.b32.xlu0 %v415, 16
        %v506 = vpop.permute.xlu0 %505
        %507 = vrot.lane.b32.xlu0 %v416, 16
        %v508 = vpop.permute.xlu0 %507
        %509 = vrot.lane.b32.xlu0 %v417, 16
        %v510 = vpop.permute.xlu0 %509
        %511 = vrot.lane.b32.xlu0 %v418, 16
        %v512 = vpop.permute.xlu0 %511
        %513 = vrot.lane.b32.xlu0 %v419, 16
        %v514 = vpop.permute.xlu0 %513
        %515 = vrot.lane.b32.xlu0 %v420, 16
        %v516 = vpop.permute.xlu0 %515
        %517 = vrot.lane.b32.xlu0 %v421, 16
        %v518 = vpop.permute.xlu0 %517
        %519 = vrot.lane.b32.xlu0 %v422, 16
        %v520 = vpop.permute.xlu0 %519
        %521 = vrot.lane.b32.xlu0 %v423, 16
        %v522 = vpop.permute.xlu0 %521
        %523 = vrot.lane.b32.xlu0 %v424, 16
        %v524 = vpop.permute.xlu0 %523
        %525 = vrot.lane.b32.xlu0 %v425, 16
        %v526 = vpop.permute.xlu0 %525
        %527 = vrot.lane.b32.xlu0 %v426, 16
        %v528 = vpop.permute.xlu0 %527
        %529 = vrot.lane.b32.xlu0 %v427, 16
        %v530 = vpop.permute.xlu0 %529
        %531 = vrot.lane.b32.xlu0 %v428, 16
        %v532 = vpop.permute.xlu0 %531
        %533 = vrot.lane.b32.xlu0 %v429, 16
        %v534 = vpop.permute.xlu0 %533
        %535 = vrot.lane.b32.xlu0 %v430, 16
        %v536 = vpop.permute.xlu0 %535
        %537 = vrot.lane.b32.xlu0 %v431, 16
        %v538 = vpop.permute.xlu0 %537
        %539 = vrot.lane.b32.xlu0 %v432, 16
        %v540 = vpop.permute.xlu0 %539
        %vm577 = vcmask 257152
        %578 = vst.msk [vmem:[#allocation2] sm:$0xf] %vm577, %v470
        %579 = vst.msk [vmem:[#allocation2 + $0x8] sm:$0xf] %vm577, %v472
        %580 = vst.msk [vmem:[#allocation2 + $0x10] sm:$0xf] %vm577, %v474
        %581 = vst.msk [vmem:[#allocation2 + $0x18] sm:$0xf] %vm577, %v476
        %582 = vst.msk [vmem:[#allocation2 + $0x20] sm:$0xf] %vm577, %v478
        %583 = vst.msk [vmem:[#allocation2 + $0x28] sm:$0xf] %vm577, %v480
        %584 = vst.msk [vmem:[#allocation2 + $0x30] sm:$0xf] %vm577, %v482
        %585 = vst.msk [vmem:[#allocation2 + $0x38] sm:$0xf] %vm577, %v484
        %586 = vst.msk [vmem:[#allocation2 + $0x40] sm:$0xf] %vm577, %v486
        %587 = vst.msk [vmem:[#allocation2 + $0x48] sm:$0xf] %vm577, %v488
        %588 = vst.msk [vmem:[#allocation2 + $0x50] sm:$0xf] %vm577, %v490
        %589 = vst.msk [vmem:[#allocation2 + $0x58] sm:$0xf] %vm577, %v492
        %590 = vst.msk [vmem:[#allocation2 + $0x60] sm:$0xf] %vm577, %v494
        %591 = vst.msk [vmem:[#allocation2 + $0x68] sm:$0xf] %vm577, %v496
        %592 = vst.msk [vmem:[#allocation2 + $0x70] sm:$0xf] %vm577, %v498
        %593 = vst.msk [vmem:[#allocation2 + $0x78] sm:$0xf] %vm577, %v500
        %594 = vst.msk [vmem:[#allocation2 + $0x80] sm:$0xf] %vm577, %v502
        %595 = vst.msk [vmem:[#allocation2 + $0x88] sm:$0xf] %vm577, %v504
        %596 = vst.msk [vmem:[#allocation2 + $0x90] sm:$0xf] %vm577, %v506
        %597 = vst.msk [vmem:[#allocation2 + $0x98] sm:$0xf] %vm577, %v508
        %598 = vst.msk [vmem:[#allocation2 + $0xa0] sm:$0xf] %vm577, %v510
        %599 = vst.msk [vmem:[#allocation2 + $0xa8] sm:$0xf] %vm577, %v512
        %600 = vst.msk [vmem:[#allocation2 + $0xb0] sm:$0xf] %vm577, %v514
        %601 = vst.msk [vmem:[#allocation2 + $0xb8] sm:$0xf] %vm577, %v516
        %602 = vst.msk [vmem:[#allocation2 + $0xc0] sm:$0xf] %vm577, %v518
        %603 = vst.msk [vmem:[#allocation2 + $0xc8] sm:$0xf] %vm577, %v520
        %604 = vst.msk [vmem:[#allocation2 + $0xd0] sm:$0xf] %vm577, %v522
        %605 = vst.msk [vmem:[#allocation2 + $0xd8] sm:$0xf] %vm577, %v524
        %606 = vst.msk [vmem:[#allocation2 + $0xe0] sm:$0xf] %vm577, %v526
        %607 = vst.msk [vmem:[#allocation2 + $0xe8] sm:$0xf] %vm577, %v528
        %608 = vst.msk [vmem:[#allocation2 + $0xf0] sm:$0xf] %vm577, %v530
        %609 = vst.msk [vmem:[#allocation2 + $0xf8] sm:$0xf] %vm577, %v532
        %610 = vst.msk [vmem:[#allocation2 + $0x100] sm:$0xf] %vm577, %v534
        %611 = vst.msk [vmem:[#allocation2 + $0x108] sm:$0xf] %vm577, %v536
        %612 = vst.msk [vmem:[#allocation2 + $0x110] sm:$0xf] %vm577, %v538
        %613 = vst.msk [vmem:[#allocation2 + $0x118] sm:$0xf] %vm577, %v540
        %v614 = vld [vmem:[%s250 + $0x2] sm:$0xff]
        %v615 = vld [vmem:[%s250 + $0xa] sm:$0xff]
        %v616 = vld [vmem:[%s250 + $0x12] sm:$0xff]
        %v617 = vld [vmem:[%s250 + $0x1a] sm:$0xff]
        %v618 = vld [vmem:[%s250 + $0x22] sm:$0xff]
        %v619 = vld [vmem:[%s250 + $0x2a] sm:$0xff]
        %v620 = vld [vmem:[%s250 + $0x32] sm:$0xff]
        %v621 = vld [vmem:[%s250 + $0x3a] sm:$0xff]
        %v622 = vld [vmem:[%s250 + $0x42] sm:$0xff]
        %v623 = vld [vmem:[%s250 + $0x4a] sm:$0xff]
        %v624 = vld [vmem:[%s250 + $0x52] sm:$0xff]
        %v625 = vld [vmem:[%s250 + $0x5a] sm:$0xff]
        %v626 = vld [vmem:[%s250 + $0x62] sm:$0xff]
        %v627 = vld [vmem:[%s250 + $0x6a] sm:$0xff]
        %v628 = vld [vmem:[%s250 + $0x72] sm:$0xff]
        %v629 = vld [vmem:[%s250 + $0x7a] sm:$0xff]
        %v630 = vld [vmem:[%s250 + $0x82] sm:$0xff]
        %v631 = vld [vmem:[%s250 + $0x8a] sm:$0xff]
        %v632 = vld [vmem:[%s250 + $0x92] sm:$0xff]
        %v633 = vld [vmem:[%s250 + $0x9a] sm:$0xff]
        %v634 = vld [vmem:[%s250 + $0xa2] sm:$0xff]
        %v635 = vld [vmem:[%s250 + $0xaa] sm:$0xff]
        %v636 = vld [vmem:[%s250 + $0xb2] sm:$0xff]
        %v637 = vld [vmem:[%s250 + $0xba] sm:$0xff]
        %v638 = vld [vmem:[%s250 + $0xc2] sm:$0xff]
        %v639 = vld [vmem:[%s250 + $0xca] sm:$0xff]
        %v640 = vld [vmem:[%s250 + $0xd2] sm:$0xff]
        %v641 = vld [vmem:[%s250 + $0xda] sm:$0xff]
        %v642 = vld [vmem:[%s250 + $0xe2] sm:$0xff]
        %v643 = vld [vmem:[%s250 + $0xea] sm:$0xff]
        %v644 = vld [vmem:[%s250 + $0xf2] sm:$0xff]
        %v645 = vld [vmem:[%s250 + $0xfa] sm:$0xff]
        %v646 = vld [vmem:[%s250 + $0x102] sm:$0xff]
        %v647 = vld [vmem:[%s250 + $0x10a] sm:$0xff]
        %v648 = vld [vmem:[%s250 + $0x112] sm:$0xff]
        %v649 = vld [vmem:[%s250 + $0x11a] sm:$0xff]
        %v650 = vpack.c.bf16 %v614, %v614
        %v651 = vpack.c.bf16 %v615, %v615
        %v652 = vpack.c.bf16 %v616, %v616
        %v653 = vpack.c.bf16 %v617, %v617
        %v654 = vpack.c.bf16 %v618, %v618
        %v655 = vpack.c.bf16 %v619, %v619
        %v656 = vpack.c.bf16 %v620, %v620
        %v657 = vpack.c.bf16 %v621, %v621
        %v658 = vpack.c.bf16 %v622, %v622
        %v659 = vpack.c.bf16 %v623, %v623
        %v660 = vpack.c.bf16 %v624, %v624
        %v661 = vpack.c.bf16 %v625, %v625
        %v662 = vpack.c.bf16 %v626, %v626
        %v663 = vpack.c.bf16 %v627, %v627
        %v664 = vpack.c.bf16 %v628, %v628
        %v665 = vpack.c.bf16 %v629, %v629
        %v666 = vpack.c.bf16 %v630, %v630
        %v667 = vpack.c.bf16 %v631, %v631
        %v668 = vpack.c.bf16 %v632, %v632
        %v669 = vpack.c.bf16 %v633, %v633
        %v670 = vpack.c.bf16 %v634, %v634
        %v671 = vpack.c.bf16 %v635, %v635
        %v672 = vpack.c.bf16 %v636, %v636
        %v673 = vpack.c.bf16 %v637, %v637
        %v674 = vpack.c.bf16 %v638, %v638
        %v675 = vpack.c.bf16 %v639, %v639
        %v676 = vpack.c.bf16 %v640, %v640
        %v677 = vpack.c.bf16 %v641, %v641
        %v678 = vpack.c.bf16 %v642, %v642
        %v679 = vpack.c.bf16 %v643, %v643
        %v680 = vpack.c.bf16 %v644, %v644
        %v681 = vpack.c.bf16 %v645, %v645
        %v682 = vpack.c.bf16 %v646, %v646
        %v683 = vpack.c.bf16 %v647, %v647
        %v684 = vpack.c.bf16 %v648, %v648
        %v685 = vpack.c.bf16 %v649, %v649
        %722 = vrot.lane.b32.xlu0 %v650, 32
        %v723 = vpop.permute.xlu0 %722
        %724 = vrot.lane.b32.xlu0 %v651, 32
        %v725 = vpop.permute.xlu0 %724
        %726 = vrot.lane.b32.xlu0 %v652, 32
        %v727 = vpop.permute.xlu0 %726
        %728 = vrot.lane.b32.xlu0 %v653, 32
        %v729 = vpop.permute.xlu0 %728
        %730 = vrot.lane.b32.xlu0 %v654, 32
        %v731 = vpop.permute.xlu0 %730
        %732 = vrot.lane.b32.xlu0 %v655, 32
        %v733 = vpop.permute.xlu0 %732
        %734 = vrot.lane.b32.xlu0 %v656, 32
        %v735 = vpop.permute.xlu0 %734
        %736 = vrot.lane.b32.xlu0 %v657, 32
        %v737 = vpop.permute.xlu0 %736
        %738 = vrot.lane.b32.xlu0 %v658, 32
        %v739 = vpop.permute.xlu0 %738
        %740 = vrot.lane.b32.xlu0 %v659, 32
        %v741 = vpop.permute.xlu0 %740
        %742 = vrot.lane.b32.xlu0 %v660, 32
        %v743 = vpop.permute.xlu0 %742
        %744 = vrot.lane.b32.xlu0 %v661, 32
        %v745 = vpop.permute.xlu0 %744
        %746 = vrot.lane.b32.xlu0 %v662, 32
        %v747 = vpop.permute.xlu0 %746
        %748 = vrot.lane.b32.xlu0 %v663, 32
        %v749 = vpop.permute.xlu0 %748
        %750 = vrot.lane.b32.xlu0 %v664, 32
        %v751 = vpop.permute.xlu0 %750
        %752 = vrot.lane.b32.xlu0 %v665, 32
        %v753 = vpop.permute.xlu0 %752
        %754 = vrot.lane.b32.xlu0 %v666, 32
        %v755 = vpop.permute.xlu0 %754
        %756 = vrot.lane.b32.xlu0 %v667, 32
        %v757 = vpop.permute.xlu0 %756
        %758 = vrot.lane.b32.xlu0 %v668, 32
        %v759 = vpop.permute.xlu0 %758
        %760 = vrot.lane.b32.xlu0 %v669, 32
        %v761 = vpop.permute.xlu0 %760
        %762 = vrot.lane.b32.xlu0 %v670, 32
        %v763 = vpop.permute.xlu0 %762
        %764 = vrot.lane.b32.xlu0 %v671, 32
        %v765 = vpop.permute.xlu0 %764
        %766 = vrot.lane.b32.xlu0 %v672, 32
        %v767 = vpop.permute.xlu0 %766
        %768 = vrot.lane.b32.xlu0 %v673, 32
        %v769 = vpop.permute.xlu0 %768
        %770 = vrot.lane.b32.xlu0 %v674, 32
        %v771 = vpop.permute.xlu0 %770
        %772 = vrot.lane.b32.xlu0 %v675, 32
        %v773 = vpop.permute.xlu0 %772
        %774 = vrot.lane.b32.xlu0 %v676, 32
        %v775 = vpop.permute.xlu0 %774
        %776 = vrot.lane.b32.xlu0 %v677, 32
        %v777 = vpop.permute.xlu0 %776
        %778 = vrot.lane.b32.xlu0 %v678, 32
        %v779 = vpop.permute.xlu0 %778
        %780 = vrot.lane.b32.xlu0 %v679, 32
        %v781 = vpop.permute.xlu0 %780
        %782 = vrot.lane.b32.xlu0 %v680, 32
        %v783 = vpop.permute.xlu0 %782
        %784 = vrot.lane.b32.xlu0 %v681, 32
        %v785 = vpop.permute.xlu0 %784
        %786 = vrot.lane.b32.xlu0 %v682, 32
        %v787 = vpop.permute.xlu0 %786
        %788 = vrot.lane.b32.xlu0 %v683, 32
        %v789 = vpop.permute.xlu0 %788
        %790 = vrot.lane.b32.xlu0 %v684, 32
        %v791 = vpop.permute.xlu0 %790
        %792 = vrot.lane.b32.xlu0 %v685, 32
        %v793 = vpop.permute.xlu0 %792
        %vm830 = vcmask 388352
        %831 = vst.msk [vmem:[#allocation2] sm:$0xf] %vm830, %v723
        %832 = vst.msk [vmem:[#allocation2 + $0x8] sm:$0xf] %vm830, %v725
        %833 = vst.msk [vmem:[#allocation2 + $0x10] sm:$0xf] %vm830, %v727
        %834 = vst.msk [vmem:[#allocation2 + $0x18] sm:$0xf] %vm830, %v729
        %835 = vst.msk [vmem:[#allocation2 + $0x20] sm:$0xf] %vm830, %v731
        %836 = vst.msk [vmem:[#allocation2 + $0x28] sm:$0xf] %vm830, %v733
        %837 = vst.msk [vmem:[#allocation2 + $0x30] sm:$0xf] %vm830, %v735
        %838 = vst.msk [vmem:[#allocation2 + $0x38] sm:$0xf] %vm830, %v737
        %839 = vst.msk [vmem:[#allocation2 + $0x40] sm:$0xf] %vm830, %v739
        %840 = vst.msk [vmem:[#allocation2 + $0x48] sm:$0xf] %vm830, %v741
        %841 = vst.msk [vmem:[#allocation2 + $0x50] sm:$0xf] %vm830, %v743
        %842 = vst.msk [vmem:[#allocation2 + $0x58] sm:$0xf] %vm830, %v745
        %843 = vst.msk [vmem:[#allocation2 + $0x60] sm:$0xf] %vm830, %v747
        %844 = vst.msk [vmem:[#allocation2 + $0x68] sm:$0xf] %vm830, %v749
        %845 = vst.msk [vmem:[#allocation2 + $0x70] sm:$0xf] %vm830, %v751
        %846 = vst.msk [vmem:[#allocation2 + $0x78] sm:$0xf] %vm830, %v753
        %847 = vst.msk [vmem:[#allocation2 + $0x80] sm:$0xf] %vm830, %v755
        %848 = vst.msk [vmem:[#allocation2 + $0x88] sm:$0xf] %vm830, %v757
        %849 = vst.msk [vmem:[#allocation2 + $0x90] sm:$0xf] %vm830, %v759
        %850 = vst.msk [vmem:[#allocation2 + $0x98] sm:$0xf] %vm830, %v761
        %851 = vst.msk [vmem:[#allocation2 + $0xa0] sm:$0xf] %vm830, %v763
        %852 = vst.msk [vmem:[#allocation2 + $0xa8] sm:$0xf] %vm830, %v765
        %853 = vst.msk [vmem:[#allocation2 + $0xb0] sm:$0xf] %vm830, %v767
        %854 = vst.msk [vmem:[#allocation2 + $0xb8] sm:$0xf] %vm830, %v769
        %855 = vst.msk [vmem:[#allocation2 + $0xc0] sm:$0xf] %vm830, %v771
        %856 = vst.msk [vmem:[#allocation2 + $0xc8] sm:$0xf] %vm830, %v773
        %857 = vst.msk [vmem:[#allocation2 + $0xd0] sm:$0xf] %vm830, %v775
        %858 = vst.msk [vmem:[#allocation2 + $0xd8] sm:$0xf] %vm830, %v777
        %859 = vst.msk [vmem:[#allocation2 + $0xe0] sm:$0xf] %vm830, %v779
        %860 = vst.msk [vmem:[#allocation2 + $0xe8] sm:$0xf] %vm830, %v781
        %861 = vst.msk [vmem:[#allocation2 + $0xf0] sm:$0xf] %vm830, %v783
        %862 = vst.msk [vmem:[#allocation2 + $0xf8] sm:$0xf] %vm830, %v785
        %863 = vst.msk [vmem:[#allocation2 + $0x100] sm:$0xf] %vm830, %v787
        %864 = vst.msk [vmem:[#allocation2 + $0x108] sm:$0xf] %vm830, %v789
        %865 = vst.msk [vmem:[#allocation2 + $0x110] sm:$0xf] %vm830, %v791
        %866 = vst.msk [vmem:[#allocation2 + $0x118] sm:$0xf] %vm830, %v793
        %v867 = vld [vmem:[%s250 + $0x12] sm:$0xff]
        %v868 = vld [vmem:[%s250 + $0x1a] sm:$0xff]
        %v869 = vld [vmem:[%s250 + $0x22] sm:$0xff]
        %v870 = vld [vmem:[%s250 + $0x2a] sm:$0xff]
        %v871 = vld [vmem:[%s250 + $0x32] sm:$0xff]
        %v872 = vld [vmem:[%s250 + $0x3a] sm:$0xff]
        %v873 = vld [vmem:[%s250 + $0x42] sm:$0xff]
        %v874 = vld [vmem:[%s250 + $0x4a] sm:$0xff]
        %v875 = vld [vmem:[%s250 + $0x52] sm:$0xff]
        %v876 = vld [vmem:[%s250 + $0x5a] sm:$0xff]
        %v877 = vld [vmem:[%s250 + $0x62] sm:$0xff]
        %v878 = vld [vmem:[%s250 + $0x6a] sm:$0xff]
        %v879 = vld [vmem:[%s250 + $0x72] sm:$0xff]
        %v880 = vld [vmem:[%s250 + $0x7a] sm:$0xff]
        %v881 = vld [vmem:[%s250 + $0x82] sm:$0xff]
        %v882 = vld [vmem:[%s250 + $0x8a] sm:$0xff]
        %v883 = vld [vmem:[%s250 + $0x92] sm:$0xff]
        %v884 = vld [vmem:[%s250 + $0x9a] sm:$0xff]
        %v885 = vld [vmem:[%s250 + $0xa2] sm:$0xff]
        %v886 = vld [vmem:[%s250 + $0xaa] sm:$0xff]
        %v887 = vld [vmem:[%s250 + $0xb2] sm:$0xff]
        %v888 = vld [vmem:[%s250 + $0xba] sm:$0xff]
        %v889 = vld [vmem:[%s250 + $0xc2] sm:$0xff]
        %v890 = vld [vmem:[%s250 + $0xca] sm:$0xff]
        %v891 = vld [vmem:[%s250 + $0xd2] sm:$0xff]
        %v892 = vld [vmem:[%s250 + $0xda] sm:$0xff]
        %v893 = vld [vmem:[%s250 + $0xe2] sm:$0xff]
        %v894 = vld [vmem:[%s250 + $0xea] sm:$0xff]
        %v895 = vld [vmem:[%s250 + $0xf2] sm:$0xff]
        %v896 = vld [vmem:[%s250 + $0xfa] sm:$0xff]
        %v897 = vld [vmem:[%s250 + $0x102] sm:$0xff]
        %v898 = vld [vmem:[%s250 + $0x10a] sm:$0xff]
        %v899 = vld [vmem:[%s250 + $0x112] sm:$0xff]
        %v900 = vld [vmem:[%s250 + $0x11a] sm:$0xff]
        %v901 = vld [vmem:[%s250 + $0x122] sm:$0xff]
        %v902 = vld [vmem:[%s250 + $0x12a] sm:$0xff]
        %v903 = vpack.c.bf16 %v867, %v867
        %v904 = vpack.c.bf16 %v868, %v868
        %v905 = vpack.c.bf16 %v869, %v869
        %v906 = vpack.c.bf16 %v870, %v870
        %v907 = vpack.c.bf16 %v871, %v871
        %v908 = vpack.c.bf16 %v872, %v872
        %v909 = vpack.c.bf16 %v873, %v873
        %v910 = vpack.c.bf16 %v874, %v874
        %v911 = vpack.c.bf16 %v875, %v875
        %v912 = vpack.c.bf16 %v876, %v876
        %v913 = vpack.c.bf16 %v877, %v877
        %v914 = vpack.c.bf16 %v878, %v878
        %v915 = vpack.c.bf16 %v879, %v879
        %v916 = vpack.c.bf16 %v880, %v880
        %v917 = vpack.c.bf16 %v881, %v881
        %v918 = vpack.c.bf16 %v882, %v882
        %v919 = vpack.c.bf16 %v883, %v883
        %v920 = vpack.c.bf16 %v884, %v884
        %v921 = vpack.c.bf16 %v885, %v885
        %v922 = vpack.c.bf16 %v886, %v886
        %v923 = vpack.c.bf16 %v887, %v887
        %v924 = vpack.c.bf16 %v888, %v888
        %v925 = vpack.c.bf16 %v889, %v889
        %v926 = vpack.c.bf16 %v890, %v890
        %v927 = vpack.c.bf16 %v891, %v891
        %v928 = vpack.c.bf16 %v892, %v892
        %v929 = vpack.c.bf16 %v893, %v893
        %v930 = vpack.c.bf16 %v894, %v894
        %v931 = vpack.c.bf16 %v895, %v895
        %v932 = vpack.c.bf16 %v896, %v896
        %v933 = vpack.c.bf16 %v897, %v897
        %v934 = vpack.c.bf16 %v898, %v898
        %v935 = vpack.c.bf16 %v899, %v899
        %v936 = vpack.c.bf16 %v900, %v900
        %v937 = vpack.c.bf16 %v901, %v901
        %v938 = vpack.c.bf16 %v902, %v902
        %975 = vrot.lane.b32.xlu0 %v903, 48
        %v976 = vpop.permute.xlu0 %975
        %977 = vrot.lane.b32.xlu0 %v904, 48
        %v978 = vpop.permute.xlu0 %977
        %979 = vrot.lane.b32.xlu0 %v905, 48
        %v980 = vpop.permute.xlu0 %979
        %981 = vrot.lane.b32.xlu0 %v906, 48
        %v982 = vpop.permute.xlu0 %981
        %983 = vrot.lane.b32.xlu0 %v907, 48
        %v984 = vpop.permute.xlu0 %983
        %985 = vrot.lane.b32.xlu0 %v908, 48
        %v986 = vpop.permute.xlu0 %985
        %987 = vrot.lane.b32.xlu0 %v909, 48
        %v988 = vpop.permute.xlu0 %987
        %989 = vrot.lane.b32.xlu0 %v910, 48
        %v990 = vpop.permute.xlu0 %989
        %991 = vrot.lane.b32.xlu0 %v911, 48
        %v992 = vpop.permute.xlu0 %991
        %993 = vrot.lane.b32.xlu0 %v912, 48
        %v994 = vpop.permute.xlu0 %993
        %995 = vrot.lane.b32.xlu0 %v913, 48
        %v996 = vpop.permute.xlu0 %995
        %997 = vrot.lane.b32.xlu0 %v914, 48
        %v998 = vpop.permute.xlu0 %997
        %999 = vrot.lane.b32.xlu0 %v915, 48
        %v1000 = vpop.permute.xlu0 %999
        %1001 = vrot.lane.b32.xlu0 %v916, 48
        %v1002 = vpop.permute.xlu0 %1001
        %1003 = vrot.lane.b32.xlu0 %v917, 48
        %v1004 = vpop.permute.xlu0 %1003
        %1005 = vrot.lane.b32.xlu0 %v918, 48
        %v1006 = vpop.permute.xlu0 %1005
        %1007 = vrot.lane.b32.xlu0 %v919, 48
        %v1008 = vpop.permute.xlu0 %1007
        %1009 = vrot.lane.b32.xlu0 %v920, 48
        %v1010 = vpop.permute.xlu0 %1009
        %1011 = vrot.lane.b32.xlu0 %v921, 48
        %v1012 = vpop.permute.xlu0 %1011
        %1013 = vrot.lane.b32.xlu0 %v922, 48
        %v1014 = vpop.permute.xlu0 %1013
        %1015 = vrot.lane.b32.xlu0 %v923, 48
        %v1016 = vpop.permute.xlu0 %1015
        %1017 = vrot.lane.b32.xlu0 %v924, 48
        %v1018 = vpop.permute.xlu0 %1017
        %1019 = vrot.lane.b32.xlu0 %v925, 48
        %v1020 = vpop.permute.xlu0 %1019
        %1021 = vrot.lane.b32.xlu0 %v926, 48
        %v1022 = vpop.permute.xlu0 %1021
        %1023 = vrot.lane.b32.xlu0 %v927, 48
        %v1024 = vpop.permute.xlu0 %1023
        %1025 = vrot.lane.b32.xlu0 %v928, 48
        %v1026 = vpop.permute.xlu0 %1025
        %1027 = vrot.lane.b32.xlu0 %v929, 48
        %v1028 = vpop.permute.xlu0 %1027
        %1029 = vrot.lane.b32.xlu0 %v930, 48
        %v1030 = vpop.permute.xlu0 %1029
        %1031 = vrot.lane.b32.xlu0 %v931, 48
        %v1032 = vpop.permute.xlu0 %1031
        %1033 = vrot.lane.b32.xlu0 %v932, 48
        %v1034 = vpop.permute.xlu0 %1033
        %1035 = vrot.lane.b32.xlu0 %v933, 48
        %v1036 = vpop.permute.xlu0 %1035
        %1037 = vrot.lane.b32.xlu0 %v934, 48
        %v1038 = vpop.permute.xlu0 %1037
        %1039 = vrot.lane.b32.xlu0 %v935, 48
        %v1040 = vpop.permute.xlu0 %1039
        %1041 = vrot.lane.b32.xlu0 %v936, 48
        %v1042 = vpop.permute.xlu0 %1041
        %1043 = vrot.lane.b32.xlu0 %v937, 48
        %v1044 = vpop.permute.xlu0 %1043
        %1045 = vrot.lane.b32.xlu0 %v938, 48
        %v1046 = vpop.permute.xlu0 %1045
        %vm1083 = vcmask 519552
        %1084 = vst.msk [vmem:[#allocation2] sm:$0xf] %vm1083, %v976
        %1085 = vst.msk [vmem:[#allocation2 + $0x8] sm:$0xf] %vm1083, %v978
        %1086 = vst.msk [vmem:[#allocation2 + $0x10] sm:$0xf] %vm1083, %v980
        %1087 = vst.msk [vmem:[#allocation2 + $0x18] sm:$0xf] %vm1083, %v982
        %1088 = vst.msk [vmem:[#allocation2 + $0x20] sm:$0xf] %vm1083, %v984
        %1089 = vst.msk [vmem:[#allocation2 + $0x28] sm:$0xf] %vm1083, %v986
        %1090 = vst.msk [vmem:[#allocation2 + $0x30] sm:$0xf] %vm1083, %v988
        %1091 = vst.msk [vmem:[#allocation2 + $0x38] sm:$0xf] %vm1083, %v990
        %1092 = vst.msk [vmem:[#allocation2 + $0x40] sm:$0xf] %vm1083, %v992
        %1093 = vst.msk [vmem:[#allocation2 + $0x48] sm:$0xf] %vm1083, %v994
        %1094 = vst.msk [vmem:[#allocation2 + $0x50] sm:$0xf] %vm1083, %v996
        %1095 = vst.msk [vmem:[#allocation2 + $0x58] sm:$0xf] %vm1083, %v998
        %1096 = vst.msk [vmem:[#allocation2 + $0x60] sm:$0xf] %vm1083, %v1000
        %1097 = vst.msk [vmem:[#allocation2 + $0x68] sm:$0xf] %vm1083, %v1002
        %1098 = vst.msk [vmem:[#allocation2 + $0x70] sm:$0xf] %vm1083, %v1004
        %1099 = vst.msk [vmem:[#allocation2 + $0x78] sm:$0xf] %vm1083, %v1006
        %1100 = vst.msk [vmem:[#allocation2 + $0x80] sm:$0xf] %vm1083, %v1008
        %1101 = vst.msk [vmem:[#allocation2 + $0x88] sm:$0xf] %vm1083, %v1010
        %1102 = vst.msk [vmem:[#allocation2 + $0x90] sm:$0xf] %vm1083, %v1012
        %1103 = vst.msk [vmem:[#allocation2 + $0x98] sm:$0xf] %vm1083, %v1014
        %1104 = vst.msk [vmem:[#allocation2 + $0xa0] sm:$0xf] %vm1083, %v1016
        %1105 = vst.msk [vmem:[#allocation2 + $0xa8] sm:$0xf] %vm1083, %v1018
        %1106 = vst.msk [vmem:[#allocation2 + $0xb0] sm:$0xf] %vm1083, %v1020
        %1107 = vst.msk [vmem:[#allocation2 + $0xb8] sm:$0xf] %vm1083, %v1022
        %1108 = vst.msk [vmem:[#allocation2 + $0xc0] sm:$0xf] %vm1083, %v1024
        %1109 = vst.msk [vmem:[#allocation2 + $0xc8] sm:$0xf] %vm1083, %v1026
        %1110 = vst.msk [vmem:[#allocation2 + $0xd0] sm:$0xf] %vm1083, %v1028
        %1111 = vst.msk [vmem:[#allocation2 + $0xd8] sm:$0xf] %vm1083, %v1030
        %1112 = vst.msk [vmem:[#allocation2 + $0xe0] sm:$0xf] %vm1083, %v1032
        %1113 = vst.msk [vmem:[#allocation2 + $0xe8] sm:$0xf] %vm1083, %v1034
        %1114 = vst.msk [vmem:[#allocation2 + $0xf0] sm:$0xf] %vm1083, %v1036
        %1115 = vst.msk [vmem:[#allocation2 + $0xf8] sm:$0xf] %vm1083, %v1038
        %1116 = vst.msk [vmem:[#allocation2 + $0x100] sm:$0xf] %vm1083, %v1040
        %1117 = vst.msk [vmem:[#allocation2 + $0x108] sm:$0xf] %vm1083, %v1042
        %1118 = vst.msk [vmem:[#allocation2 + $0x110] sm:$0xf] %vm1083, %v1044
        %1119 = vst.msk [vmem:[#allocation2 + $0x118] sm:$0xf] %vm1083, %v1046
        %v1120 = vld [vmem:[%s250 + $0x13] sm:$0xff]
        %v1121 = vld [vmem:[%s250 + $0x1b] sm:$0xff]
        %v1122 = vld [vmem:[%s250 + $0x23] sm:$0xff]
        %v1123 = vld [vmem:[%s250 + $0x2b] sm:$0xff]
        %v1124 = vld [vmem:[%s250 + $0x33] sm:$0xff]
        %v1125 = vld [vmem:[%s250 + $0x3b] sm:$0xff]
        %v1126 = vld [vmem:[%s250 + $0x43] sm:$0xff]
        %v1127 = vld [vmem:[%s250 + $0x4b] sm:$0xff]
        %v1128 = vld [vmem:[%s250 + $0x53] sm:$0xff]
        %v1129 = vld [vmem:[%s250 + $0x5b] sm:$0xff]
        %v1130 = vld [vmem:[%s250 + $0x63] sm:$0xff]
        %v1131 = vld [vmem:[%s250 + $0x6b] sm:$0xff]
        %v1132 = vld [vmem:[%s250 + $0x73] sm:$0xff]
        %v1133 = vld [vmem:[%s250 + $0x7b] sm:$0xff]
        %v1134 = vld [vmem:[%s250 + $0x83] sm:$0xff]
        %v1135 = vld [vmem:[%s250 + $0x8b] sm:$0xff]
        %v1136 = vld [vmem:[%s250 + $0x93] sm:$0xff]
        %v1137 = vld [vmem:[%s250 + $0x9b] sm:$0xff]
        %v1138 = vld [vmem:[%s250 + $0xa3] sm:$0xff]
        %v1139 = vld [vmem:[%s250 + $0xab] sm:$0xff]
        %v1140 = vld [vmem:[%s250 + $0xb3] sm:$0xff]
        %v1141 = vld [vmem:[%s250 + $0xbb] sm:$0xff]
        %v1142 = vld [vmem:[%s250 + $0xc3] sm:$0xff]
        %v1143 = vld [vmem:[%s250 + $0xcb] sm:$0xff]
        %v1144 = vld [vmem:[%s250 + $0xd3] sm:$0xff]
        %v1145 = vld [vmem:[%s250 + $0xdb] sm:$0xff]
        %v1146 = vld [vmem:[%s250 + $0xe3] sm:$0xff]
        %v1147 = vld [vmem:[%s250 + $0xeb] sm:$0xff]
        %v1148 = vld [vmem:[%s250 + $0xf3] sm:$0xff]
        %v1149 = vld [vmem:[%s250 + $0xfb] sm:$0xff]
        %v1150 = vld [vmem:[%s250 + $0x103] sm:$0xff]
        %v1151 = vld [vmem:[%s250 + $0x10b] sm:$0xff]
        %v1152 = vld [vmem:[%s250 + $0x113] sm:$0xff]
        %v1153 = vld [vmem:[%s250 + $0x11b] sm:$0xff]
        %v1154 = vld [vmem:[%s250 + $0x123] sm:$0xff]
        %v1155 = vld [vmem:[%s250 + $0x12b] sm:$0xff]
        %v1156 = vpack.c.bf16 %v1120, %v1120
        %v1157 = vpack.c.bf16 %v1121, %v1121
        %v1158 = vpack.c.bf16 %v1122, %v1122
        %v1159 = vpack.c.bf16 %v1123, %v1123
        %v1160 = vpack.c.bf16 %v1124, %v1124
        %v1161 = vpack.c.bf16 %v1125, %v1125
        %v1162 = vpack.c.bf16 %v1126, %v1126
        %v1163 = vpack.c.bf16 %v1127, %v1127
        %v1164 = vpack.c.bf16 %v1128, %v1128
        %v1165 = vpack.c.bf16 %v1129, %v1129
        %v1166 = vpack.c.bf16 %v1130, %v1130
        %v1167 = vpack.c.bf16 %v1131, %v1131
        %v1168 = vpack.c.bf16 %v1132, %v1132
        %v1169 = vpack.c.bf16 %v1133, %v1133
        %v1170 = vpack.c.bf16 %v1134, %v1134
        %v1171 = vpack.c.bf16 %v1135, %v1135
        %v1172 = vpack.c.bf16 %v1136, %v1136
        %v1173 = vpack.c.bf16 %v1137, %v1137
        %v1174 = vpack.c.bf16 %v1138, %v1138
        %v1175 = vpack.c.bf16 %v1139, %v1139
        %v1176 = vpack.c.bf16 %v1140, %v1140
        %v1177 = vpack.c.bf16 %v1141, %v1141
        %v1178 = vpack.c.bf16 %v1142, %v1142
        %v1179 = vpack.c.bf16 %v1143, %v1143
        %v1180 = vpack.c.bf16 %v1144, %v1144
        %v1181 = vpack.c.bf16 %v1145, %v1145
        %v1182 = vpack.c.bf16 %v1146, %v1146
        %v1183 = vpack.c.bf16 %v1147, %v1147
        %v1184 = vpack.c.bf16 %v1148, %v1148
        %v1185 = vpack.c.bf16 %v1149, %v1149
        %v1186 = vpack.c.bf16 %v1150, %v1150
        %v1187 = vpack.c.bf16 %v1151, %v1151
        %v1188 = vpack.c.bf16 %v1152, %v1152
        %v1189 = vpack.c.bf16 %v1153, %v1153
        %v1190 = vpack.c.bf16 %v1154, %v1154
        %v1191 = vpack.c.bf16 %v1155, %v1155
        %1228 = vrot.lane.b32.xlu0 %v1156, 64
        %v1229 = vpop.permute.xlu0 %1228
        %1230 = vrot.lane.b32.xlu0 %v1157, 64
        %v1231 = vpop.permute.xlu0 %1230
        %1232 = vrot.lane.b32.xlu0 %v1158, 64
        %v1233 = vpop.permute.xlu0 %1232
        %1234 = vrot.lane.b32.xlu0 %v1159, 64
        %v1235 = vpop.permute.xlu0 %1234
        %1236 = vrot.lane.b32.xlu0 %v1160, 64
        %v1237 = vpop.permute.xlu0 %1236
        %1238 = vrot.lane.b32.xlu0 %v1161, 64
        %v1239 = vpop.permute.xlu0 %1238
        %1240 = vrot.lane.b32.xlu0 %v1162, 64
        %v1241 = vpop.permute.xlu0 %1240
        %1242 = vrot.lane.b32.xlu0 %v1163, 64
        %v1243 = vpop.permute.xlu0 %1242
        %1244 = vrot.lane.b32.xlu0 %v1164, 64
        %v1245 = vpop.permute.xlu0 %1244
        %1246 = vrot.lane.b32.xlu0 %v1165, 64
        %v1247 = vpop.permute.xlu0 %1246
        %1248 = vrot.lane.b32.xlu0 %v1166, 64
        %v1249 = vpop.permute.xlu0 %1248
        %1250 = vrot.lane.b32.xlu0 %v1167, 64
        %v1251 = vpop.permute.xlu0 %1250
        %1252 = vrot.lane.b32.xlu0 %v1168, 64
        %v1253 = vpop.permute.xlu0 %1252
        %1254 = vrot.lane.b32.xlu0 %v1169, 64
        %v1255 = vpop.permute.xlu0 %1254
        %1256 = vrot.lane.b32.xlu0 %v1170, 64
        %v1257 = vpop.permute.xlu0 %1256
        %1258 = vrot.lane.b32.xlu0 %v1171, 64
        %v1259 = vpop.permute.xlu0 %1258
        %1260 = vrot.lane.b32.xlu0 %v1172, 64
        %v1261 = vpop.permute.xlu0 %1260
        %1262 = vrot.lane.b32.xlu0 %v1173, 64
        %v1263 = vpop.permute.xlu0 %1262
        %1264 = vrot.lane.b32.xlu0 %v1174, 64
        %v1265 = vpop.permute.xlu0 %1264
        %1266 = vrot.lane.b32.xlu0 %v1175, 64
        %v1267 = vpop.permute.xlu0 %1266
        %1268 = vrot.lane.b32.xlu0 %v1176, 64
        %v1269 = vpop.permute.xlu0 %1268
        %1270 = vrot.lane.b32.xlu0 %v1177, 64
        %v1271 = vpop.permute.xlu0 %1270
        %1272 = vrot.lane.b32.xlu0 %v1178, 64
        %v1273 = vpop.permute.xlu0 %1272
        %1274 = vrot.lane.b32.xlu0 %v1179, 64
        %v1275 = vpop.permute.xlu0 %1274
        %1276 = vrot.lane.b32.xlu0 %v1180, 64
        %v1277 = vpop.permute.xlu0 %1276
        %1278 = vrot.lane.b32.xlu0 %v1181, 64
        %v1279 = vpop.permute.xlu0 %1278
        %1280 = vrot.lane.b32.xlu0 %v1182, 64
        %v1281 = vpop.permute.xlu0 %1280
        %1282 = vrot.lane.b32.xlu0 %v1183, 64
        %v1283 = vpop.permute.xlu0 %1282
        %1284 = vrot.lane.b32.xlu0 %v1184, 64
        %v1285 = vpop.permute.xlu0 %1284
        %1286 = vrot.lane.b32.xlu0 %v1185, 64
        %v1287 = vpop.permute.xlu0 %1286
        %1288 = vrot.lane.b32.xlu0 %v1186, 64
        %v1289 = vpop.permute.xlu0 %1288
        %1290 = vrot.lane.b32.xlu0 %v1187, 64
        %v1291 = vpop.permute.xlu0 %1290
        %1292 = vrot.lane.b32.xlu0 %v1188, 64
        %v1293 = vpop.permute.xlu0 %1292
        %1294 = vrot.lane.b32.xlu0 %v1189, 64
        %v1295 = vpop.permute.xlu0 %1294
        %1296 = vrot.lane.b32.xlu0 %v1190, 64
        %v1297 = vpop.permute.xlu0 %1296
        %1298 = vrot.lane.b32.xlu0 %v1191, 64
        %v1299 = vpop.permute.xlu0 %1298
        %vm1336 = vcmask 650752
        %1337 = vst.msk [vmem:[#allocation2] sm:$0xf] %vm1336, %v1229
        %1338 = vst.msk [vmem:[#allocation2 + $0x8] sm:$0xf] %vm1336, %v1231
        %1339 = vst.msk [vmem:[#allocation2 + $0x10] sm:$0xf] %vm1336, %v1233
        %1340 = vst.msk [vmem:[#allocation2 + $0x18] sm:$0xf] %vm1336, %v1235
        %1341 = vst.msk [vmem:[#allocation2 + $0x20] sm:$0xf] %vm1336, %v1237
        %1342 = vst.msk [vmem:[#allocation2 + $0x28] sm:$0xf] %vm1336, %v1239
        %1343 = vst.msk [vmem:[#allocation2 + $0x30] sm:$0xf] %vm1336, %v1241
        %1344 = vst.msk [vmem:[#allocation2 + $0x38] sm:$0xf] %vm1336, %v1243
        %1345 = vst.msk [vmem:[#allocation2 + $0x40] sm:$0xf] %vm1336, %v1245
        %1346 = vst.msk [vmem:[#allocation2 + $0x48] sm:$0xf] %vm1336, %v1247
        %1347 = vst.msk [vmem:[#allocation2 + $0x50] sm:$0xf] %vm1336, %v1249
        %1348 = vst.msk [vmem:[#allocation2 + $0x58] sm:$0xf] %vm1336, %v1251
        %1349 = vst.msk [vmem:[#allocation2 + $0x60] sm:$0xf] %vm1336, %v1253
        %1350 = vst.msk [vmem:[#allocation2 + $0x68] sm:$0xf] %vm1336, %v1255
        %1351 = vst.msk [vmem:[#allocation2 + $0x70] sm:$0xf] %vm1336, %v1257
        %1352 = vst.msk [vmem:[#allocation2 + $0x78] sm:$0xf] %vm1336, %v1259
        %1353 = vst.msk [vmem:[#allocation2 + $0x80] sm:$0xf] %vm1336, %v1261
        %1354 = vst.msk [vmem:[#allocation2 + $0x88] sm:$0xf] %vm1336, %v1263
        %1355 = vst.msk [vmem:[#allocation2 + $0x90] sm:$0xf] %vm1336, %v1265
        %1356 = vst.msk [vmem:[#allocation2 + $0x98] sm:$0xf] %vm1336, %v1267
        %1357 = vst.msk [vmem:[#allocation2 + $0xa0] sm:$0xf] %vm1336, %v1269
        %1358 = vst.msk [vmem:[#allocation2 + $0xa8] sm:$0xf] %vm1336, %v1271
        %1359 = vst.msk [vmem:[#allocation2 + $0xb0] sm:$0xf] %vm1336, %v1273
        %1360 = vst.msk [vmem:[#allocation2 + $0xb8] sm:$0xf] %vm1336, %v1275
        %1361 = vst.msk [vmem:[#allocation2 + $0xc0] sm:$0xf] %vm1336, %v1277
        %1362 = vst.msk [vmem:[#allocation2 + $0xc8] sm:$0xf] %vm1336, %v1279
        %1363 = vst.msk [vmem:[#allocation2 + $0xd0] sm:$0xf] %vm1336, %v1281
        %1364 = vst.msk [vmem:[#allocation2 + $0xd8] sm:$0xf] %vm1336, %v1283
        %1365 = vst.msk [vmem:[#allocation2 + $0xe0] sm:$0xf] %vm1336, %v1285
        %1366 = vst.msk [vmem:[#allocation2 + $0xe8] sm:$0xf] %vm1336, %v1287
        %1367 = vst.msk [vmem:[#allocation2 + $0xf0] sm:$0xf] %vm1336, %v1289
        %1368 = vst.msk [vmem:[#allocation2 + $0xf8] sm:$0xf] %vm1336, %v1291
        %1369 = vst.msk [vmem:[#allocation2 + $0x100] sm:$0xf] %vm1336, %v1293
        %1370 = vst.msk [vmem:[#allocation2 + $0x108] sm:$0xf] %vm1336, %v1295
        %1371 = vst.msk [vmem:[#allocation2 + $0x110] sm:$0xf] %vm1336, %v1297
        %1372 = vst.msk [vmem:[#allocation2 + $0x118] sm:$0xf] %vm1336, %v1299
        %v1373 = vld [vmem:[%s250 + $0x14] sm:$0xff]
        %v1374 = vld [vmem:[%s250 + $0x1c] sm:$0xff]
        %v1375 = vld [vmem:[%s250 + $0x24] sm:$0xff]
        %v1376 = vld [vmem:[%s250 + $0x2c] sm:$0xff]
        %v1377 = vld [vmem:[%s250 + $0x34] sm:$0xff]
        %v1378 = vld [vmem:[%s250 + $0x3c] sm:$0xff]
        %v1379 = vld [vmem:[%s250 + $0x44] sm:$0xff]
        %v1380 = vld [vmem:[%s250 + $0x4c] sm:$0xff]
        %v1381 = vld [vmem:[%s250 + $0x54] sm:$0xff]
        %v1382 = vld [vmem:[%s250 + $0x5c] sm:$0xff]
        %v1383 = vld [vmem:[%s250 + $0x64] sm:$0xff]
        %v1384 = vld [vmem:[%s250 + $0x6c] sm:$0xff]
        %v1385 = vld [vmem:[%s250 + $0x74] sm:$0xff]
        %v1386 = vld [vmem:[%s250 + $0x7c] sm:$0xff]
        %v1387 = vld [vmem:[%s250 + $0x84] sm:$0xff]
        %v1388 = vld [vmem:[%s250 + $0x8c] sm:$0xff]
        %v1389 = vld [vmem:[%s250 + $0x94] sm:$0xff]
        %v1390 = vld [vmem:[%s250 + $0x9c] sm:$0xff]
        %v1391 = vld [vmem:[%s250 + $0xa4] sm:$0xff]
        %v1392 = vld [vmem:[%s250 + $0xac] sm:$0xff]
        %v1393 = vld [vmem:[%s250 + $0xb4] sm:$0xff]
        %v1394 = vld [vmem:[%s250 + $0xbc] sm:$0xff]
        %v1395 = vld [vmem:[%s250 + $0xc4] sm:$0xff]
        %v1396 = vld [vmem:[%s250 + $0xcc] sm:$0xff]
        %v1397 = vld [vmem:[%s250 + $0xd4] sm:$0xff]
        %v1398 = vld [vmem:[%s250 + $0xdc] sm:$0xff]
        %v1399 = vld [vmem:[%s250 + $0xe4] sm:$0xff]
        %v1400 = vld [vmem:[%s250 + $0xec] sm:$0xff]
        %v1401 = vld [vmem:[%s250 + $0xf4] sm:$0xff]
        %v1402 = vld [vmem:[%s250 + $0xfc] sm:$0xff]
        %v1403 = vld [vmem:[%s250 + $0x104] sm:$0xff]
        %v1404 = vld [vmem:[%s250 + $0x10c] sm:$0xff]
        %v1405 = vld [vmem:[%s250 + $0x114] sm:$0xff]
        %v1406 = vld [vmem:[%s250 + $0x11c] sm:$0xff]
        %v1407 = vld [vmem:[%s250 + $0x124] sm:$0xff]
        %v1408 = vld [vmem:[%s250 + $0x12c] sm:$0xff]
        %v1409 = vpack.c.bf16 %v1373, %v1373
        %v1410 = vpack.c.bf16 %v1374, %v1374
        %v1411 = vpack.c.bf16 %v1375, %v1375
        %v1412 = vpack.c.bf16 %v1376, %v1376
        %v1413 = vpack.c.bf16 %v1377, %v1377
        %v1414 = vpack.c.bf16 %v1378, %v1378
        %v1415 = vpack.c.bf16 %v1379, %v1379
        %v1416 = vpack.c.bf16 %v1380, %v1380
        %v1417 = vpack.c.bf16 %v1381, %v1381
        %v1418 = vpack.c.bf16 %v1382, %v1382
        %v1419 = vpack.c.bf16 %v1383, %v1383
        %v1420 = vpack.c.bf16 %v1384, %v1384
        %v1421 = vpack.c.bf16 %v1385, %v1385
        %v1422 = vpack.c.bf16 %v1386, %v1386
        %v1423 = vpack.c.bf16 %v1387, %v1387
        %v1424 = vpack.c.bf16 %v1388, %v1388
        %v1425 = vpack.c.bf16 %v1389, %v1389
        %v1426 = vpack.c.bf16 %v1390, %v1390
        %v1427 = vpack.c.bf16 %v1391, %v1391
        %v1428 = vpack.c.bf16 %v1392, %v1392
        %v1429 = vpack.c.bf16 %v1393, %v1393
        %v1430 = vpack.c.bf16 %v1394, %v1394
        %v1431 = vpack.c.bf16 %v1395, %v1395
        %v1432 = vpack.c.bf16 %v1396, %v1396
        %v1433 = vpack.c.bf16 %v1397, %v1397
        %v1434 = vpack.c.bf16 %v1398, %v1398
        %v1435 = vpack.c.bf16 %v1399, %v1399
        %v1436 = vpack.c.bf16 %v1400, %v1400
        %v1437 = vpack.c.bf16 %v1401, %v1401
        %v1438 = vpack.c.bf16 %v1402, %v1402
        %v1439 = vpack.c.bf16 %v1403, %v1403
        %v1440 = vpack.c.bf16 %v1404, %v1404
        %v1441 = vpack.c.bf16 %v1405, %v1405
        %v1442 = vpack.c.bf16 %v1406, %v1406
        %v1443 = vpack.c.bf16 %v1407, %v1407
        %v1444 = vpack.c.bf16 %v1408, %v1408
        %1481 = vrot.lane.b32.xlu0 %v1409, 80
        %v1482 = vpop.permute.xlu0 %1481
        %1483 = vrot.lane.b32.xlu0 %v1410, 80
        %v1484 = vpop.permute.xlu0 %1483
        %1485 = vrot.lane.b32.xlu0 %v1411, 80
        %v1486 = vpop.permute.xlu0 %1485
        %1487 = vrot.lane.b32.xlu0 %v1412, 80
        %v1488 = vpop.permute.xlu0 %1487
        %1489 = vrot.lane.b32.xlu0 %v1413, 80
        %v1490 = vpop.permute.xlu0 %1489
        %1491 = vrot.lane.b32.xlu0 %v1414, 80
        %v1492 = vpop.permute.xlu0 %1491
        %1493 = vrot.lane.b32.xlu0 %v1415, 80
        %v1494 = vpop.permute.xlu0 %1493
        %1495 = vrot.lane.b32.xlu0 %v1416, 80
        %v1496 = vpop.permute.xlu0 %1495
        %1497 = vrot.lane.b32.xlu0 %v1417, 80
        %v1498 = vpop.permute.xlu0 %1497
        %1499 = vrot.lane.b32.xlu0 %v1418, 80
        %v1500 = vpop.permute.xlu0 %1499
        %1501 = vrot.lane.b32.xlu0 %v1419, 80
        %v1502 = vpop.permute.xlu0 %1501
        %1503 = vrot.lane.b32.xlu0 %v1420, 80
        %v1504 = vpop.permute.xlu0 %1503
        %1505 = vrot.lane.b32.xlu0 %v1421, 80
        %v1506 = vpop.permute.xlu0 %1505
        %1507 = vrot.lane.b32.xlu0 %v1422, 80
        %v1508 = vpop.permute.xlu0 %1507
        %1509 = vrot.lane.b32.xlu0 %v1423, 80
        %v1510 = vpop.permute.xlu0 %1509
        %1511 = vrot.lane.b32.xlu0 %v1424, 80
        %v1512 = vpop.permute.xlu0 %1511
        %1513 = vrot.lane.b32.xlu0 %v1425, 80
        %v1514 = vpop.permute.xlu0 %1513
        %1515 = vrot.lane.b32.xlu0 %v1426, 80
        %v1516 = vpop.permute.xlu0 %1515
        %1517 = vrot.lane.b32.xlu0 %v1427, 80
        %v1518 = vpop.permute.xlu0 %1517
        %1519 = vrot.lane.b32.xlu0 %v1428, 80
        %v1520 = vpop.permute.xlu0 %1519
        %1521 = vrot.lane.b32.xlu0 %v1429, 80
        %v1522 = vpop.permute.xlu0 %1521
        %1523 = vrot.lane.b32.xlu0 %v1430, 80
        %v1524 = vpop.permute.xlu0 %1523
        %1525 = vrot.lane.b32.xlu0 %v1431, 80
        %v1526 = vpop.permute.xlu0 %1525
        %1527 = vrot.lane.b32.xlu0 %v1432, 80
        %v1528 = vpop.permute.xlu0 %1527
        %1529 = vrot.lane.b32.xlu0 %v1433, 80
        %v1530 = vpop.permute.xlu0 %1529
        %1531 = vrot.lane.b32.xlu0 %v1434, 80
        %v1532 = vpop.permute.xlu0 %1531
        %1533 = vrot.lane.b32.xlu0 %v1435, 80
        %v1534 = vpop.permute.xlu0 %1533
        %1535 = vrot.lane.b32.xlu0 %v1436, 80
        %v1536 = vpop.permute.xlu0 %1535
        %1537 = vrot.lane.b32.xlu0 %v1437, 80
        %v1538 = vpop.permute.xlu0 %1537
        %1539 = vrot.lane.b32.xlu0 %v1438, 80
        %v1540 = vpop.permute.xlu0 %1539
        %1541 = vrot.lane.b32.xlu0 %v1439, 80
        %v1542 = vpop.permute.xlu0 %1541
        %1543 = vrot.lane.b32.xlu0 %v1440, 80
        %v1544 = vpop.permute.xlu0 %1543
        %1545 = vrot.lane.b32.xlu0 %v1441, 80
        %v1546 = vpop.permute.xlu0 %1545
        %1547 = vrot.lane.b32.xlu0 %v1442, 80
        %v1548 = vpop.permute.xlu0 %1547
        %1549 = vrot.lane.b32.xlu0 %v1443, 80
        %v1550 = vpop.permute.xlu0 %1549
        %1551 = vrot.lane.b32.xlu0 %v1444, 80
        %v1552 = vpop.permute.xlu0 %1551
        %vm1589 = vcmask 781952
        %1590 = vst.msk [vmem:[#allocation2] sm:$0xf] %vm1589, %v1482
        %1591 = vst.msk [vmem:[#allocation2 + $0x8] sm:$0xf] %vm1589, %v1484
        %1592 = vst.msk [vmem:[#allocation2 + $0x10] sm:$0xf] %vm1589, %v1486
        %1593 = vst.msk [vmem:[#allocation2 + $0x18] sm:$0xf] %vm1589, %v1488
        %1594 = vst.msk [vmem:[#allocation2 + $0x20] sm:$0xf] %vm1589, %v1490
        %1595 = vst.msk [vmem:[#allocation2 + $0x28] sm:$0xf] %vm1589, %v1492
        %1596 = vst.msk [vmem:[#allocation2 + $0x30] sm:$0xf] %vm1589, %v1494
        %1597 = vst.msk [vmem:[#allocation2 + $0x38] sm:$0xf] %vm1589, %v1496
        %1598 = vst.msk [vmem:[#allocation2 + $0x40] sm:$0xf] %vm1589, %v1498
        %1599 = vst.msk [vmem:[#allocation2 + $0x48] sm:$0xf] %vm1589, %v1500
        %1600 = vst.msk [vmem:[#allocation2 + $0x50] sm:$0xf] %vm1589, %v1502
        %1601 = vst.msk [vmem:[#allocation2 + $0x58] sm:$0xf] %vm1589, %v1504
        %1602 = vst.msk [vmem:[#allocation2 + $0x60] sm:$0xf] %vm1589, %v1506
        %1603 = vst.msk [vmem:[#allocation2 + $0x68] sm:$0xf] %vm1589, %v1508
        %1604 = vst.msk [vmem:[#allocation2 + $0x70] sm:$0xf] %vm1589, %v1510
        %1605 = vst.msk [vmem:[#allocation2 + $0x78] sm:$0xf] %vm1589, %v1512
        %1606 = vst.msk [vmem:[#allocation2 + $0x80] sm:$0xf] %vm1589, %v1514
        %1607 = vst.msk [vmem:[#allocation2 + $0x88] sm:$0xf] %vm1589, %v1516
        %1608 = vst.msk [vmem:[#allocation2 + $0x90] sm:$0xf] %vm1589, %v1518
        %1609 = vst.msk [vmem:[#allocation2 + $0x98] sm:$0xf] %vm1589, %v1520
        %1610 = vst.msk [vmem:[#allocation2 + $0xa0] sm:$0xf] %vm1589, %v1522
        %1611 = vst.msk [vmem:[#allocation2 + $0xa8] sm:$0xf] %vm1589, %v1524
        %1612 = vst.msk [vmem:[#allocation2 + $0xb0] sm:$0xf] %vm1589, %v1526
        %1613 = vst.msk [vmem:[#allocation2 + $0xb8] sm:$0xf] %vm1589, %v1528
        %1614 = vst.msk [vmem:[#allocation2 + $0xc0] sm:$0xf] %vm1589, %v1530
        %1615 = vst.msk [vmem:[#allocation2 + $0xc8] sm:$0xf] %vm1589, %v1532
        %1616 = vst.msk [vmem:[#allocation2 + $0xd0] sm:$0xf] %vm1589, %v1534
        %1617 = vst.msk [vmem:[#allocation2 + $0xd8] sm:$0xf] %vm1589, %v1536
        %1618 = vst.msk [vmem:[#allocation2 + $0xe0] sm:$0xf] %vm1589, %v1538
        %1619 = vst.msk [vmem:[#allocation2 + $0xe8] sm:$0xf] %vm1589, %v1540
        %1620 = vst.msk [vmem:[#allocation2 + $0xf0] sm:$0xf] %vm1589, %v1542
        %1621 = vst.msk [vmem:[#allocation2 + $0xf8] sm:$0xf] %vm1589, %v1544
        %1622 = vst.msk [vmem:[#allocation2 + $0x100] sm:$0xf] %vm1589, %v1546
        %1623 = vst.msk [vmem:[#allocation2 + $0x108] sm:$0xf] %vm1589, %v1548
        %1624 = vst.msk [vmem:[#allocation2 + $0x110] sm:$0xf] %vm1589, %v1550
        %1625 = vst.msk [vmem:[#allocation2 + $0x118] sm:$0xf] %vm1589, %v1552
        %v1626 = vld [vmem:[%s250 + $0x24] sm:$0xff]
        %v1627 = vld [vmem:[%s250 + $0x2c] sm:$0xff]
        %v1628 = vld [vmem:[%s250 + $0x34] sm:$0xff]
        %v1629 = vld [vmem:[%s250 + $0x3c] sm:$0xff]
        %v1630 = vld [vmem:[%s250 + $0x44] sm:$0xff]
        %v1631 = vld [vmem:[%s250 + $0x4c] sm:$0xff]
        %v1632 = vld [vmem:[%s250 + $0x54] sm:$0xff]
        %v1633 = vld [vmem:[%s250 + $0x5c] sm:$0xff]
        %v1634 = vld [vmem:[%s250 + $0x64] sm:$0xff]
        %v1635 = vld [vmem:[%s250 + $0x6c] sm:$0xff]
        %v1636 = vld [vmem:[%s250 + $0x74] sm:$0xff]
        %v1637 = vld [vmem:[%s250 + $0x7c] sm:$0xff]
        %v1638 = vld [vmem:[%s250 + $0x84] sm:$0xff]
        %v1639 = vld [vmem:[%s250 + $0x8c] sm:$0xff]
        %v1640 = vld [vmem:[%s250 + $0x94] sm:$0xff]
        %v1641 = vld [vmem:[%s250 + $0x9c] sm:$0xff]
        %v1642 = vld [vmem:[%s250 + $0xa4] sm:$0xff]
        %v1643 = vld [vmem:[%s250 + $0xac] sm:$0xff]
        %v1644 = vld [vmem:[%s250 + $0xb4] sm:$0xff]
        %v1645 = vld [vmem:[%s250 + $0xbc] sm:$0xff]
        %v1646 = vld [vmem:[%s250 + $0xc4] sm:$0xff]
        %v1647 = vld [vmem:[%s250 + $0xcc] sm:$0xff]
        %v1648 = vld [vmem:[%s250 + $0xd4] sm:$0xff]
        %v1649 = vld [vmem:[%s250 + $0xdc] sm:$0xff]
        %v1650 = vld [vmem:[%s250 + $0xe4] sm:$0xff]
        %v1651 = vld [vmem:[%s250 + $0xec] sm:$0xff]
        %v1652 = vld [vmem:[%s250 + $0xf4] sm:$0xff]
        %v1653 = vld [vmem:[%s250 + $0xfc] sm:$0xff]
        %v1654 = vld [vmem:[%s250 + $0x104] sm:$0xff]
        %v1655 = vld [vmem:[%s250 + $0x10c] sm:$0xff]
        %v1656 = vld [vmem:[%s250 + $0x114] sm:$0xff]
        %v1657 = vld [vmem:[%s250 + $0x11c] sm:$0xff]
        %v1658 = vld [vmem:[%s250 + $0x124] sm:$0xff]
        %v1659 = vld [vmem:[%s250 + $0x12c] sm:$0xff]
        %v1660 = vld [vmem:[%s250 + $0x134] sm:$0xff]
        %v1661 = vld [vmem:[%s250 + $0x13c] sm:$0xff]
        %v1662 = vpack.c.bf16 %v1626, %v1626
        %v1663 = vpack.c.bf16 %v1627, %v1627
        %v1664 = vpack.c.bf16 %v1628, %v1628
        %v1665 = vpack.c.bf16 %v1629, %v1629
        %v1666 = vpack.c.bf16 %v1630, %v1630
        %v1667 = vpack.c.bf16 %v1631, %v1631
        %v1668 = vpack.c.bf16 %v1632, %v1632
        %v1669 = vpack.c.bf16 %v1633, %v1633
        %v1670 = vpack.c.bf16 %v1634, %v1634
        %v1671 = vpack.c.bf16 %v1635, %v1635
        %v1672 = vpack.c.bf16 %v1636, %v1636
        %v1673 = vpack.c.bf16 %v1637, %v1637
        %v1674 = vpack.c.bf16 %v1638, %v1638
        %v1675 = vpack.c.bf16 %v1639, %v1639
        %v1676 = vpack.c.bf16 %v1640, %v1640
        %v1677 = vpack.c.bf16 %v1641, %v1641
        %v1678 = vpack.c.bf16 %v1642, %v1642
        %v1679 = vpack.c.bf16 %v1643, %v1643
        %v1680 = vpack.c.bf16 %v1644, %v1644
        %v1681 = vpack.c.bf16 %v1645, %v1645
        %v1682 = vpack.c.bf16 %v1646, %v1646
        %v1683 = vpack.c.bf16 %v1647, %v1647
        %v1684 = vpack.c.bf16 %v1648, %v1648
        %v1685 = vpack.c.bf16 %v1649, %v1649
        %v1686 = vpack.c.bf16 %v1650, %v1650
        %v1687 = vpack.c.bf16 %v1651, %v1651
        %v1688 = vpack.c.bf16 %v1652, %v1652
        %v1689 = vpack.c.bf16 %v1653, %v1653
        %v1690 = vpack.c.bf16 %v1654, %v1654
        %v1691 = vpack.c.bf16 %v1655, %v1655
        %v1692 = vpack.c.bf16 %v1656, %v1656
        %v1693 = vpack.c.bf16 %v1657, %v1657
        %v1694 = vpack.c.bf16 %v1658, %v1658
        %v1695 = vpack.c.bf16 %v1659, %v1659
        %v1696 = vpack.c.bf16 %v1660, %v1660
        %v1697 = vpack.c.bf16 %v1661, %v1661
        %1734 = vrot.lane.b32.xlu0 %v1662, 96
        %v1735 = vpop.permute.xlu0 %1734
        %1736 = vrot.lane.b32.xlu0 %v1663, 96
        %v1737 = vpop.permute.xlu0 %1736
        %1738 = vrot.lane.b32.xlu0 %v1664, 96
        %v1739 = vpop.permute.xlu0 %1738
        %1740 = vrot.lane.b32.xlu0 %v1665, 96
        %v1741 = vpop.permute.xlu0 %1740
        %1742 = vrot.lane.b32.xlu0 %v1666, 96
        %v1743 = vpop.permute.xlu0 %1742
        %1744 = vrot.lane.b32.xlu0 %v1667, 96
        %v1745 = vpop.permute.xlu0 %1744
        %1746 = vrot.lane.b32.xlu0 %v1668, 96
        %v1747 = vpop.permute.xlu0 %1746
        %1748 = vrot.lane.b32.xlu0 %v1669, 96
        %v1749 = vpop.permute.xlu0 %1748
        %1750 = vrot.lane.b32.xlu0 %v1670, 96
        %v1751 = vpop.permute.xlu0 %1750
        %1752 = vrot.lane.b32.xlu0 %v1671, 96
        %v1753 = vpop.permute.xlu0 %1752
        %1754 = vrot.lane.b32.xlu0 %v1672, 96
        %v1755 = vpop.permute.xlu0 %1754
        %1756 = vrot.lane.b32.xlu0 %v1673, 96
        %v1757 = vpop.permute.xlu0 %1756
        %1758 = vrot.lane.b32.xlu0 %v1674, 96
        %v1759 = vpop.permute.xlu0 %1758
        %1760 = vrot.lane.b32.xlu0 %v1675, 96
        %v1761 = vpop.permute.xlu0 %1760
        %1762 = vrot.lane.b32.xlu0 %v1676, 96
        %v1763 = vpop.permute.xlu0 %1762
        %1764 = vrot.lane.b32.xlu0 %v1677, 96
        %v1765 = vpop.permute.xlu0 %1764
        %1766 = vrot.lane.b32.xlu0 %v1678, 96
        %v1767 = vpop.permute.xlu0 %1766
        %1768 = vrot.lane.b32.xlu0 %v1679, 96
        %v1769 = vpop.permute.xlu0 %1768
        %1770 = vrot.lane.b32.xlu0 %v1680, 96
        %v1771 = vpop.permute.xlu0 %1770
        %1772 = vrot.lane.b32.xlu0 %v1681, 96
        %v1773 = vpop.permute.xlu0 %1772
        %1774 = vrot.lane.b32.xlu0 %v1682, 96
        %v1775 = vpop.permute.xlu0 %1774
        %1776 = vrot.lane.b32.xlu0 %v1683, 96
        %v1777 = vpop.permute.xlu0 %1776
        %1778 = vrot.lane.b32.xlu0 %v1684, 96
        %v1779 = vpop.permute.xlu0 %1778
        %1780 = vrot.lane.b32.xlu0 %v1685, 96
        %v1781 = vpop.permute.xlu0 %1780
        %1782 = vrot.lane.b32.xlu0 %v1686, 96
        %v1783 = vpop.permute.xlu0 %1782
        %1784 = vrot.lane.b32.xlu0 %v1687, 96
        %v1785 = vpop.permute.xlu0 %1784
        %1786 = vrot.lane.b32.xlu0 %v1688, 96
        %v1787 = vpop.permute.xlu0 %1786
        %1788 = vrot.lane.b32.xlu0 %v1689, 96
        %v1789 = vpop.permute.xlu0 %1788
        %1790 = vrot.lane.b32.xlu0 %v1690, 96
        %v1791 = vpop.permute.xlu0 %1790
        %1792 = vrot.lane.b32.xlu0 %v1691, 96
        %v1793 = vpop.permute.xlu0 %1792
        %1794 = vrot.lane.b32.xlu0 %v1692, 96
        %v1795 = vpop.permute.xlu0 %1794
        %1796 = vrot.lane.b32.xlu0 %v1693, 96
        %v1797 = vpop.permute.xlu0 %1796
        %1798 = vrot.lane.b32.xlu0 %v1694, 96
        %v1799 = vpop.permute.xlu0 %1798
        %1800 = vrot.lane.b32.xlu0 %v1695, 96
        %v1801 = vpop.permute.xlu0 %1800
        %1802 = vrot.lane.b32.xlu0 %v1696, 96
        %v1803 = vpop.permute.xlu0 %1802
        %1804 = vrot.lane.b32.xlu0 %v1697, 96
        %v1805 = vpop.permute.xlu0 %1804
        %vm1842 = vcmask 913152
        %1843 = vst.msk [vmem:[#allocation2] sm:$0xf] %vm1842, %v1735
        %1844 = vst.msk [vmem:[#allocation2 + $0x8] sm:$0xf] %vm1842, %v1737
        %1845 = vst.msk [vmem:[#allocation2 + $0x10] sm:$0xf] %vm1842, %v1739
        %1846 = vst.msk [vmem:[#allocation2 + $0x18] sm:$0xf] %vm1842, %v1741
        %1847 = vst.msk [vmem:[#allocation2 + $0x20] sm:$0xf] %vm1842, %v1743
        %1848 = vst.msk [vmem:[#allocation2 + $0x28] sm:$0xf] %vm1842, %v1745
        %1849 = vst.msk [vmem:[#allocation2 + $0x30] sm:$0xf] %vm1842, %v1747
        %1850 = vst.msk [vmem:[#allocation2 + $0x38] sm:$0xf] %vm1842, %v1749
        %1851 = vst.msk [vmem:[#allocation2 + $0x40] sm:$0xf] %vm1842, %v1751
        %1852 = vst.msk [vmem:[#allocation2 + $0x48] sm:$0xf] %vm1842, %v1753
        %1853 = vst.msk [vmem:[#allocation2 + $0x50] sm:$0xf] %vm1842, %v1755
        %1854 = vst.msk [vmem:[#allocation2 + $0x58] sm:$0xf] %vm1842, %v1757
        %1855 = vst.msk [vmem:[#allocation2 + $0x60] sm:$0xf] %vm1842, %v1759
        %1856 = vst.msk [vmem:[#allocation2 + $0x68] sm:$0xf] %vm1842, %v1761
        %1857 = vst.msk [vmem:[#allocation2 + $0x70] sm:$0xf] %vm1842, %v1763
        %1858 = vst.msk [vmem:[#allocation2 + $0x78] sm:$0xf] %vm1842, %v1765
        %1859 = vst.msk [vmem:[#allocation2 + $0x80] sm:$0xf] %vm1842, %v1767
        %1860 = vst.msk [vmem:[#allocation2 + $0x88] sm:$0xf] %vm1842, %v1769
        %1861 = vst.msk [vmem:[#allocation2 + $0x90] sm:$0xf] %vm1842, %v1771
        %1862 = vst.msk [vmem:[#allocation2 + $0x98] sm:$0xf] %vm1842, %v1773
        %1863 = vst.msk [vmem:[#allocation2 + $0xa0] sm:$0xf] %vm1842, %v1775
        %1864 = vst.msk [vmem:[#allocation2 + $0xa8] sm:$0xf] %vm1842, %v1777
        %1865 = vst.msk [vmem:[#allocation2 + $0xb0] sm:$0xf] %vm1842, %v1779
        %1866 = vst.msk [vmem:[#allocation2 + $0xb8] sm:$0xf] %vm1842, %v1781
        %1867 = vst.msk [vmem:[#allocation2 + $0xc0] sm:$0xf] %vm1842, %v1783
        %1868 = vst.msk [vmem:[#allocation2 + $0xc8] sm:$0xf] %vm1842, %v1785
        %1869 = vst.msk [vmem:[#allocation2 + $0xd0] sm:$0xf] %vm1842, %v1787
        %1870 = vst.msk [vmem:[#allocation2 + $0xd8] sm:$0xf] %vm1842, %v1789
        %1871 = vst.msk [vmem:[#allocation2 + $0xe0] sm:$0xf] %vm1842, %v1791
        %1872 = vst.msk [vmem:[#allocation2 + $0xe8] sm:$0xf] %vm1842, %v1793
        %1873 = vst.msk [vmem:[#allocation2 + $0xf0] sm:$0xf] %vm1842, %v1795
        %1874 = vst.msk [vmem:[#allocation2 + $0xf8] sm:$0xf] %vm1842, %v1797
        %1875 = vst.msk [vmem:[#allocation2 + $0x100] sm:$0xf] %vm1842, %v1799
        %1876 = vst.msk [vmem:[#allocation2 + $0x108] sm:$0xf] %vm1842, %v1801
        %1877 = vst.msk [vmem:[#allocation2 + $0x110] sm:$0xf] %vm1842, %v1803
        %1878 = vst.msk [vmem:[#allocation2 + $0x118] sm:$0xf] %vm1842, %v1805
        %v1879 = vld [vmem:[%s250 + $0x25] sm:$0xff]
        %v1880 = vld [vmem:[%s250 + $0x2d] sm:$0xff]
        %v1881 = vld [vmem:[%s250 + $0x35] sm:$0xff]
        %v1882 = vld [vmem:[%s250 + $0x3d] sm:$0xff]
        %v1883 = vld [vmem:[%s250 + $0x45] sm:$0xff]
        %v1884 = vld [vmem:[%s250 + $0x4d] sm:$0xff]
        %v1885 = vld [vmem:[%s250 + $0x55] sm:$0xff]
        %v1886 = vld [vmem:[%s250 + $0x5d] sm:$0xff]
        %v1887 = vld [vmem:[%s250 + $0x65] sm:$0xff]
        %v1888 = vld [vmem:[%s250 + $0x6d] sm:$0xff]
        %v1889 = vld [vmem:[%s250 + $0x75] sm:$0xff]
        %v1890 = vld [vmem:[%s250 + $0x7d] sm:$0xff]
        %v1891 = vld [vmem:[%s250 + $0x85] sm:$0xff]
        %v1892 = vld [vmem:[%s250 + $0x8d] sm:$0xff]
        %v1893 = vld [vmem:[%s250 + $0x95] sm:$0xff]
        %v1894 = vld [vmem:[%s250 + $0x9d] sm:$0xff]
        %v1895 = vld [vmem:[%s250 + $0xa5] sm:$0xff]
        %v1896 = vld [vmem:[%s250 + $0xad] sm:$0xff]
        %v1897 = vld [vmem:[%s250 + $0xb5] sm:$0xff]
        %v1898 = vld [vmem:[%s250 + $0xbd] sm:$0xff]
        %v1899 = vld [vmem:[%s250 + $0xc5] sm:$0xff]
        %v1900 = vld [vmem:[%s250 + $0xcd] sm:$0xff]
        %v1901 = vld [vmem:[%s250 + $0xd5] sm:$0xff]
        %v1902 = vld [vmem:[%s250 + $0xdd] sm:$0xff]
        %v1903 = vld [vmem:[%s250 + $0xe5] sm:$0xff]
        %v1904 = vld [vmem:[%s250 + $0xed] sm:$0xff]
        %v1905 = vld [vmem:[%s250 + $0xf5] sm:$0xff]
        %v1906 = vld [vmem:[%s250 + $0xfd] sm:$0xff]
        %v1907 = vld [vmem:[%s250 + $0x105] sm:$0xff]
        %v1908 = vld [vmem:[%s250 + $0x10d] sm:$0xff]
        %v1909 = vld [vmem:[%s250 + $0x115] sm:$0xff]
        %v1910 = vld [vmem:[%s250 + $0x11d] sm:$0xff]
        %v1911 = vld [vmem:[%s250 + $0x125] sm:$0xff]
        %v1912 = vld [vmem:[%s250 + $0x12d] sm:$0xff]
        %v1913 = vld [vmem:[%s250 + $0x135] sm:$0xff]
        %v1914 = vld [vmem:[%s250 + $0x13d] sm:$0xff]
        %v1915 = vpack.c.bf16 %v1879, %v1879
        %v1916 = vpack.c.bf16 %v1880, %v1880
        %v1917 = vpack.c.bf16 %v1881, %v1881
        %v1918 = vpack.c.bf16 %v1882, %v1882
        %v1919 = vpack.c.bf16 %v1883, %v1883
        %v1920 = vpack.c.bf16 %v1884, %v1884
        %v1921 = vpack.c.bf16 %v1885, %v1885
        %v1922 = vpack.c.bf16 %v1886, %v1886
        %v1923 = vpack.c.bf16 %v1887, %v1887
        %v1924 = vpack.c.bf16 %v1888, %v1888
        %v1925 = vpack.c.bf16 %v1889, %v1889
        %v1926 = vpack.c.bf16 %v1890, %v1890
        %v1927 = vpack.c.bf16 %v1891, %v1891
        %v1928 = vpack.c.bf16 %v1892, %v1892
        %v1929 = vpack.c.bf16 %v1893, %v1893
        %v1930 = vpack.c.bf16 %v1894, %v1894
        %v1931 = vpack.c.bf16 %v1895, %v1895
        %v1932 = vpack.c.bf16 %v1896, %v1896
        %v1933 = vpack.c.bf16 %v1897, %v1897
        %v1934 = vpack.c.bf16 %v1898, %v1898
        %v1935 = vpack.c.bf16 %v1899, %v1899
        %v1936 = vpack.c.bf16 %v1900, %v1900
        %v1937 = vpack.c.bf16 %v1901, %v1901
        %v1938 = vpack.c.bf16 %v1902, %v1902
        %v1939 = vpack.c.bf16 %v1903, %v1903
        %v1940 = vpack.c.bf16 %v1904, %v1904
        %v1941 = vpack.c.bf16 %v1905, %v1905
        %v1942 = vpack.c.bf16 %v1906, %v1906
        %v1943 = vpack.c.bf16 %v1907, %v1907
        %v1944 = vpack.c.bf16 %v1908, %v1908
        %v1945 = vpack.c.bf16 %v1909, %v1909
        %v1946 = vpack.c.bf16 %v1910, %v1910
        %v1947 = vpack.c.bf16 %v1911, %v1911
        %v1948 = vpack.c.bf16 %v1912, %v1912
        %v1949 = vpack.c.bf16 %v1913, %v1913
        %v1950 = vpack.c.bf16 %v1914, %v1914
        %1987 = vrot.lane.b32.xlu0 %v1915, 112
        %v1988 = vpop.permute.xlu0 %1987
        %1989 = vrot.lane.b32.xlu0 %v1916, 112
        %v1990 = vpop.permute.xlu0 %1989
        %1991 = vrot.lane.b32.xlu0 %v1917, 112
        %v1992 = vpop.permute.xlu0 %1991
        %1993 = vrot.lane.b32.xlu0 %v1918, 112
        %v1994 = vpop.permute.xlu0 %1993
        %1995 = vrot.lane.b32.xlu0 %v1919, 112
        %v1996 = vpop.permute.xlu0 %1995
        %1997 = vrot.lane.b32.xlu0 %v1920, 112
        %v1998 = vpop.permute.xlu0 %1997
        %1999 = vrot.lane.b32.xlu0 %v1921, 112
        %v2000 = vpop.permute.xlu0 %1999
        %2001 = vrot.lane.b32.xlu0 %v1922, 112
        %v2002 = vpop.permute.xlu0 %2001
        %2003 = vrot.lane.b32.xlu0 %v1923, 112
        %v2004 = vpop.permute.xlu0 %2003
        %2005 = vrot.lane.b32.xlu0 %v1924, 112
        %v2006 = vpop.permute.xlu0 %2005
        %2007 = vrot.lane.b32.xlu0 %v1925, 112
        %v2008 = vpop.permute.xlu0 %2007
        %2009 = vrot.lane.b32.xlu0 %v1926, 112
        %v2010 = vpop.permute.xlu0 %2009
        %2011 = vrot.lane.b32.xlu0 %v1927, 112
        %v2012 = vpop.permute.xlu0 %2011
        %2013 = vrot.lane.b32.xlu0 %v1928, 112
        %v2014 = vpop.permute.xlu0 %2013
        %2015 = vrot.lane.b32.xlu0 %v1929, 112
        %v2016 = vpop.permute.xlu0 %2015
        %2017 = vrot.lane.b32.xlu0 %v1930, 112
        %v2018 = vpop.permute.xlu0 %2017
        %2019 = vrot.lane.b32.xlu0 %v1931, 112
        %v2020 = vpop.permute.xlu0 %2019
        %2021 = vrot.lane.b32.xlu0 %v1932, 112
        %v2022 = vpop.permute.xlu0 %2021
        %2023 = vrot.lane.b32.xlu0 %v1933, 112
        %v2024 = vpop.permute.xlu0 %2023
        %2025 = vrot.lane.b32.xlu0 %v1934, 112
        %v2026 = vpop.permute.xlu0 %2025
        %2027 = vrot.lane.b32.xlu0 %v1935, 112
        %v2028 = vpop.permute.xlu0 %2027
        %2029 = vrot.lane.b32.xlu0 %v1936, 112
        %v2030 = vpop.permute.xlu0 %2029
        %2031 = vrot.lane.b32.xlu0 %v1937, 112
        %v2032 = vpop.permute.xlu0 %2031
        %2033 = vrot.lane.b32.xlu0 %v1938, 112
        %v2034 = vpop.permute.xlu0 %2033
        %2035 = vrot.lane.b32.xlu0 %v1939, 112
        %v2036 = vpop.permute.xlu0 %2035
        %2037 = vrot.lane.b32.xlu0 %v1940, 112
        %v2038 = vpop.permute.xlu0 %2037
        %2039 = vrot.lane.b32.xlu0 %v1941, 112
        %v2040 = vpop.permute.xlu0 %2039
        %2041 = vrot.lane.b32.xlu0 %v1942, 112
        %v2042 = vpop.permute.xlu0 %2041
        %2043 = vrot.lane.b32.xlu0 %v1943, 112
        %v2044 = vpop.permute.xlu0 %2043
        %2045 = vrot.lane.b32.xlu0 %v1944, 112
        %v2046 = vpop.permute.xlu0 %2045
        %2047 = vrot.lane.b32.xlu0 %v1945, 112
        %v2048 = vpop.permute.xlu0 %2047
        %2049 = vrot.lane.b32.xlu0 %v1946, 112
        %v2050 = vpop.permute.xlu0 %2049
        %2051 = vrot.lane.b32.xlu0 %v1947, 112
        %v2052 = vpop.permute.xlu0 %2051
        %2053 = vrot.lane.b32.xlu0 %v1948, 112
        %v2054 = vpop.permute.xlu0 %2053
        %2055 = vrot.lane.b32.xlu0 %v1949, 112
        %v2056 = vpop.permute.xlu0 %2055
        %2057 = vrot.lane.b32.xlu0 %v1950, 112
        %v2058 = vpop.permute.xlu0 %2057
        %vm2095 = vcmask 1044352
        %2096 = vst.msk [vmem:[#allocation2] sm:$0xf] %vm2095, %v1988
        %2097 = vst.msk [vmem:[#allocation2 + $0x8] sm:$0xf] %vm2095, %v1990
        %2098 = vst.msk [vmem:[#allocation2 + $0x10] sm:$0xf] %vm2095, %v1992
        %2099 = vst.msk [vmem:[#allocation2 + $0x18] sm:$0xf] %vm2095, %v1994
        %2100 = vst.msk [vmem:[#allocation2 + $0x20] sm:$0xf] %vm2095, %v1996
        %2101 = vst.msk [vmem:[#allocation2 + $0x28] sm:$0xf] %vm2095, %v1998
        %2102 = vst.msk [vmem:[#allocation2 + $0x30] sm:$0xf] %vm2095, %v2000
        %2103 = vst.msk [vmem:[#allocation2 + $0x38] sm:$0xf] %vm2095, %v2002
        %2104 = vst.msk [vmem:[#allocation2 + $0x40] sm:$0xf] %vm2095, %v2004
        %2105 = vst.msk [vmem:[#allocation2 + $0x48] sm:$0xf] %vm2095, %v2006
        %2106 = vst.msk [vmem:[#allocation2 + $0x50] sm:$0xf] %vm2095, %v2008
        %2107 = vst.msk [vmem:[#allocation2 + $0x58] sm:$0xf] %vm2095, %v2010
        %2108 = vst.msk [vmem:[#allocation2 + $0x60] sm:$0xf] %vm2095, %v2012
        %2109 = vst.msk [vmem:[#allocation2 + $0x68] sm:$0xf] %vm2095, %v2014
        %2110 = vst.msk [vmem:[#allocation2 + $0x70] sm:$0xf] %vm2095, %v2016
        %2111 = vst.msk [vmem:[#allocation2 + $0x78] sm:$0xf] %vm2095, %v2018
        %2112 = vst.msk [vmem:[#allocation2 + $0x80] sm:$0xf] %vm2095, %v2020
        %2113 = vst.msk [vmem:[#allocation2 + $0x88] sm:$0xf] %vm2095, %v2022
        %2114 = vst.msk [vmem:[#allocation2 + $0x90] sm:$0xf] %vm2095, %v2024
        %2115 = vst.msk [vmem:[#allocation2 + $0x98] sm:$0xf] %vm2095, %v2026
        %2116 = vst.msk [vmem:[#allocation2 + $0xa0] sm:$0xf] %vm2095, %v2028
        %2117 = vst.msk [vmem:[#allocation2 + $0xa8] sm:$0xf] %vm2095, %v2030
        %2118 = vst.msk [vmem:[#allocation2 + $0xb0] sm:$0xf] %vm2095, %v2032
        %2119 = vst.msk [vmem:[#allocation2 + $0xb8] sm:$0xf] %vm2095, %v2034
        %2120 = vst.msk [vmem:[#allocation2 + $0xc0] sm:$0xf] %vm2095, %v2036
        %2121 = vst.msk [vmem:[#allocation2 + $0xc8] sm:$0xf] %vm2095, %v2038
        %2122 = vst.msk [vmem:[#allocation2 + $0xd0] sm:$0xf] %vm2095, %v2040
        %2123 = vst.msk [vmem:[#allocation2 + $0xd8] sm:$0xf] %vm2095, %v2042
        %2124 = vst.msk [vmem:[#allocation2 + $0xe0] sm:$0xf] %vm2095, %v2044
        %2125 = vst.msk [vmem:[#allocation2 + $0xe8] sm:$0xf] %vm2095, %v2046
        %2126 = vst.msk [vmem:[#allocation2 + $0xf0] sm:$0xf] %vm2095, %v2048
        %2127 = vst.msk [vmem:[#allocation2 + $0xf8] sm:$0xf] %vm2095, %v2050
        %2128 = vst.msk [vmem:[#allocation2 + $0x100] sm:$0xf] %vm2095, %v2052
        %2129 = vst.msk [vmem:[#allocation2 + $0x108] sm:$0xf] %vm2095, %v2054
        %2130 = vst.msk [vmem:[#allocation2 + $0x110] sm:$0xf] %vm2095, %v2056
        %2131 = vst.msk [vmem:[#allocation2 + $0x118] sm:$0xf] %vm2095, %v2058
        %v2132 = vld [vmem:[%s250 + $0x26] sm:$0xff]
        %v2133 = vld [vmem:[%s250 + $0x2e] sm:$0xff]
        %v2134 = vld [vmem:[%s250 + $0x36] sm:$0xff]
        %v2135 = vld [vmem:[%s250 + $0x3e] sm:$0xff]
        %v2136 = vld [vmem:[%s250 + $0x46] sm:$0xff]
        %v2137 = vld [vmem:[%s250 + $0x4e] sm:$0xff]
        %v2138 = vld [vmem:[%s250 + $0x56] sm:$0xff]
        %v2139 = vld [vmem:[%s250 + $0x5e] sm:$0xff]
        %v2140 = vld [vmem:[%s250 + $0x66] sm:$0xff]
        %v2141 = vld [vmem:[%s250 + $0x6e] sm:$0xff]
        %v2142 = vld [vmem:[%s250 + $0x76] sm:$0xff]
        %v2143 = vld [vmem:[%s250 + $0x7e] sm:$0xff]
        %v2144 = vld [vmem:[%s250 + $0x86] sm:$0xff]
        %v2145 = vld [vmem:[%s250 + $0x8e] sm:$0xff]
        %v2146 = vld [vmem:[%s250 + $0x96] sm:$0xff]
        %v2147 = vld [vmem:[%s250 + $0x9e] sm:$0xff]
        %v2148 = vld [vmem:[%s250 + $0xa6] sm:$0xff]
        %v2149 = vld [vmem:[%s250 + $0xae] sm:$0xff]
        %v2150 = vld [vmem:[%s250 + $0xb6] sm:$0xff]
        %v2151 = vld [vmem:[%s250 + $0xbe] sm:$0xff]
        %v2152 = vld [vmem:[%s250 + $0xc6] sm:$0xff]
        %v2153 = vld [vmem:[%s250 + $0xce] sm:$0xff]
        %v2154 = vld [vmem:[%s250 + $0xd6] sm:$0xff]
        %v2155 = vld [vmem:[%s250 + $0xde] sm:$0xff]
        %v2156 = vld [vmem:[%s250 + $0xe6] sm:$0xff]
        %v2157 = vld [vmem:[%s250 + $0xee] sm:$0xff]
        %v2158 = vld [vmem:[%s250 + $0xf6] sm:$0xff]
        %v2159 = vld [vmem:[%s250 + $0xfe] sm:$0xff]
        %v2160 = vld [vmem:[%s250 + $0x106] sm:$0xff]
        %v2161 = vld [vmem:[%s250 + $0x10e] sm:$0xff]
        %v2162 = vld [vmem:[%s250 + $0x116] sm:$0xff]
        %v2163 = vld [vmem:[%s250 + $0x11e] sm:$0xff]
        %v2164 = vld [vmem:[%s250 + $0x126] sm:$0xff]
        %v2165 = vld [vmem:[%s250 + $0x12e] sm:$0xff]
        %v2166 = vld [vmem:[%s250 + $0x136] sm:$0xff]
        %v2167 = vld [vmem:[%s250 + $0x13e] sm:$0xff]
        %v2168 = vpack.c.bf16 %v2132, %v2132
        %v2169 = vpack.c.bf16 %v2133, %v2133
        %v2170 = vpack.c.bf16 %v2134, %v2134
        %v2171 = vpack.c.bf16 %v2135, %v2135
        %v2172 = vpack.c.bf16 %v2136, %v2136
        %v2173 = vpack.c.bf16 %v2137, %v2137
        %v2174 = vpack.c.bf16 %v2138, %v2138
        %v2175 = vpack.c.bf16 %v2139, %v2139
        %v2176 = vpack.c.bf16 %v2140, %v2140
        %v2177 = vpack.c.bf16 %v2141, %v2141
        %v2178 = vpack.c.bf16 %v2142, %v2142
        %v2179 = vpack.c.bf16 %v2143, %v2143
        %v2180 = vpack.c.bf16 %v2144, %v2144
        %v2181 = vpack.c.bf16 %v2145, %v2145
        %v2182 = vpack.c.bf16 %v2146, %v2146
        %v2183 = vpack.c.bf16 %v2147, %v2147
        %v2184 = vpack.c.bf16 %v2148, %v2148
        %v2185 = vpack.c.bf16 %v2149, %v2149
        %v2186 = vpack.c.bf16 %v2150, %v2150
        %v2187 = vpack.c.bf16 %v2151, %v2151
        %v2188 = vpack.c.bf16 %v2152, %v2152
        %v2189 = vpack.c.bf16 %v2153, %v2153
        %v2190 = vpack.c.bf16 %v2154, %v2154
        %v2191 = vpack.c.bf16 %v2155, %v2155
        %v2192 = vpack.c.bf16 %v2156, %v2156
        %v2193 = vpack.c.bf16 %v2157, %v2157
        %v2194 = vpack.c.bf16 %v2158, %v2158
        %v2195 = vpack.c.bf16 %v2159, %v2159
        %v2196 = vpack.c.bf16 %v2160, %v2160
        %v2197 = vpack.c.bf16 %v2161, %v2161
        %v2198 = vpack.c.bf16 %v2162, %v2162
        %v2199 = vpack.c.bf16 %v2163, %v2163
        %v2200 = vpack.c.bf16 %v2164, %v2164
        %v2201 = vpack.c.bf16 %v2165, %v2165
        %v2202 = vpack.c.bf16 %v2166, %v2166
        %v2203 = vpack.c.bf16 %v2167, %v2167
        %2204 = vst.msk [vmem:[#allocation2 + $0x4] sm:$0xf] %vm324, %v2168
        %2205 = vst.msk [vmem:[#allocation2 + $0xc] sm:$0xf] %vm324, %v2169
        %2206 = vst.msk [vmem:[#allocation2 + $0x14] sm:$0xf] %vm324, %v2170
        %2207 = vst.msk [vmem:[#allocation2 + $0x1c] sm:$0xf] %vm324, %v2171
        %2208 = vst.msk [vmem:[#allocation2 + $0x24] sm:$0xf] %vm324, %v2172
        %2209 = vst.msk [vmem:[#allocation2 + $0x2c] sm:$0xf] %vm324, %v2173
        %2210 = vst.msk [vmem:[#allocation2 + $0x34] sm:$0xf] %vm324, %v2174
        %2211 = vst.msk [vmem:[#allocation2 + $0x3c] sm:$0xf] %vm324, %v2175
        %2212 = vst.msk [vmem:[#allocation2 + $0x44] sm:$0xf] %vm324, %v2176
        %2213 = vst.msk [vmem:[#allocation2 + $0x4c] sm:$0xf] %vm324, %v2177
        %2214 = vst.msk [vmem:[#allocation2 + $0x54] sm:$0xf] %vm324, %v2178
        %2215 = vst.msk [vmem:[#allocation2 + $0x5c] sm:$0xf] %vm324, %v2179
        %2216 = vst.msk [vmem:[#allocation2 + $0x64] sm:$0xf] %vm324, %v2180
        %2217 = vst.msk [vmem:[#allocation2 + $0x6c] sm:$0xf] %vm324, %v2181
        %2218 = vst.msk [vmem:[#allocation2 + $0x74] sm:$0xf] %vm324, %v2182
        %2219 = vst.msk [vmem:[#allocation2 + $0x7c] sm:$0xf] %vm324, %v2183
        %2220 = vst.msk [vmem:[#allocation2 + $0x84] sm:$0xf] %vm324, %v2184
        %2221 = vst.msk [vmem:[#allocation2 + $0x8c] sm:$0xf] %vm324, %v2185
        %2222 = vst.msk [vmem:[#allocation2 + $0x94] sm:$0xf] %vm324, %v2186
        %2223 = vst.msk [vmem:[#allocation2 + $0x9c] sm:$0xf] %vm324, %v2187
        %2224 = vst.msk [vmem:[#allocation2 + $0xa4] sm:$0xf] %vm324, %v2188
        %2225 = vst.msk [vmem:[#allocation2 + $0xac] sm:$0xf] %vm324, %v2189
        %2226 = vst.msk [vmem:[#allocation2 + $0xb4] sm:$0xf] %vm324, %v2190
        %2227 = vst.msk [vmem:[#allocation2 + $0xbc] sm:$0xf] %vm324, %v2191
        %2228 = vst.msk [vmem:[#allocation2 + $0xc4] sm:$0xf] %vm324, %v2192
        %2229 = vst.msk [vmem:[#allocation2 + $0xcc] sm:$0xf] %vm324, %v2193
        %2230 = vst.msk [vmem:[#allocation2 + $0xd4] sm:$0xf] %vm324, %v2194
        %2231 = vst.msk [vmem:[#allocation2 + $0xdc] sm:$0xf] %vm324, %v2195
        %2232 = vst.msk [vmem:[#allocation2 + $0xe4] sm:$0xf] %vm324, %v2196
        %2233 = vst.msk [vmem:[#allocation2 + $0xec] sm:$0xf] %vm324, %v2197
        %2234 = vst.msk [vmem:[#allocation2 + $0xf4] sm:$0xf] %vm324, %v2198
        %2235 = vst.msk [vmem:[#allocation2 + $0xfc] sm:$0xf] %vm324, %v2199
        %2236 = vst.msk [vmem:[#allocation2 + $0x104] sm:$0xf] %vm324, %v2200
        %2237 = vst.msk [vmem:[#allocation2 + $0x10c] sm:$0xf] %vm324, %v2201
        %2238 = vst.msk [vmem:[#allocation2 + $0x114] sm:$0xf] %vm324, %v2202
        %2239 = vst.msk [vmem:[#allocation2 + $0x11c] sm:$0xf] %vm324, %v2203
        %v2240 = vld [vmem:[#allocation2] sm:$0xff]
        %v2241 = vld [vmem:[#allocation2 + $0x8] sm:$0xff]
        %v2242 = vld [vmem:[#allocation2 + $0x10] sm:$0xff]
        %v2243 = vld [vmem:[#allocation2 + $0x18] sm:$0xff]
        %v2244 = vld [vmem:[#allocation2 + $0x20] sm:$0xff]
        %v2245 = vld [vmem:[#allocation2 + $0x28] sm:$0xff]
        %v2246 = vld [vmem:[#allocation2 + $0x30] sm:$0xff]
        %v2247 = vld [vmem:[#allocation2 + $0x38] sm:$0xff]
        %v2248 = vld [vmem:[#allocation2 + $0x40] sm:$0xff]
        %v2249 = vld [vmem:[#allocation2 + $0x48] sm:$0xff]
        %v2250 = vld [vmem:[#allocation2 + $0x50] sm:$0xff]
        %v2251 = vld [vmem:[#allocation2 + $0x58] sm:$0xff]
        %v2252 = vld [vmem:[#allocation2 + $0x60] sm:$0xff]
        %v2253 = vld [vmem:[#allocation2 + $0x68] sm:$0xff]
        %v2254 = vld [vmem:[#allocation2 + $0x70] sm:$0xff]
        %v2255 = vld [vmem:[#allocation2 + $0x78] sm:$0xff]
        %v2256 = vld [vmem:[#allocation2 + $0x80] sm:$0xff]
        %v2257 = vld [vmem:[#allocation2 + $0x88] sm:$0xff]
        %v2258 = vld [vmem:[#allocation2 + $0x90] sm:$0xff]
        %v2259 = vld [vmem:[#allocation2 + $0x98] sm:$0xff]
        %v2260 = vld [vmem:[#allocation2 + $0xa0] sm:$0xff]
        %v2261 = vld [vmem:[#allocation2 + $0xa8] sm:$0xff]
        %v2262 = vld [vmem:[#allocation2 + $0xb0] sm:$0xff]
        %v2263 = vld [vmem:[#allocation2 + $0xb8] sm:$0xff]
        %v2264 = vld [vmem:[#allocation2 + $0xc0] sm:$0xff]
        %v2265 = vld [vmem:[#allocation2 + $0xc8] sm:$0xff]
        %v2266 = vld [vmem:[#allocation2 + $0xd0] sm:$0xff]
        %v2267 = vld [vmem:[#allocation2 + $0xd8] sm:$0xff]
        %v2268 = vld [vmem:[#allocation2 + $0xe0] sm:$0xff]
        %v2269 = vld [vmem:[#allocation2 + $0xe8] sm:$0xff]
        %v2270 = vld [vmem:[#allocation2 + $0xf0] sm:$0xff]
        %v2271 = vld [vmem:[#allocation2 + $0xf8] sm:$0xff]
        %v2272 = vld [vmem:[#allocation2 + $0x100] sm:$0xff]
        %v2273 = vld [vmem:[#allocation2 + $0x108] sm:$0xff]
        %v2274 = vld [vmem:[#allocation2 + $0x110] sm:$0xff]
        %v2275 = vld [vmem:[#allocation2 + $0x118] sm:$0xff]
        %v2276 = vld [vmem:[%s1] sm:$0xf]
        %v2277 = vld [vmem:[%s1 + $0x4] sm:$0xf]
        %v2278 = vld [vmem:[%s1 + $0x8] sm:$0xf]
        %v2279 = vld [vmem:[%s1 + $0xc] sm:$0xf]
        %v2280 = vld [vmem:[%s1 + $0x10] sm:$0xf]
        %v2281 = vld [vmem:[%s1 + $0x14] sm:$0xf]
        %v2282 = vld [vmem:[%s1 + $0x18] sm:$0xf]
        %v2283 = vld [vmem:[%s1 + $0x1c] sm:$0xf]
        %v2284 = vld [vmem:[%s1 + $0x20] sm:$0xf]
        %v2285 = vld [vmem:[%s1 + $0x24] sm:$0xf]
        %v2286 = vld [vmem:[%s1 + $0x28] sm:$0xf]
        %v2287 = vld [vmem:[%s1 + $0x2c] sm:$0xf]
        %v2288 = vld [vmem:[%s1 + $0x30] sm:$0xf]
        %v2289 = vld [vmem:[%s1 + $0x34] sm:$0xf]
        %v2290 = vld [vmem:[%s1 + $0x38] sm:$0xf]
        %v2291 = vld [vmem:[%s1 + $0x3c] sm:$0xf]
        %v2292 = vld [vmem:[%s1 + $0x40] sm:$0xf]
        %v2293 = vld [vmem:[%s1 + $0x44] sm:$0xf]
        %v2294 = vld [vmem:[%s2] sm:$0x1]
        %v2296 = vperm.slane %v2294, 0
        %v2334 = vunpack.c.l.b16 %v2240
        %v2335 = vunpack.c.h.b16 %v2240
        %v2336 = vunpack.c.l.b16 %v2241
        %v2337 = vunpack.c.h.b16 %v2241
        %v2338 = vunpack.c.l.b16 %v2242
        %v2339 = vunpack.c.h.b16 %v2242
        %v2340 = vunpack.c.l.b16 %v2243
        %v2341 = vunpack.c.h.b16 %v2243
        %v2342 = vunpack.c.l.b16 %v2244
        %v2343 = vunpack.c.h.b16 %v2244
        %v2344 = vunpack.c.l.b16 %v2245
        %v2345 = vunpack.c.h.b16 %v2245
        %v2346 = vunpack.c.l.b16 %v2246
        %v2347 = vunpack.c.h.b16 %v2246
        %v2348 = vunpack.c.l.b16 %v2247
        %v2349 = vunpack.c.h.b16 %v2247
        %v2350 = vunpack.c.l.b16 %v2248
        %v2351 = vunpack.c.h.b16 %v2248
        %v2352 = vunpack.c.l.b16 %v2249
        %v2353 = vunpack.c.h.b16 %v2249
        %v2354 = vunpack.c.l.b16 %v2250
        %v2355 = vunpack.c.h.b16 %v2250
        %v2356 = vunpack.c.l.b16 %v2251
        %v2357 = vunpack.c.h.b16 %v2251
        %v2358 = vunpack.c.l.b16 %v2252
        %v2359 = vunpack.c.h.b16 %v2252
        %v2360 = vunpack.c.l.b16 %v2253
        %v2361 = vunpack.c.h.b16 %v2253
        %v2362 = vunpack.c.l.b16 %v2254
        %v2363 = vunpack.c.h.b16 %v2254
        %v2364 = vunpack.c.l.b16 %v2255
        %v2365 = vunpack.c.h.b16 %v2255
        %v2366 = vunpack.c.l.b16 %v2256
        %v2367 = vunpack.c.h.b16 %v2256
        %v2368 = vunpack.c.l.b16 %v2257
        %v2369 = vunpack.c.h.b16 %v2257
        %v2370 = vunpack.c.l.b16 %v2258
        %v2371 = vunpack.c.h.b16 %v2258
        %v2372 = vunpack.c.l.b16 %v2259
        %v2373 = vunpack.c.h.b16 %v2259
        %v2374 = vunpack.c.l.b16 %v2260
        %v2375 = vunpack.c.h.b16 %v2260
        %v2376 = vunpack.c.l.b16 %v2261
        %v2377 = vunpack.c.h.b16 %v2261
        %v2378 = vunpack.c.l.b16 %v2262
        %v2379 = vunpack.c.h.b16 %v2262
        %v2380 = vunpack.c.l.b16 %v2263
        %v2381 = vunpack.c.h.b16 %v2263
        %v2382 = vunpack.c.l.b16 %v2264
        %v2383 = vunpack.c.h.b16 %v2264
        %v2384 = vunpack.c.l.b16 %v2265
        %v2385 = vunpack.c.h.b16 %v2265
        %v2386 = vunpack.c.l.b16 %v2266
        %v2387 = vunpack.c.h.b16 %v2266
        %v2388 = vunpack.c.l.b16 %v2267
        %v2389 = vunpack.c.h.b16 %v2267
        %v2390 = vunpack.c.l.b16 %v2268
        %v2391 = vunpack.c.h.b16 %v2268
        %v2392 = vunpack.c.l.b16 %v2269
        %v2393 = vunpack.c.h.b16 %v2269
        %v2394 = vunpack.c.l.b16 %v2270
        %v2395 = vunpack.c.h.b16 %v2270
        %v2396 = vunpack.c.l.b16 %v2271
        %v2397 = vunpack.c.h.b16 %v2271
        %v2398 = vunpack.c.l.b16 %v2272
        %v2399 = vunpack.c.h.b16 %v2272
        %v2400 = vunpack.c.l.b16 %v2273
        %v2401 = vunpack.c.h.b16 %v2273
        %v2402 = vunpack.c.l.b16 %v2274
        %v2403 = vunpack.c.h.b16 %v2274
        %v2404 = vunpack.c.l.b16 %v2275
        %v2405 = vunpack.c.h.b16 %v2275
        %v2406 = vpack.c.b16 %v2336, %v2334
        %v2407 = vpack.c.b16 %v2337, %v2335
        %v2408 = vpack.c.b16 %v2340, %v2338
        %v2409 = vpack.c.b16 %v2341, %v2339
        %v2410 = vpack.c.b16 %v2344, %v2342
        %v2411 = vpack.c.b16 %v2345, %v2343
        %v2412 = vpack.c.b16 %v2348, %v2346
        %v2413 = vpack.c.b16 %v2349, %v2347
        %v2414 = vpack.c.b16 %v2352, %v2350
        %v2415 = vpack.c.b16 %v2353, %v2351
        %v2416 = vpack.c.b16 %v2356, %v2354
        %v2417 = vpack.c.b16 %v2357, %v2355
        %v2418 = vpack.c.b16 %v2360, %v2358
        %v2419 = vpack.c.b16 %v2361, %v2359
        %v2420 = vpack.c.b16 %v2364, %v2362
        %v2421 = vpack.c.b16 %v2365, %v2363
        %v2422 = vpack.c.b16 %v2368, %v2366
        %v2423 = vpack.c.b16 %v2369, %v2367
        %v2424 = vpack.c.b16 %v2372, %v2370
        %v2425 = vpack.c.b16 %v2373, %v2371
        %v2426 = vpack.c.b16 %v2376, %v2374
        %v2427 = vpack.c.b16 %v2377, %v2375
        %v2428 = vpack.c.b16 %v2380, %v2378
        %v2429 = vpack.c.b16 %v2381, %v2379
        %v2430 = vpack.c.b16 %v2384, %v2382
        %v2431 = vpack.c.b16 %v2385, %v2383
        %v2432 = vpack.c.b16 %v2388, %v2386
        %v2433 = vpack.c.b16 %v2389, %v2387
        %v2434 = vpack.c.b16 %v2392, %v2390
        %v2435 = vpack.c.b16 %v2393, %v2391
        %v2436 = vpack.c.b16 %v2396, %v2394
        %v2437 = vpack.c.b16 %v2397, %v2395
        %v2438 = vpack.c.b16 %v2400, %v2398
        %v2439 = vpack.c.b16 %v2401, %v2399
        %v2440 = vpack.c.b16 %v2404, %v2402
        %v2441 = vpack.c.b16 %v2405, %v2403
        %v2478 = vunpack.c.l.b16 %v2276
        %v2479 = vunpack.c.l.b16 %v2277
        %v2480 = vunpack.c.l.b16 %v2278
        %v2481 = vunpack.c.l.b16 %v2279
        %v2482 = vunpack.c.l.b16 %v2280
        %v2483 = vunpack.c.l.b16 %v2281
        %v2484 = vunpack.c.l.b16 %v2282
        %v2485 = vunpack.c.l.b16 %v2283
        %v2486 = vunpack.c.l.b16 %v2284
        %v2487 = vunpack.c.l.b16 %v2285
        %v2488 = vunpack.c.l.b16 %v2286
        %v2489 = vunpack.c.l.b16 %v2287
        %v2490 = vunpack.c.l.b16 %v2288
        %v2491 = vunpack.c.l.b16 %v2289
        %v2492 = vunpack.c.l.b16 %v2290
        %v2493 = vunpack.c.l.b16 %v2291
        %v2494 = vunpack.c.l.b16 %v2292
        %v2495 = vunpack.c.l.b16 %v2293
        %v2496 = vpack.c.b16 %v2479, %v2478
        %v2497 = vpack.c.b16 %v2481, %v2480
        %v2498 = vpack.c.b16 %v2483, %v2482
        %v2499 = vpack.c.b16 %v2485, %v2484
        %v2500 = vpack.c.b16 %v2487, %v2486
        %v2501 = vpack.c.b16 %v2489, %v2488
        %v2502 = vpack.c.b16 %v2491, %v2490
        %v2503 = vpack.c.b16 %v2493, %v2492
        %v2504 = vpack.c.b16 %v2495, %v2494
        %vm2514 = vcmask 130048
        %v2516 = vsel %vm2514, %v2407, 0
        %v2519 = vsel %vm2514, %v2409, 0
        %v2522 = vsel %vm2514, %v2411, 0
        %v2525 = vsel %vm2514, %v2413, 0
        %v2528 = vsel %vm2514, %v2415, 0
        %v2531 = vsel %vm2514, %v2417, 0
        %v2534 = vsel %vm2514, %v2419, 0
        %v2537 = vsel %vm2514, %v2421, 0
        %v2540 = vsel %vm2514, %v2423, 0
        %v2543 = vsel %vm2514, %v2425, 0
        %v2546 = vsel %vm2514, %v2427, 0
        %v2549 = vsel %vm2514, %v2429, 0
        %v2552 = vsel %vm2514, %v2431, 0
        %v2555 = vsel %vm2514, %v2433, 0
        %v2558 = vsel %vm2514, %v2435, 0
        %v2561 = vsel %vm2514, %v2437, 0
        %v2564 = vsel %vm2514, %v2439, 0
        %v2567 = vsel %vm2514, %v2441, 0
        %2569 = vmatpush.bf16.msra.mxu0 %v2503
        %2570 = vmatpush.bf16.msra.mxu0 %v2502
        %2571 = vmatpush.bf16.msra.mxu0 %v2501
        %2572 = vmatpush.bf16.msra.mxu0 %v2500
        %2573 = vmatpush.bf16.msra.mxu0 %v2499
        %2574 = vmatpush.bf16.msra.mxu0 %v2498
        %2575 = vmatpush.bf16.msra.mxu0 %v2497
        %2576 = vmatpush.bf16.msra.mxu0 %v2496
        %2577 = vmatmul.bf16.gmra.mxu0 %v2406
        %v2578 = vpop.f32.mrf.mxu0
        %v2579 = vadd.f32 %v2296, %v2578
        %v2580 = vpop.f32.mrf.mxu0
        %v2581 = vadd.f32 %v2296, %v2580
        %2582 = vmatmul.bf16.gmra.mxu0 %v2408
        %v2583 = vpop.f32.mrf.mxu0
        %v2584 = vadd.f32 %v2296, %v2583
        %v2585 = vpop.f32.mrf.mxu0
        %v2586 = vadd.f32 %v2296, %v2585
        %2587 = vmatmul.bf16.gmra.mxu0 %v2410
        %v2588 = vpop.f32.mrf.mxu0
        %v2589 = vadd.f32 %v2296, %v2588
        %v2590 = vpop.f32.mrf.mxu0
        %v2591 = vadd.f32 %v2296, %v2590
        %2592 = vmatmul.bf16.gmra.mxu0 %v2412
        %v2593 = vpop.f32.mrf.mxu0
        %v2594 = vadd.f32 %v2296, %v2593
        %v2595 = vpop.f32.mrf.mxu0
        %v2596 = vadd.f32 %v2296, %v2595
        %2597 = vmatmul.bf16.gmra.mxu0 %v2414
        %v2598 = vpop.f32.mrf.mxu0
        %v2599 = vadd.f32 %v2296, %v2598
        %v2600 = vpop.f32.mrf.mxu0
        %v2601 = vadd.f32 %v2296, %v2600
        %2602 = vmatmul.bf16.gmra.mxu0 %v2416
        %v2603 = vpop.f32.mrf.mxu0
        %v2604 = vadd.f32 %v2296, %v2603
        %v2605 = vpop.f32.mrf.mxu0
        %v2606 = vadd.f32 %v2296, %v2605
        %2607 = vmatmul.bf16.gmra.mxu0 %v2418
        %v2608 = vpop.f32.mrf.mxu0
        %v2609 = vadd.f32 %v2296, %v2608
        %v2610 = vpop.f32.mrf.mxu0
        %v2611 = vadd.f32 %v2296, %v2610
        %2612 = vmatmul.bf16.gmra.mxu0 %v2420
        %v2613 = vpop.f32.mrf.mxu0
        %v2614 = vadd.f32 %v2296, %v2613
        %v2615 = vpop.f32.mrf.mxu0
        %v2616 = vadd.f32 %v2296, %v2615
        %2617 = vmatmul.bf16.gmra.mxu0 %v2422
        %v2618 = vpop.f32.mrf.mxu0
        %v2619 = vadd.f32 %v2296, %v2618
        %v2620 = vpop.f32.mrf.mxu0
        %v2621 = vadd.f32 %v2296, %v2620
        %2622 = vmatmul.bf16.gmra.mxu0 %v2424
        %v2623 = vpop.f32.mrf.mxu0
        %v2624 = vadd.f32 %v2296, %v2623
        %v2625 = vpop.f32.mrf.mxu0
        %v2626 = vadd.f32 %v2296, %v2625
        %2627 = vmatmul.bf16.gmra.mxu0 %v2426
        %v2628 = vpop.f32.mrf.mxu0
        %v2629 = vadd.f32 %v2296, %v2628
        %v2630 = vpop.f32.mrf.mxu0
        %v2631 = vadd.f32 %v2296, %v2630
        %2632 = vmatmul.bf16.gmra.mxu0 %v2428
        %v2633 = vpop.f32.mrf.mxu0
        %v2634 = vadd.f32 %v2296, %v2633
        %v2635 = vpop.f32.mrf.mxu0
        %v2636 = vadd.f32 %v2296, %v2635
        %2637 = vmatmul.bf16.gmra.mxu0 %v2430
        %v2638 = vpop.f32.mrf.mxu0
        %v2639 = vadd.f32 %v2296, %v2638
        %v2640 = vpop.f32.mrf.mxu0
        %v2641 = vadd.f32 %v2296, %v2640
        %2642 = vmatmul.bf16.gmra.mxu0 %v2432
        %v2643 = vpop.f32.mrf.mxu0
        %v2644 = vadd.f32 %v2296, %v2643
        %v2645 = vpop.f32.mrf.mxu0
        %v2646 = vadd.f32 %v2296, %v2645
        %2647 = vmatmul.bf16.gmra.mxu0 %v2434
        %v2648 = vpop.f32.mrf.mxu0
        %v2649 = vadd.f32 %v2296, %v2648
        %v2650 = vpop.f32.mrf.mxu0
        %v2651 = vadd.f32 %v2296, %v2650
        %2652 = vmatmul.bf16.gmra.mxu0 %v2436
        %v2653 = vpop.f32.mrf.mxu0
        %v2654 = vadd.f32 %v2296, %v2653
        %v2655 = vpop.f32.mrf.mxu0
        %v2656 = vadd.f32 %v2296, %v2655
        %2657 = vmatmul.bf16.gmra.mxu0 %v2438
        %v2658 = vpop.f32.mrf.mxu0
        %v2659 = vadd.f32 %v2296, %v2658
        %v2660 = vpop.f32.mrf.mxu0
        %v2661 = vadd.f32 %v2296, %v2660
        %2662 = vmatmul.bf16.gmra.mxu0 %v2440
        %v2663 = vpop.f32.mrf.mxu0
        %v2664 = vadd.f32 %v2296, %v2663
        %v2665 = vpop.f32.mrf.mxu0
        %v2666 = vadd.f32 %v2296, %v2665
        %2667 = vdwg.mxu0
        %2668 = vmatpush.bf16.msra.mxu0 0
        %2669 = vmatpush.bf16.msra.mxu0 0
        %2670 = vmatpush.bf16.msra.mxu0 0
        %2671 = vmatpush.bf16.msra.mxu0 0
        %2672 = vmatpush.bf16.msra.mxu0 0
        %2673 = vmatpush.bf16.msra.mxu0 0
        %2674 = vmatpush.bf16.msra.mxu0 0
        %2675 = vmatpush.bf16.msra.mxu0 %v2504
        %2676 = vmatmul.bf16.gmra.mxu0 %v2516
        %v2677 = vpop.f32.mrf.mxu0
        %v2678 = vadd.f32 %v2579, %v2677
        %v2679 = vpop.f32.mrf.mxu0
        %v2680 = vadd.f32 %v2581, %v2679
        %2681 = vmatmul.bf16.gmra.mxu0 %v2519
        %v2682 = vpop.f32.mrf.mxu0
        %v2683 = vadd.f32 %v2584, %v2682
        %v2684 = vpop.f32.mrf.mxu0
        %v2685 = vadd.f32 %v2586, %v2684
        %2686 = vmatmul.bf16.gmra.mxu0 %v2522
        %v2687 = vpop.f32.mrf.mxu0
        %v2688 = vadd.f32 %v2589, %v2687
        %v2689 = vpop.f32.mrf.mxu0
        %v2690 = vadd.f32 %v2591, %v2689
        %2691 = vmatmul.bf16.gmra.mxu0 %v2525
        %v2692 = vpop.f32.mrf.mxu0
        %v2693 = vadd.f32 %v2594, %v2692
        %v2694 = vpop.f32.mrf.mxu0
        %v2695 = vadd.f32 %v2596, %v2694
        %2696 = vmatmul.bf16.gmra.mxu0 %v2528
        %v2697 = vpop.f32.mrf.mxu0
        %v2698 = vadd.f32 %v2599, %v2697
        %v2699 = vpop.f32.mrf.mxu0
        %v2700 = vadd.f32 %v2601, %v2699
        %2701 = vmatmul.bf16.gmra.mxu0 %v2531
        %v2702 = vpop.f32.mrf.mxu0
        %v2703 = vadd.f32 %v2604, %v2702
        %v2704 = vpop.f32.mrf.mxu0
        %v2705 = vadd.f32 %v2606, %v2704
        %2706 = vmatmul.bf16.gmra.mxu0 %v2534
        %v2707 = vpop.f32.mrf.mxu0
        %v2708 = vadd.f32 %v2609, %v2707
        %v2709 = vpop.f32.mrf.mxu0
        %v2710 = vadd.f32 %v2611, %v2709
        %2711 = vmatmul.bf16.gmra.mxu0 %v2537
        %v2712 = vpop.f32.mrf.mxu0
        %v2713 = vadd.f32 %v2614, %v2712
        %v2714 = vpop.f32.mrf.mxu0
        %v2715 = vadd.f32 %v2616, %v2714
        %2716 = vmatmul.bf16.gmra.mxu0 %v2540
        %v2717 = vpop.f32.mrf.mxu0
        %v2718 = vadd.f32 %v2619, %v2717
        %v2719 = vpop.f32.mrf.mxu0
        %v2720 = vadd.f32 %v2621, %v2719
        %2721 = vmatmul.bf16.gmra.mxu0 %v2543
        %v2722 = vpop.f32.mrf.mxu0
        %v2723 = vadd.f32 %v2624, %v2722
        %v2724 = vpop.f32.mrf.mxu0
        %v2725 = vadd.f32 %v2626, %v2724
        %2726 = vmatmul.bf16.gmra.mxu0 %v2546
        %v2727 = vpop.f32.mrf.mxu0
        %v2728 = vadd.f32 %v2629, %v2727
        %v2729 = vpop.f32.mrf.mxu0
        %v2730 = vadd.f32 %v2631, %v2729
        %2731 = vmatmul.bf16.gmra.mxu0 %v2549
        %v2732 = vpop.f32.mrf.mxu0
        %v2733 = vadd.f32 %v2634, %v2732
        %v2734 = vpop.f32.mrf.mxu0
        %v2735 = vadd.f32 %v2636, %v2734
        %2736 = vmatmul.bf16.gmra.mxu0 %v2552
        %v2737 = vpop.f32.mrf.mxu0
        %v2738 = vadd.f32 %v2639, %v2737
        %v2739 = vpop.f32.mrf.mxu0
        %v2740 = vadd.f32 %v2641, %v2739
        %2741 = vmatmul.bf16.gmra.mxu0 %v2555
        %v2742 = vpop.f32.mrf.mxu0
        %v2743 = vadd.f32 %v2644, %v2742
        %v2744 = vpop.f32.mrf.mxu0
        %v2745 = vadd.f32 %v2646, %v2744
        %2746 = vmatmul.bf16.gmra.mxu0 %v2558
        %v2747 = vpop.f32.mrf.mxu0
        %v2748 = vadd.f32 %v2649, %v2747
        %v2749 = vpop.f32.mrf.mxu0
        %v2750 = vadd.f32 %v2651, %v2749
        %2751 = vmatmul.bf16.gmra.mxu0 %v2561
        %v2752 = vpop.f32.mrf.mxu0
        %v2753 = vadd.f32 %v2654, %v2752
        %v2754 = vpop.f32.mrf.mxu0
        %v2755 = vadd.f32 %v2656, %v2754
        %2756 = vmatmul.bf16.gmra.mxu0 %v2564
        %v2757 = vpop.f32.mrf.mxu0
        %v2758 = vadd.f32 %v2659, %v2757
        %v2759 = vpop.f32.mrf.mxu0
        %v2760 = vadd.f32 %v2661, %v2759
        %2761 = vmatmul.bf16.gmra.mxu0 %v2567
        %v2762 = vpop.f32.mrf.mxu0
        %v2763 = vadd.f32 %v2664, %v2762
        %v2764 = vpop.f32.mrf.mxu0
        %v2765 = vadd.f32 %v2666, %v2764
        %2766 = vdwg.mxu0
        %v2767 = vmax.f32 %v2678, 0.0
        %v2768 = vmax.f32 %v2680, 0.0
        %v2769 = vmax.f32 %v2683, 0.0
        %v2770 = vmax.f32 %v2685, 0.0
        %v2771 = vmax.f32 %v2688, 0.0
        %v2772 = vmax.f32 %v2690, 0.0
        %v2773 = vmax.f32 %v2693, 0.0
        %v2774 = vmax.f32 %v2695, 0.0
        %v2775 = vmax.f32 %v2698, 0.0
        %v2776 = vmax.f32 %v2700, 0.0
        %v2777 = vmax.f32 %v2703, 0.0
        %v2778 = vmax.f32 %v2705, 0.0
        %v2779 = vmax.f32 %v2708, 0.0
        %v2780 = vmax.f32 %v2710, 0.0
        %v2781 = vmax.f32 %v2713, 0.0
        %v2782 = vmax.f32 %v2715, 0.0
        %v2783 = vmax.f32 %v2718, 0.0
        %v2784 = vmax.f32 %v2720, 0.0
        %v2785 = vmax.f32 %v2723, 0.0
        %v2786 = vmax.f32 %v2725, 0.0
        %v2787 = vmax.f32 %v2728, 0.0
        %v2788 = vmax.f32 %v2730, 0.0
        %v2789 = vmax.f32 %v2733, 0.0
        %v2790 = vmax.f32 %v2735, 0.0
        %v2791 = vmax.f32 %v2738, 0.0
        %v2792 = vmax.f32 %v2740, 0.0
        %v2793 = vmax.f32 %v2743, 0.0
        %v2794 = vmax.f32 %v2745, 0.0
        %v2795 = vmax.f32 %v2748, 0.0
        %v2796 = vmax.f32 %v2750, 0.0
        %v2797 = vmax.f32 %v2753, 0.0
        %v2798 = vmax.f32 %v2755, 0.0
        %v2799 = vmax.f32 %v2758, 0.0
        %v2800 = vmax.f32 %v2760, 0.0
        %v2801 = vmax.f32 %v2763, 0.0
        %v2802 = vmax.f32 %v2765, 0.0
        %v2803 = vpack.c.bf16 %v2768, %v2767
        %v2804 = vpack.c.bf16 %v2770, %v2769
        %v2805 = vpack.c.bf16 %v2772, %v2771
        %v2806 = vpack.c.bf16 %v2774, %v2773
        %v2807 = vpack.c.bf16 %v2776, %v2775
        %v2808 = vpack.c.bf16 %v2778, %v2777
        %v2809 = vpack.c.bf16 %v2780, %v2779
        %v2810 = vpack.c.bf16 %v2782, %v2781
        %v2811 = vpack.c.bf16 %v2784, %v2783
        %v2812 = vpack.c.bf16 %v2786, %v2785
        %v2813 = vpack.c.bf16 %v2788, %v2787
        %v2814 = vpack.c.bf16 %v2790, %v2789
        %v2815 = vpack.c.bf16 %v2792, %v2791
        %v2816 = vpack.c.bf16 %v2794, %v2793
        %v2817 = vpack.c.bf16 %v2796, %v2795
        %v2818 = vpack.c.bf16 %v2798, %v2797
        %v2819 = vpack.c.bf16 %v2800, %v2799
        %v2820 = vpack.c.bf16 %v2802, %v2801
        %v2821 = vld [vmem:[%s3] sm:$0xf]
        %v2822 = vld [vmem:[%s3 + $0x4] sm:$0xf]
        %v2823 = vld [vmem:[%s3 + $0x8] sm:$0xf]
        %v2824 = vld [vmem:[%s3 + $0xc] sm:$0xf]
        %v2825 = vld [vmem:[%s3 + $0x10] sm:$0xf]
        %v2826 = vld [vmem:[%s3 + $0x14] sm:$0xf]
        %v2827 = vld [vmem:[%s3 + $0x18] sm:$0xf]
        %v2828 = vld [vmem:[%s3 + $0x1c] sm:$0xf]
        %v2829 = vld [vmem:[%s3 + $0x20] sm:$0xf]
        %v2830 = vld [vmem:[%s3 + $0x24] sm:$0xf]
        %v2831 = vld [vmem:[%s3 + $0x28] sm:$0xf]
        %v2832 = vld [vmem:[%s3 + $0x2c] sm:$0xf]
        %v2833 = vld [vmem:[%s3 + $0x30] sm:$0xf]
        %v2834 = vld [vmem:[%s3 + $0x34] sm:$0xf]
        %v2835 = vld [vmem:[%s3 + $0x38] sm:$0xf]
        %v2836 = vld [vmem:[%s3 + $0x3c] sm:$0xf]
        %v2837 = vld [vmem:[%s4] sm:$0x1]
        %v2839 = vperm.slane %v2837, 0
        %v2857 = vunpack.c.l.b16 %v2821
        %v2858 = vunpack.c.l.b16 %v2822
        %v2859 = vunpack.c.l.b16 %v2823
        %v2860 = vunpack.c.l.b16 %v2824
        %v2861 = vunpack.c.l.b16 %v2825
        %v2862 = vunpack.c.l.b16 %v2826
        %v2863 = vunpack.c.l.b16 %v2827
        %v2864 = vunpack.c.l.b16 %v2828
        %v2865 = vunpack.c.l.b16 %v2829
        %v2866 = vunpack.c.l.b16 %v2830
        %v2867 = vunpack.c.l.b16 %v2831
        %v2868 = vunpack.c.l.b16 %v2832
        %v2869 = vunpack.c.l.b16 %v2833
        %v2870 = vunpack.c.l.b16 %v2834
        %v2871 = vunpack.c.l.b16 %v2835
        %v2872 = vunpack.c.l.b16 %v2836
        %v2873 = vpack.c.b16 %v2858, %v2857
        %v2874 = vpack.c.b16 %v2860, %v2859
        %v2875 = vpack.c.b16 %v2862, %v2861
        %v2876 = vpack.c.b16 %v2864, %v2863
        %v2877 = vpack.c.b16 %v2866, %v2865
        %v2878 = vpack.c.b16 %v2868, %v2867
        %v2879 = vpack.c.b16 %v2870, %v2869
        %v2880 = vpack.c.b16 %v2872, %v2871
        %2889 = vmatpush.bf16.msra.mxu0 %v2880
        %2890 = vmatpush.bf16.msra.mxu0 %v2879
        %2891 = vmatpush.bf16.msra.mxu0 %v2878
        %2892 = vmatpush.bf16.msra.mxu0 %v2877
        %2893 = vmatpush.bf16.msra.mxu0 %v2876
        %2894 = vmatpush.bf16.msra.mxu0 %v2875
        %2895 = vmatpush.bf16.msra.mxu0 %v2874
        %2896 = vmatpush.bf16.msra.mxu0 %v2873
        %2897 = vmatmul.bf16.gmra.mxu0 %v2803
        %v2898 = vpop.f32.mrf.mxu0
        %v2899 = vadd.f32 %v2839, %v2898
        %v2900 = vpop.f32.mrf.mxu0
        %v2901 = vadd.f32 %v2839, %v2900
        %2902 = vmatmul.bf16.gmra.mxu0 %v2804
        %v2903 = vpop.f32.mrf.mxu0
        %v2904 = vadd.f32 %v2839, %v2903
        %v2905 = vpop.f32.mrf.mxu0
        %v2906 = vadd.f32 %v2839, %v2905
        %2907 = vmatmul.bf16.gmra.mxu0 %v2805
        %v2908 = vpop.f32.mrf.mxu0
        %v2909 = vadd.f32 %v2839, %v2908
        %v2910 = vpop.f32.mrf.mxu0
        %v2911 = vadd.f32 %v2839, %v2910
        %2912 = vmatmul.bf16.gmra.mxu0 %v2806
        %v2913 = vpop.f32.mrf.mxu0
        %v2914 = vadd.f32 %v2839, %v2913
        %v2915 = vpop.f32.mrf.mxu0
        %v2916 = vadd.f32 %v2839, %v2915
        %2917 = vmatmul.bf16.gmra.mxu0 %v2807
        %v2918 = vpop.f32.mrf.mxu0
        %v2919 = vadd.f32 %v2839, %v2918
        %v2920 = vpop.f32.mrf.mxu0
        %v2921 = vadd.f32 %v2839, %v2920
        %2922 = vmatmul.bf16.gmra.mxu0 %v2808
        %v2923 = vpop.f32.mrf.mxu0
        %v2924 = vadd.f32 %v2839, %v2923
        %v2925 = vpop.f32.mrf.mxu0
        %v2926 = vadd.f32 %v2839, %v2925
        %2927 = vmatmul.bf16.gmra.mxu0 %v2809
        %v2928 = vpop.f32.mrf.mxu0
        %v2929 = vadd.f32 %v2839, %v2928
        %v2930 = vpop.f32.mrf.mxu0
        %v2931 = vadd.f32 %v2839, %v2930
        %2932 = vmatmul.bf16.gmra.mxu0 %v2810
        %v2933 = vpop.f32.mrf.mxu0
        %v2934 = vadd.f32 %v2839, %v2933
        %v2935 = vpop.f32.mrf.mxu0
        %v2936 = vadd.f32 %v2839, %v2935
        %2937 = vmatmul.bf16.gmra.mxu0 %v2811
        %v2938 = vpop.f32.mrf.mxu0
        %v2939 = vadd.f32 %v2839, %v2938
        %v2940 = vpop.f32.mrf.mxu0
        %v2941 = vadd.f32 %v2839, %v2940
        %2942 = vmatmul.bf16.gmra.mxu0 %v2812
        %v2943 = vpop.f32.mrf.mxu0
        %v2944 = vadd.f32 %v2839, %v2943
        %v2945 = vpop.f32.mrf.mxu0
        %v2946 = vadd.f32 %v2839, %v2945
        %2947 = vmatmul.bf16.gmra.mxu0 %v2813
        %v2948 = vpop.f32.mrf.mxu0
        %v2949 = vadd.f32 %v2839, %v2948
        %v2950 = vpop.f32.mrf.mxu0
        %v2951 = vadd.f32 %v2839, %v2950
        %2952 = vmatmul.bf16.gmra.mxu0 %v2814
        %v2953 = vpop.f32.mrf.mxu0
        %v2954 = vadd.f32 %v2839, %v2953
        %v2955 = vpop.f32.mrf.mxu0
        %v2956 = vadd.f32 %v2839, %v2955
        %2957 = vmatmul.bf16.gmra.mxu0 %v2815
        %v2958 = vpop.f32.mrf.mxu0
        %v2959 = vadd.f32 %v2839, %v2958
        %v2960 = vpop.f32.mrf.mxu0
        %v2961 = vadd.f32 %v2839, %v2960
        %2962 = vmatmul.bf16.gmra.mxu0 %v2816
        %v2963 = vpop.f32.mrf.mxu0
        %v2964 = vadd.f32 %v2839, %v2963
        %v2965 = vpop.f32.mrf.mxu0
        %v2966 = vadd.f32 %v2839, %v2965
        %2967 = vmatmul.bf16.gmra.mxu0 %v2817
        %v2968 = vpop.f32.mrf.mxu0
        %v2969 = vadd.f32 %v2839, %v2968
        %v2970 = vpop.f32.mrf.mxu0
        %v2971 = vadd.f32 %v2839, %v2970
        %2972 = vmatmul.bf16.gmra.mxu0 %v2818
        %v2973 = vpop.f32.mrf.mxu0
        %v2974 = vadd.f32 %v2839, %v2973
        %v2975 = vpop.f32.mrf.mxu0
        %v2976 = vadd.f32 %v2839, %v2975
        %2977 = vmatmul.bf16.gmra.mxu0 %v2819
        %v2978 = vpop.f32.mrf.mxu0
        %v2979 = vadd.f32 %v2839, %v2978
        %v2980 = vpop.f32.mrf.mxu0
        %v2981 = vadd.f32 %v2839, %v2980
        %2982 = vmatmul.bf16.gmra.mxu0 %v2820
        %v2983 = vpop.f32.mrf.mxu0
        %v2984 = vadd.f32 %v2839, %v2983
        %v2985 = vpop.f32.mrf.mxu0
        %v2986 = vadd.f32 %v2839, %v2985
        %2987 = vdwg.mxu0
        %v2988 = vpack.c.bf16 %v2899, %v2899
        %v2989 = vpack.c.bf16 %v2901, %v2901
        %v2990 = vpack.c.bf16 %v2904, %v2904
        %v2991 = vpack.c.bf16 %v2906, %v2906
        %v2992 = vpack.c.bf16 %v2909, %v2909
        %v2993 = vpack.c.bf16 %v2911, %v2911
        %v2994 = vpack.c.bf16 %v2914, %v2914
        %v2995 = vpack.c.bf16 %v2916, %v2916
        %v2996 = vpack.c.bf16 %v2919, %v2919
        %v2997 = vpack.c.bf16 %v2921, %v2921
        %v2998 = vpack.c.bf16 %v2924, %v2924
        %v2999 = vpack.c.bf16 %v2926, %v2926
        %v3000 = vpack.c.bf16 %v2929, %v2929
        %v3001 = vpack.c.bf16 %v2931, %v2931
        %v3002 = vpack.c.bf16 %v2934, %v2934
        %v3003 = vpack.c.bf16 %v2936, %v2936
        %v3004 = vpack.c.bf16 %v2939, %v2939
        %v3005 = vpack.c.bf16 %v2941, %v2941
        %v3006 = vpack.c.bf16 %v2944, %v2944
        %v3007 = vpack.c.bf16 %v2946, %v2946
        %v3008 = vpack.c.bf16 %v2949, %v2949
        %v3009 = vpack.c.bf16 %v2951, %v2951
        %v3010 = vpack.c.bf16 %v2954, %v2954
        %v3011 = vpack.c.bf16 %v2956, %v2956
        %v3012 = vpack.c.bf16 %v2959, %v2959
        %v3013 = vpack.c.bf16 %v2961, %v2961
        %v3014 = vpack.c.bf16 %v2964, %v2964
        %v3015 = vpack.c.bf16 %v2966, %v2966
        %v3016 = vpack.c.bf16 %v2969, %v2969
        %v3017 = vpack.c.bf16 %v2971, %v2971
        %v3018 = vpack.c.bf16 %v2974, %v2974
        %v3019 = vpack.c.bf16 %v2976, %v2976
        %v3020 = vpack.c.bf16 %v2979, %v2979
        %v3021 = vpack.c.bf16 %v2981, %v2981
        %v3022 = vpack.c.bf16 %v2984, %v2984
        %v3023 = vpack.c.bf16 %v2986, %v2986
        %3024 = vst [vmem:[%s241] sm:$0xf] %v2988
        %3025 = vst [vmem:[%s241 + $0x4] sm:$0xf] %v2989
        %3026 = vst [vmem:[%s241 + $0x8] sm:$0xf] %v2990
        %3027 = vst [vmem:[%s241 + $0xc] sm:$0xf] %v2991
        %3028 = vst [vmem:[%s241 + $0x10] sm:$0xf] %v2992
        %3029 = vst [vmem:[%s241 + $0x14] sm:$0xf] %v2993
        %3030 = vst [vmem:[%s241 + $0x18] sm:$0xf] %v2994
        %3031 = vst [vmem:[%s241 + $0x1c] sm:$0xf] %v2995
        %3032 = vst [vmem:[%s241 + $0x20] sm:$0xf] %v2996
        %3033 = vst [vmem:[%s241 + $0x24] sm:$0xf] %v2997
        %3034 = vst [vmem:[%s241 + $0x28] sm:$0xf] %v2998
        %3035 = vst [vmem:[%s241 + $0x2c] sm:$0xf] %v2999
        %3036 = vst [vmem:[%s241 + $0x30] sm:$0xf] %v3000
        %3037 = vst [vmem:[%s241 + $0x34] sm:$0xf] %v3001
        %3038 = vst [vmem:[%s241 + $0x38] sm:$0xf] %v3002
        %3039 = vst [vmem:[%s241 + $0x3c] sm:$0xf] %v3003
        %3040 = vst [vmem:[%s241 + $0x40] sm:$0xf] %v3004
        %3041 = vst [vmem:[%s241 + $0x44] sm:$0xf] %v3005
        %3042 = vst [vmem:[%s241 + $0x48] sm:$0xf] %v3006
        %3043 = vst [vmem:[%s241 + $0x4c] sm:$0xf] %v3007
        %3044 = vst [vmem:[%s241 + $0x50] sm:$0xf] %v3008
        %3045 = vst [vmem:[%s241 + $0x54] sm:$0xf] %v3009
        %3046 = vst [vmem:[%s241 + $0x58] sm:$0xf] %v3010
        %3047 = vst [vmem:[%s241 + $0x5c] sm:$0xf] %v3011
        %3048 = vst [vmem:[%s241 + $0x60] sm:$0xf] %v3012
        %3049 = vst [vmem:[%s241 + $0x64] sm:$0xf] %v3013
        %3050 = vst [vmem:[%s241 + $0x68] sm:$0xf] %v3014
        %3051 = vst [vmem:[%s241 + $0x6c] sm:$0xf] %v3015
        %3052 = vst [vmem:[%s241 + $0x70] sm:$0xf] %v3016
        %3053 = vst [vmem:[%s241 + $0x74] sm:$0xf] %v3017
        %3054 = vst [vmem:[%s241 + $0x78] sm:$0xf] %v3018
        %3055 = vst [vmem:[%s241 + $0x7c] sm:$0xf] %v3019
        %3056 = vst [vmem:[%s241 + $0x80] sm:$0xf] %v3020
        %3057 = vst [vmem:[%s241 + $0x84] sm:$0xf] %v3021
        %3058 = vst [vmem:[%s241 + $0x88] sm:$0xf] %v3022
        %3059 = vst [vmem:[%s241 + $0x8c] sm:$0xf] %v3023
        %s3060 = sand.u32 %s153, 1
        %s3061 = scalar_lea.sflag [#allocation4], %s3060
        %s3062 = sand.u32 %s153, 1
        %s3063 = smul.addr %s3062, 144
        %s3064 = scalar_lea.vmem [#allocation3], %s3063
        // Predicated region
        $region41: #{tpu_custom_call.1} parent=39 // pred_check
          %p3065 = pneg %p163
        $region42: #{tpu_custom_call.1} parent=39 // pred_check_branch
          %3067 = sbr.rel (%p3065) target = $region44
        $region43: #{tpu_custom_call.1} parent=39 // pred_region
          %3069 = vsyncadd %s3061, 0
          %s3070 = smul.addr %s24, 36
          %s3071 = smul.addr %s23, 36
          %s3072 = sadd.s32 %s3070, %s3071
          %s3073 = smul.addr %s3072, 4
          %s3074 = scalar_lea.hbm %s5, %s3073
          %s3075 = sshll.u32 %s3064, 4
          %s3076 = int_to_ptr.vmem [resolvable:$true] %s3075
          %s3077 = sshll.u32 %s3074, 4
          %s3078 = int_to_ptr.hbm [resolvable:$true] %s3077
          %3083 = dma.vmem_to_hbm [thread:$0]  %s3076, 2304, %s3078, %s3061, 64, 64, 4
        $region44: #{tpu_custom_call.1} parent=39 // pred_fallthru
          _
      $region40: #{tpu_custom_call.1} parent=5 // pred_fallthru
        _
      %p3084 = scmp.le.s32.totalorder 2, %s14
      // Predicated region
      $region45: #{tpu_custom_call.1} parent=5 // pred_check
        %p3085 = pneg %p3084
      $region46: #{tpu_custom_call.1} parent=5 // pred_check_branch
        %3087 = sbr.rel (%p3085) target = $region48
      $region47: #{tpu_custom_call.1} parent=5 // pred_region
        %s3088 = ssub.s32 %s14, 2
        // Predicated region
        $region49: #{tpu_custom_call.1} parent=47 // pred_check
          %p3089 = pneg %p169
        $region50: #{tpu_custom_call.1} parent=47 // pred_check_branch
          %3091 = sbr.rel (%p3089) target = $region52
        $region51: #{tpu_custom_call.1} parent=47 // pred_region
          %s3092 = sand.u32 %s154, 1
          %s3093 = scalar_lea.sflag [#allocation4], %s3092
          %s3094 = sand.u32 %s154, 1
          %s3095 = smul.addr %s3094, 144
          %s3096 = scalar_lea.vmem [#allocation3], %s3095
          %3098 = dma.done %s3093, 2304
        $region52: #{tpu_custom_call.1} parent=47 // pred_fallthru
          _
      $region48: #{tpu_custom_call.1} parent=5 // pred_fallthru
        _
    $region6: #{tpu_custom_call.1} parent=1 // loop_footer
      %s18 = sadd.s32 1, %s14
    $region7: #{tpu_custom_call.1} parent=1 // loop_footer_branch
      %13 = sbr.rel target = $region3
    $region8: #{tpu_custom_call.1} parent=1 // loop_exit
      _
    %3099 = vsyncpa [#allocation4], 1
    %s3100 = scalar_lea.sflag [#allocation4], 1
    %3101 = vsyncpa %s3100, 1

</llo_original>
